<compile_context>
chip_gen: v7x
topology: tpu7x:2x2x1
jax: 0.10.0
libtpu: 0.0.40
codegen_flags: <defaults>
</compile_context>

<pallas_src>
import functools
import math

import jax
import jax.numpy as jnp
from jax.experimental import pallas as pl
from jax.experimental.pallas import tpu as pltpu

F32 = jnp.float32
LN_EPS = 1e-5
BN_EPS = 1e-5
NEG_INF = -1e30          # python float -> jaxpr literal (never a captured const)
LANE = 128


def _round_up(x, m):
    return (x + m - 1) // m * m


def _const_spec(a):
    nd = a.ndim
    return pl.BlockSpec(a.shape, lambda l: (0,) * nd)


def _layer_spec(a):
    nd = a.ndim
    return pl.BlockSpec((1,) + a.shape[1:], lambda l: (l,) + (0,) * (nd - 1))


# ---------------------------------------------------------------------------
# Fused decoder kernel: grid = (dec_layers,), activations VMEM-resident.
# ---------------------------------------------------------------------------
def _fused_decoder_kernel(
        # constant-index inputs (DMA'd once)
        x0_ref, w_in_ref, invec_ref, qf_ref, qe_ref,
        hln_ref, wc_ref, bc_ref,
        hw1_ref, hb1_ref, hw2_ref, hb2_ref, hw3_ref, hb3_ref,
        mf_ref, idx_ref,
        # per-layer stacked inputs (block index = layer)
        lw_ref, lvec_ref, fw1_ref, fw2_ref, fb1_ref,
        # outputs
        pc_ref, pm_ref, fc_ref, fm_ref,
        # scratch (persists across grid steps)
        src_scr, out_scr,
        *, nheads):
    l = pl.program_id(0)
    n_layers = pl.num_programs(0)

    N, H = src_scr.shape
    Q = out_scr.shape[0]
    head_dim = H // nheads
    scale = 1.0 / math.sqrt(head_dim)

    def layer_norm(y, g, b):
        mu = jnp.mean(y, axis=-1, keepdims=True)
        var = jnp.mean((y - mu) ** 2, axis=-1, keepdims=True)
        return (y - mu) * jax.lax.rsqrt(var + LN_EPS) * g + b

    # ---- step 0: input projection (Linear -> BatchNorm1d (batch stats) ->
    #              ReLU -> +level_embed) and query-feature init ------------
    @pl.when(l == 0)
    def _init():
        iv = invec_ref[...]                      # rows: [bias, bn_g, bn_b, level]
        y = jnp.dot(x0_ref[...], w_in_ref[...], preferred_element_type=F32) + iv[0:1]
        mu = jnp.mean(y, axis=0, keepdims=True)
        var = jnp.mean((y - mu) ** 2, axis=0, keepdims=True)
        y = (y - mu) * jax.lax.rsqrt(var + BN_EPS) * iv[1:2] + iv[2:3]
        y = jnp.maximum(y, 0.0)
        src_scr[...] = y + iv[3:4]
        out_scr[...] = qf_ref[...]

    # ---- prediction head: decoder-LN -> class_embed -> mask-embed MLP ->
    #      mask logits; optionally segment-max over points (scatter_max) ----
    def pred_head(x, need_attn):
        hln = hln_ref[...]
        d = layer_norm(x, hln[0:1], hln[1:2])
        cls = jnp.dot(d, wc_ref[...], preferred_element_type=F32) + bc_ref[...]
        h1 = jnp.maximum(jnp.dot(d, hw1_ref[...], preferred_element_type=F32) + hb1_ref[...], 0.0)
        h2 = jnp.maximum(jnp.dot(h1, hw2_ref[...], preferred_element_type=F32) + hb2_ref[...], 0.0)
        me = jnp.dot(h2, hw3_ref[...], preferred_element_type=F32) + hb3_ref[...]
        m = jnp.dot(me, mf_ref[...], preferred_element_type=F32)       # (Q, PP)
        if not need_attn:
            return cls, m, None
        # segment max over the point dim (torch_scatter.scatter_max): running
        # max over point chunks so the intermediate is O(Q*N*chunk) not
        # O(Q*N*P).
        # TODO(synk): torch_scatter fill convention for never-hit segments is
        # approximated with -1e30 (all segments are hit in this setup).
        PP = m.shape[1]
        pchunk = min(PP, 512)
        idx = idx_ref[...]                                             # (1, PP) int32
        attn = None
        for c0 in range(0, PP, pchunk):
            cw = min(pchunk, PP - c0)
            seg = jax.lax.broadcasted_iota(jnp.int32, (N, cw), 0)
            oh = idx[:, c0:c0 + cw] == seg                             # (N, cw)
            masked = jnp.where(oh[None, :, :],
                               m[:, c0:c0 + cw][:, None, :], NEG_INF)  # (Q, N, cw)
            cur = jnp.max(masked, axis=-1)                             # (Q, N)
            attn = cur if attn is None else jnp.maximum(attn, cur)
        return cls, m, attn

    # ---- multi-head attention + residual + post-LayerNorm -----------------
    # (per-head loop; transpose folded into dot_general, output projection
    #  accumulated per head -> no concat / explicit .T)
    def mha(xq, xk, xv, residual, mask, wslab, vecs):
        wq, wk, wv, wo = wslab[0:H], wslab[H:2 * H], wslab[2 * H:3 * H], wslab[3 * H:4 * H]
        q = jnp.dot(xq, wq, preferred_element_type=F32) + vecs[0:1]
        k = jnp.dot(xk, wk, preferred_element_type=F32) + vecs[1:2]
        v = jnp.dot(xv, wv, preferred_element_type=F32) + vecs[2:3]
        acc = jnp.zeros((xq.shape[0], H), F32)
        for h in range(nheads):
            sl = slice(h * head_dim, (h + 1) * head_dim)
            s = jax.lax.dot_general(q[:, sl], k[:, sl],
                                    (((1,), (1,)), ((), ())),
                                    preferred_element_type=F32) * scale
            if mask is not None:
                s = s + mask
            s = s - jnp.max(s, axis=-1, keepdims=True)
            p = jnp.exp(s)
            p = p / jnp.sum(p, axis=-1, keepdims=True)
            ctx = jnp.dot(p, v[:, sl], preferred_element_type=F32)
            acc = acc + jnp.dot(ctx, wo[sl, :], preferred_element_type=F32)
        y = residual + acc + vecs[3:4]
        return layer_norm(y, vecs[4:5], vecs[5:6])

    # ---- per-step body -----------------------------------------------------
    out = out_scr[...]
    cls, m, attn = pred_head(out, need_attn=True)
    pc_ref[0] = cls
    pm_ref[0] = m

    # reference quirk: rows whose float sum equals the row length -> reset to 0
    row_full = jnp.sum(attn, axis=-1, keepdims=True) == float(N)
    attn = jnp.where(row_full, 0.0, attn)

    lw = lw_ref[0]            # (8H, H): cross [wq;wk;wv;wo] then self [wq;wk;wv;wo]
    lv = lvec_ref[0]          # (15, H): cross/self biases+LN, ffn [b2, ln_g, ln_b]
    qe = qe_ref[...]
    src = src_scr[...]

    # cross-attention: q = tgt + query_pos, k = v = memory, additive float mask
    out = mha(out + qe, src, src, out, attn, lw[0:4 * H], lv[0:6])
    # self-attention: q = k = tgt + query_pos, v = tgt, no mask (specialized)
    q_in = out + qe
    out = mha(q_in, q_in, out, out, None, lw[4 * H:8 * H], lv[6:12])
    # FFN: Linear -> ReLU -> Linear -> residual -> LayerNorm
    hmid = jnp.maximum(jnp.dot(out, fw1_ref[0], preferred_element_type=F32) + fb1_ref[0], 0.0)
    t = jnp.dot(hmid, fw2_ref[0], preferred_element_type=F32) + lv[12:13]
    out = layer_norm(out + t, lv[13:14], lv[14:15])
    out_scr[...] = out

    # final prediction head (out_forward_prediction_heads) after the last layer
    @pl.when(l == n_layers - 1)
    def _final():
        cls_f, m_f, _ = pred_head(out, need_attn=False)
        fc_ref[...] = cls_f
        fm_ref[...] = m_f


# ---------------------------------------------------------------------------
# Parameter init (module __init__ shapes) and packing into kernel slabs.
# ---------------------------------------------------------------------------
def init_params(key, cfg):
    H, Fd, Q = cfg['hidden_dim'], cfg['dim_feedforward'], cfg['num_queries']
    C, M, Cin, L = cfg['num_classes'], cfg['mask_dim'], cfg['in_channels'], cfg['dec_layers']
    ks = iter(jax.random.split(key, 512))

    def w(shape):
        s = 1.0 / math.sqrt(shape[0])
        return jax.random.uniform(next(ks), shape, F32, -s, s)

    def b(n):
        return jnp.zeros((1, n), F32)

    def attn_params():
        return dict(wq=w((H, H)), bq=b(H), wk=w((H, H)), bk=b(H), wv=w((H, H)), bv=b(H),
                    wo=w((H, H)), bo=b(H),
                    ln_g=jnp.ones((1, H), F32), ln_b=jnp.zeros((1, H), F32))

    layers = [dict(cross=attn_params(), self=attn_params(),
                   ffn=dict(w1=w((H, Fd)), b1=b(Fd), w2=w((Fd, H)), b2=b(H),
                            ln_g=jnp.ones((1, H), F32), ln_b=jnp.zeros((1, H), F32)))
              for _ in range(L)]

    head = dict(ln_g=jnp.ones((1, H), F32), ln_b=jnp.zeros((1, H), F32),
                wc=w((H, C + 1)), bc=b(C + 1),
                w1=w((H, H)), b1=b(H), w2=w((H, H)), b2=b(H), w3=w((H, M)), b3=b(M))

    inproj = dict(w=w((Cin, H)), b=b(H),
                  bn_g=jnp.ones((1, H), F32), bn_b=jnp.zeros((1, H), F32),
                  level=jax.random.normal(next(ks), (1, H), F32))

    return dict(layers=layers, head=head, inproj=inproj,
                query_feat=jax.random.normal(next(ks), (Q, H), F32),
                query_embed=jax.random.normal(next(ks), (Q, H), F32))


def pack_params(params, cfg):
    """Stack per-layer params into (L, ...) slabs and lane-pad the class head
    so the fused kernel's outputs are 128-lane dense."""
    C1 = cfg['num_classes'] + 1
    CP = _round_up(C1, LANE)

    lw, lvec, fw1, fw2, fb1 = [], [], [], [], []
    for lp in params['layers']:
        c, s, f = lp['cross'], lp['self'], lp['ffn']
        lw.append(jnp.concatenate([c['wq'], c['wk'], c['wv'], c['wo'],
                                   s['wq'], s['wk'], s['wv'], s['wo']], axis=0))
        lvec.append(jnp.concatenate([c['bq'], c['bk'], c['bv'], c['bo'], c['ln_g'], c['ln_b'],
                                     s['bq'], s['bk'], s['bv'], s['bo'], s['ln_g'], s['ln_b'],
                                     f['b2'], f['ln_g'], f['ln_b']], axis=0))
        fw1.append(f['w1'])
        fw2.append(f['w2'])
        fb1.append(f['b1'])

    h = params['head']
    ip = params['inproj']
    return dict(
        lw=jnp.stack(lw), lvec=jnp.stack(lvec),
        fw1=jnp.stack(fw1), fw2=jnp.stack(fw2), fb1=jnp.stack(fb1),
        hln=jnp.concatenate([h['ln_g'], h['ln_b']], axis=0),
        wc=jnp.pad(h['wc'], ((0, 0), (0, CP - C1))),
        bc=jnp.pad(h['bc'], ((0, 0), (0, CP - C1))),
        hw1=h['w1'], hb1=h['b1'], hw2=h['w2'], hb2=h['b2'], hw3=h['w3'], hb3=h['b3'],
        w_in=ip['w'],
        invec=jnp.concatenate([ip['b'], ip['bn_g'], ip['bn_b'], ip['level']], axis=0),
        qf=params['query_feat'], qe=params['query_embed'])


# ---------------------------------------------------------------------------
# Forward pass: one fused pallas_call + host-side slicing of padded outputs.
# ---------------------------------------------------------------------------
def decoder_forward(packed, cfg, x_list, mask_features, x_pos_list, scatter_index_list):
    nheads, L, Q, H = cfg['nheads'], cfg['dec_layers'], cfg['num_queries'], cfg['hidden_dim']
    C1 = cfg['num_classes'] + 1

    # ---- single feature level (num_feature_levels = 1) ----
    x0 = x_list[0].astype(F32)                       # (N, in_channels)
    N = x0.shape[0]
    # TODO(synk): position_embeding(x_pos) is computed by the reference but its
    # result is never consumed (pos=None in cross-attention), so it is skipped.
    del x_pos_list

    mf = mask_features[0].astype(F32)                # (mask_dim, P)
    P = mf.shape[1]
    PP = _round_up(P, LANE)
    mf_pad = jnp.pad(mf, ((0, 0), (0, PP - P)))      # zero-pad extra point columns

    idx = scatter_index_list[0].astype(jnp.int32)
    idx = idx - jnp.min(idx)                         # scatter_index - min(scatter_index)
    idx_pad = jnp.concatenate([idx, jnp.full((PP - P,), N, jnp.int32)])  # pad -> no segment
    idx2d = idx_pad.reshape(1, PP)

    CP = packed['wc'].shape[1]

    inputs = (x0, packed['w_in'], packed['invec'], packed['qf'], packed['qe'],
              packed['hln'], packed['wc'], packed['bc'],
              packed['hw1'], packed['hb1'], packed['hw2'], packed['hb2'],
              packed['hw3'], packed['hb3'],
              mf_pad, idx2d,
              packed['lw'], packed['lvec'], packed['fw1'], packed['fw2'], packed['fb1'])
    in_specs = [_const_spec(a) for a in inputs[:16]] + [_layer_spec(a) for a in inputs[16:]]

    out_shape = (jax.ShapeDtypeStruct((L, Q, CP), F32),
                 jax.ShapeDtypeStruct((L, Q, PP), F32),
                 jax.ShapeDtypeStruct((Q, CP), F32),
                 jax.ShapeDtypeStruct((Q, PP), F32))
    out_specs = (pl.BlockSpec((1, Q, CP), lambda l: (l, 0, 0)),
                 pl.BlockSpec((1, Q, PP), lambda l: (l, 0, 0)),
                 pl.BlockSpec((Q, CP), lambda l: (0, 0)),
                 pl.BlockSpec((Q, PP), lambda l: (0, 0)))

    kern = functools.partial(_fused_decoder_kernel, nheads=nheads)
    pc, pm, fc, fm = pl.pallas_call(
        kern,
        out_shape=out_shape,
        grid_spec=pltpu.PrefetchScalarGridSpec(
            num_scalar_prefetch=0,
            grid=(L,),
            in_specs=in_specs,
            out_specs=out_specs,
            scratch_shapes=[pltpu.VMEM((N, H), F32),   # src (memory) across layers
                            pltpu.VMEM((Q, H), F32)],  # query features across layers
        ),
        compiler_params=pltpu.CompilerParams(dimension_semantics=("arbitrary",)),
    )(*inputs)

    # host-side: slice the lane-padded outputs and assemble the aux-loss list
    preds_class = [pc[i, :, :C1][None] for i in range(L)]   # each (1, Q, num_classes+1)
    preds_mask = [pm[i, :, :P] for i in range(L)]           # each (Q, P)
    aux = [{'pred_logits': a, 'pred_masks': b} for a, b in zip(preds_class, preds_mask)]
    outputs_class = fc[:, :C1][None]                        # (1, Q, num_classes+1)
    outputs_mask = fm[:, :P]                                # (Q, P) == outputs_mask.squeeze()
    return outputs_class, outputs_mask, aux


# ---------------------------------------------------------------------------
if __name__ == "__main__":
    cfg = dict(in_channels=8, hidden_dim=32, num_queries=8, nheads=4,
               dim_feedforward=64, dec_layers=3, num_classes=5, mask_dim=32)

    key = jax.random.PRNGKey(0)
    kp, kx, km, kpos = jax.random.split(key, 4)
    params = init_params(kp, cfg)
    packed = pack_params(params, cfg)

    N, P = 16, 64  # points at feature level 0 / points in mask_features
    x = [jax.random.normal(kx, (N, cfg['in_channels']), F32)]
    mask_features = jax.random.normal(km, (1, cfg['mask_dim'], P), F32)  # (bs, mask_dim, P)
    x_pos = [jax.random.uniform(kpos, (N, 3), F32)]
    # every segment 0..N-1 is hit (torch_scatter scatter_max assumption)
    scatter_index = [jnp.arange(P, dtype=jnp.int32) % N]

    out_cls, out_mask, aux = decoder_forward(packed, cfg, x, mask_features, x_pos, scatter_index)
    jax.block_until_ready((out_cls, out_mask))

    assert out_cls.shape == (1, cfg['num_queries'], cfg['num_classes'] + 1)
    assert out_mask.shape == (cfg['num_queries'], P)
    assert len(aux) == cfg['dec_layers']
    print("KERNEL_OK")
</pallas_src>

<mosaic_0001>
module attributes {stable_mosaic.version = 11 : i64} {
  func.func @_fused_decoder_kernel(%arg0: i32, %arg1: memref<16x8xf32, #tpu.memory_space<vmem>>, %arg2: memref<8x32xf32, #tpu.memory_space<vmem>>, %arg3: memref<4x32xf32, #tpu.memory_space<vmem>>, %arg4: memref<8x32xf32, #tpu.memory_space<vmem>>, %arg5: memref<8x32xf32, #tpu.memory_space<vmem>>, %arg6: memref<2x32xf32, #tpu.memory_space<vmem>>, %arg7: memref<32x128xf32, #tpu.memory_space<vmem>>, %arg8: memref<1x128xf32, #tpu.memory_space<vmem>>, %arg9: memref<32x32xf32, #tpu.memory_space<vmem>>, %arg10: memref<1x32xf32, #tpu.memory_space<vmem>>, %arg11: memref<32x32xf32, #tpu.memory_space<vmem>>, %arg12: memref<1x32xf32, #tpu.memory_space<vmem>>, %arg13: memref<32x32xf32, #tpu.memory_space<vmem>>, %arg14: memref<1x32xf32, #tpu.memory_space<vmem>>, %arg15: memref<32x128xf32, #tpu.memory_space<vmem>>, %arg16: memref<1x128xi32, #tpu.memory_space<vmem>>, %arg17: memref<1x256x32xf32, #tpu.memory_space<vmem>>, %arg18: memref<1x15x32xf32, #tpu.memory_space<vmem>>, %arg19: memref<1x32x64xf32, #tpu.memory_space<vmem>>, %arg20: memref<1x64x32xf32, #tpu.memory_space<vmem>>, %arg21: memref<1x1x64xf32, #tpu.memory_space<vmem>>, %arg22: memref<1x8x128xf32, #tpu.memory_space<vmem>>, %arg23: memref<1x8x128xf32, #tpu.memory_space<vmem>>, %arg24: memref<8x128xf32, #tpu.memory_space<vmem>>, %arg25: memref<8x128xf32, #tpu.memory_space<vmem>>, %arg26: memref<16x32xf32, #tpu.memory_space<vmem>>, %arg27: memref<8x32xf32, #tpu.memory_space<vmem>>) attributes {dimension_semantics = [#tpu.dimension_semantics<arbitrary>], iteration_bounds = array<i64: 3>, scalar_prefetch = 0 : i64, scratch_operands = 2 : i64, tpu.core_type = #tpu.core_type<tc>, window_params = [{pipeline_mode = #tpu.pipeline_mode<synchronous>, transform_indices = @transform_0, window_bounds = array<i64: 16, 8>}, {pipeline_mode = #tpu.pipeline_mode<synchronous>, transform_indices = @transform_1, window_bounds = array<i64: 8, 32>}, {pipeline_mode = #tpu.pipeline_mode<synchronous>, transform_indices = @transform_2, window_bounds = array<i64: 4, 32>}, {pipeline_mode = #tpu.pipeline_mode<synchronous>, transform_indices = @transform_3, window_bounds = array<i64: 8, 32>}, {pipeline_mode = #tpu.pipeline_mode<synchronous>, transform_indices = @transform_4, window_bounds = array<i64: 8, 32>}, {pipeline_mode = #tpu.pipeline_mode<synchronous>, transform_indices = @transform_5, window_bounds = array<i64: 2, 32>}, {pipeline_mode = #tpu.pipeline_mode<synchronous>, transform_indices = @transform_6, window_bounds = array<i64: 32, 128>}, {pipeline_mode = #tpu.pipeline_mode<synchronous>, transform_indices = @transform_7, window_bounds = array<i64: 1, 128>}, {pipeline_mode = #tpu.pipeline_mode<synchronous>, transform_indices = @transform_8, window_bounds = array<i64: 32, 32>}, {pipeline_mode = #tpu.pipeline_mode<synchronous>, transform_indices = @transform_9, window_bounds = array<i64: 1, 32>}, {pipeline_mode = #tpu.pipeline_mode<synchronous>, transform_indices = @transform_10, window_bounds = array<i64: 32, 32>}, {pipeline_mode = #tpu.pipeline_mode<synchronous>, transform_indices = @transform_11, window_bounds = array<i64: 1, 32>}, {pipeline_mode = #tpu.pipeline_mode<synchronous>, transform_indices = @transform_12, window_bounds = array<i64: 32, 32>}, {pipeline_mode = #tpu.pipeline_mode<synchronous>, transform_indices = @transform_13, window_bounds = array<i64: 1, 32>}, {pipeline_mode = #tpu.pipeline_mode<synchronous>, transform_indices = @transform_14, window_bounds = array<i64: 32, 128>}, {pipeline_mode = #tpu.pipeline_mode<synchronous>, transform_indices = @transform_15, window_bounds = array<i64: 1, 128>}, {transform_indices = @transform_16, window_bounds = array<i64: 1, 256, 32>}, {transform_indices = @transform_17, window_bounds = array<i64: 1, 15, 32>}, {transform_indices = @transform_18, window_bounds = array<i64: 1, 32, 64>}, {transform_indices = @transform_19, window_bounds = array<i64: 1, 64, 32>}, {transform_indices = @transform_20, window_bounds = array<i64: 1, 1, 64>}, {transform_indices = @transform_21, window_bounds = array<i64: 1, 8, 128>}, {transform_indices = @transform_22, window_bounds = array<i64: 1, 8, 128>}, {pipeline_mode = #tpu.pipeline_mode<synchronous>, transform_indices = @transform_23, window_bounds = array<i64: 8, 128>}, {pipeline_mode = #tpu.pipeline_mode<synchronous>, transform_indices = @transform_24, window_bounds = array<i64: 8, 128>}]} {
    %c0_i32 = arith.constant 0 : i32
    %0 = arith.cmpi eq, %arg0, %c0_i32 : i32
    %1 = arith.extui %0 : i1 to i32
    %c0_i32_0 = arith.constant 0 : i32
    %2 = arith.cmpi ne, %1, %c0_i32_0 : i32
    scf.if %2 {
      %c0_142 = arith.constant 0 : index
      %c0_143 = arith.constant 0 : index
      %384 = vector.load %arg3[%c0_142, %c0_143] : memref<4x32xf32, #tpu.memory_space<vmem>>, vector<4x32xf32>
      %c0_144 = arith.constant 0 : index
      %c0_145 = arith.constant 0 : index
      %385 = vector.load %arg1[%c0_144, %c0_145] : memref<16x8xf32, #tpu.memory_space<vmem>>, vector<16x8xf32>
      %c0_146 = arith.constant 0 : index
      %c0_147 = arith.constant 0 : index
      %386 = vector.load %arg2[%c0_146, %c0_147] : memref<8x32xf32, #tpu.memory_space<vmem>>, vector<8x32xf32>
      %cst_148 = arith.constant dense<0.000000e+00> : vector<16x32xf32>
      %387 = tpu.matmul %385, %386, %cst_148 {dimension_numbers = #tpu.dot_dimension_numbers<[1], [0], [0], [1], [0, 0, 1, 1], [], []>} : vector<16x8xf32>, vector<8x32xf32>, vector<16x32xf32> -> vector<16x32xf32>
      %388 = vector.extract_strided_slice %384 {offsets = [0, 0], sizes = [1, 32], strides = [1, 1]} : vector<4x32xf32> to vector<1x32xf32>
      %389 = vector.broadcast %388 : vector<1x32xf32> to vector<16x32xf32>
      %390 = arith.addf %387, %389 : vector<16x32xf32>
      %cst_149 = arith.constant dense<0.000000e+00> : vector<32xf32>
      %391 = vector.multi_reduction <add>, %390, %cst_149 [0] : vector<16x32xf32> to vector<32xf32>
      %392 = vector.shape_cast %391 : vector<32xf32> to vector<1x32xf32>
      %cst_150 = arith.constant 1.600000e+01 : f32
      %393 = vector.broadcast %cst_150 : f32 to vector<1x32xf32>
      %394 = arith.divf %392, %393 : vector<1x32xf32>
      %395 = vector.broadcast %394 : vector<1x32xf32> to vector<16x32xf32>
      %396 = arith.subf %390, %395 : vector<16x32xf32>
      %397 = arith.mulf %396, %396 : vector<16x32xf32>
      %cst_151 = arith.constant dense<0.000000e+00> : vector<32xf32>
      %398 = vector.multi_reduction <add>, %397, %cst_151 [0] : vector<16x32xf32> to vector<32xf32>
      %399 = vector.shape_cast %398 : vector<32xf32> to vector<1x32xf32>
      %cst_152 = arith.constant 1.600000e+01 : f32
      %400 = vector.broadcast %cst_152 : f32 to vector<1x32xf32>
      %401 = arith.divf %399, %400 : vector<1x32xf32>
      %402 = vector.broadcast %394 : vector<1x32xf32> to vector<16x32xf32>
      %403 = arith.subf %390, %402 : vector<16x32xf32>
      %cst_153 = arith.constant 9.99999974E-6 : f32
      %404 = vector.broadcast %cst_153 : f32 to vector<1x32xf32>
      %405 = arith.addf %401, %404 : vector<1x32xf32>
      %406 = math.rsqrt %405 : vector<1x32xf32>
      %407 = vector.broadcast %406 : vector<1x32xf32> to vector<16x32xf32>
      %408 = arith.mulf %403, %407 : vector<16x32xf32>
      %409 = vector.extract_strided_slice %384 {offsets = [1, 0], sizes = [1, 32], strides = [1, 1]} : vector<4x32xf32> to vector<1x32xf32>
      %410 = vector.broadcast %409 : vector<1x32xf32> to vector<16x32xf32>
      %411 = arith.mulf %408, %410 : vector<16x32xf32>
      %412 = vector.extract_strided_slice %384 {offsets = [2, 0], sizes = [1, 32], strides = [1, 1]} : vector<4x32xf32> to vector<1x32xf32>
      %413 = vector.broadcast %412 : vector<1x32xf32> to vector<16x32xf32>
      %414 = arith.addf %411, %413 : vector<16x32xf32>
      %cst_154 = arith.constant 0.000000e+00 : f32
      %415 = vector.broadcast %cst_154 : f32 to vector<16x32xf32>
      %416 = arith.maximumf %414, %415 : vector<16x32xf32>
      %417 = vector.extract_strided_slice %384 {offsets = [3, 0], sizes = [1, 32], strides = [1, 1]} : vector<4x32xf32> to vector<1x32xf32>
      %418 = vector.broadcast %417 : vector<1x32xf32> to vector<16x32xf32>
      %419 = arith.addf %416, %418 : vector<16x32xf32>
      %c0_155 = arith.constant 0 : index
      %c0_156 = arith.constant 0 : index
      %420 = vector.load %arg26[%c0_155, %c0_156] : memref<16x32xf32, #tpu.memory_space<vmem>>, vector<16x32xf32>
      tpu.vector_store %arg26[%c0_155, %c0_156], %419 {strides = array<i32>} : memref<16x32xf32, #tpu.memory_space<vmem>>, vector<16x32xf32>,
      %c0_157 = arith.constant 0 : index
      %c0_158 = arith.constant 0 : index
      %421 = vector.load %arg4[%c0_157, %c0_158] : memref<8x32xf32, #tpu.memory_space<vmem>>, vector<8x32xf32>
      %c0_159 = arith.constant 0 : index
      %c0_160 = arith.constant 0 : index
      %422 = vector.load %arg27[%c0_159, %c0_160] : memref<8x32xf32, #tpu.memory_space<vmem>>, vector<8x32xf32>
      tpu.vector_store %arg27[%c0_159, %c0_160], %421 {strides = array<i32>} : memref<8x32xf32, #tpu.memory_space<vmem>>, vector<8x32xf32>,
    } else {
    }
    %c0 = arith.constant 0 : index
    %c0_1 = arith.constant 0 : index
    %3 = vector.load %arg27[%c0, %c0_1] : memref<8x32xf32, #tpu.memory_space<vmem>>, vector<8x32xf32>
    %c0_2 = arith.constant 0 : index
    %c0_3 = arith.constant 0 : index
    %4 = vector.load %arg6[%c0_2, %c0_3] : memref<2x32xf32, #tpu.memory_space<vmem>>, vector<2x32xf32>
    %5 = vector.extract_strided_slice %4 {offsets = [0, 0], sizes = [1, 32], strides = [1, 1]} : vector<2x32xf32> to vector<1x32xf32>
    %6 = vector.extract_strided_slice %4 {offsets = [1, 0], sizes = [1, 32], strides = [1, 1]} : vector<2x32xf32> to vector<1x32xf32>
    %cst = arith.constant dense<0.000000e+00> : vector<8xf32>
    %7 = vector.multi_reduction <add>, %3, %cst [1] : vector<8x32xf32> to vector<8xf32>
    %8 = vector.shape_cast %7 : vector<8xf32> to vector<8x1xf32>
    %cst_4 = arith.constant 3.200000e+01 : f32
    %9 = vector.broadcast %cst_4 : f32 to vector<8x1xf32>
    %10 = arith.divf %8, %9 : vector<8x1xf32>
    %11 = vector.broadcast %10 : vector<8x1xf32> to vector<8x32xf32>
    %12 = arith.subf %3, %11 : vector<8x32xf32>
    %13 = arith.mulf %12, %12 : vector<8x32xf32>
    %cst_5 = arith.constant dense<0.000000e+00> : vector<8xf32>
    %14 = vector.multi_reduction <add>, %13, %cst_5 [1] : vector<8x32xf32> to vector<8xf32>
    %15 = vector.shape_cast %14 : vector<8xf32> to vector<8x1xf32>
    %cst_6 = arith.constant 3.200000e+01 : f32
    %16 = vector.broadcast %cst_6 : f32 to vector<8x1xf32>
    %17 = arith.divf %15, %16 : vector<8x1xf32>
    %18 = vector.broadcast %10 : vector<8x1xf32> to vector<8x32xf32>
    %19 = arith.subf %3, %18 : vector<8x32xf32>
    %cst_7 = arith.constant 9.99999974E-6 : f32
    %20 = vector.broadcast %cst_7 : f32 to vector<8x1xf32>
    %21 = arith.addf %17, %20 : vector<8x1xf32>
    %22 = math.rsqrt %21 : vector<8x1xf32>
    %23 = vector.broadcast %22 : vector<8x1xf32> to vector<8x32xf32>
    %24 = arith.mulf %19, %23 : vector<8x32xf32>
    %25 = vector.broadcast %5 : vector<1x32xf32> to vector<8x32xf32>
    %26 = arith.mulf %24, %25 : vector<8x32xf32>
    %27 = vector.broadcast %6 : vector<1x32xf32> to vector<8x32xf32>
    %28 = arith.addf %26, %27 : vector<8x32xf32>
    %c0_8 = arith.constant 0 : index
    %c0_9 = arith.constant 0 : index
    %29 = vector.load %arg7[%c0_8, %c0_9] : memref<32x128xf32, #tpu.memory_space<vmem>>, vector<32x128xf32>
    %cst_10 = arith.constant dense<0.000000e+00> : vector<8x128xf32>
    %30 = tpu.matmul %28, %29, %cst_10 {dimension_numbers = #tpu.dot_dimension_numbers<[1], [0], [0], [1], [0, 0, 1, 1], [], []>} : vector<8x32xf32>, vector<32x128xf32>, vector<8x128xf32> -> vector<8x128xf32>
    %c0_11 = arith.constant 0 : index
    %c0_12 = arith.constant 0 : index
    %31 = vector.load %arg8[%c0_11, %c0_12] : memref<1x128xf32, #tpu.memory_space<vmem>>, vector<1x128xf32>
    %32 = vector.broadcast %31 : vector<1x128xf32> to vector<8x128xf32>
    %33 = arith.addf %30, %32 : vector<8x128xf32>
    %c0_13 = arith.constant 0 : index
    %c0_14 = arith.constant 0 : index
    %34 = vector.load %arg9[%c0_13, %c0_14] : memref<32x32xf32, #tpu.memory_space<vmem>>, vector<32x32xf32>
    %cst_15 = arith.constant dense<0.000000e+00> : vector<8x32xf32>
    %35 = tpu.matmul %28, %34, %cst_15 {dimension_numbers = #tpu.dot_dimension_numbers<[1], [0], [0], [1], [0, 0, 1, 1], [], []>} : vector<8x32xf32>, vector<32x32xf32>, vector<8x32xf32> -> vector<8x32xf32>
    %c0_16 = arith.constant 0 : index
    %c0_17 = arith.constant 0 : index
    %36 = vector.load %arg10[%c0_16, %c0_17] : memref<1x32xf32, #tpu.memory_space<vmem>>, vector<1x32xf32>
    %37 = vector.broadcast %36 : vector<1x32xf32> to vector<8x32xf32>
    %38 = arith.addf %35, %37 : vector<8x32xf32>
    %cst_18 = arith.constant 0.000000e+00 : f32
    %39 = vector.broadcast %cst_18 : f32 to vector<8x32xf32>
    %40 = arith.maximumf %38, %39 : vector<8x32xf32>
    %c0_19 = arith.constant 0 : index
    %c0_20 = arith.constant 0 : index
    %41 = vector.load %arg11[%c0_19, %c0_20] : memref<32x32xf32, #tpu.memory_space<vmem>>, vector<32x32xf32>
    %cst_21 = arith.constant dense<0.000000e+00> : vector<8x32xf32>
    %42 = tpu.matmul %40, %41, %cst_21 {dimension_numbers = #tpu.dot_dimension_numbers<[1], [0], [0], [1], [0, 0, 1, 1], [], []>} : vector<8x32xf32>, vector<32x32xf32>, vector<8x32xf32> -> vector<8x32xf32>
    %c0_22 = arith.constant 0 : index
    %c0_23 = arith.constant 0 : index
    %43 = vector.load %arg12[%c0_22, %c0_23] : memref<1x32xf32, #tpu.memory_space<vmem>>, vector<1x32xf32>
    %44 = vector.broadcast %43 : vector<1x32xf32> to vector<8x32xf32>
    %45 = arith.addf %42, %44 : vector<8x32xf32>
    %cst_24 = arith.constant 0.000000e+00 : f32
    %46 = vector.broadcast %cst_24 : f32 to vector<8x32xf32>
    %47 = arith.maximumf %45, %46 : vector<8x32xf32>
    %c0_25 = arith.constant 0 : index
    %c0_26 = arith.constant 0 : index
    %48 = vector.load %arg13[%c0_25, %c0_26] : memref<32x32xf32, #tpu.memory_space<vmem>>, vector<32x32xf32>
    %cst_27 = arith.constant dense<0.000000e+00> : vector<8x32xf32>
    %49 = tpu.matmul %47, %48, %cst_27 {dimension_numbers = #tpu.dot_dimension_numbers<[1], [0], [0], [1], [0, 0, 1, 1], [], []>} : vector<8x32xf32>, vector<32x32xf32>, vector<8x32xf32> -> vector<8x32xf32>
    %c0_28 = arith.constant 0 : index
    %c0_29 = arith.constant 0 : index
    %50 = vector.load %arg14[%c0_28, %c0_29] : memref<1x32xf32, #tpu.memory_space<vmem>>, vector<1x32xf32>
    %51 = vector.broadcast %50 : vector<1x32xf32> to vector<8x32xf32>
    %52 = arith.addf %49, %51 : vector<8x32xf32>
    %c0_30 = arith.constant 0 : index
    %c0_31 = arith.constant 0 : index
    %53 = vector.load %arg15[%c0_30, %c0_31] : memref<32x128xf32, #tpu.memory_space<vmem>>, vector<32x128xf32>
    %cst_32 = arith.constant dense<0.000000e+00> : vector<8x128xf32>
    %54 = tpu.matmul %52, %53, %cst_32 {dimension_numbers = #tpu.dot_dimension_numbers<[1], [0], [0], [1], [0, 0, 1, 1], [], []>} : vector<8x32xf32>, vector<32x128xf32>, vector<8x128xf32> -> vector<8x128xf32>
    %c0_33 = arith.constant 0 : index
    %c0_34 = arith.constant 0 : index
    %55 = vector.load %arg16[%c0_33, %c0_34] : memref<1x128xi32, #tpu.memory_space<vmem>>, vector<1x128xi32>
    %56 = tpu.iota {dimensions = array<i32: 0>} : vector<16x128xi32>
    %57 = vector.broadcast %55 : vector<1x128xi32> to vector<16x128xi32>
    %58 = arith.cmpi eq, %57, %56 : vector<16x128xi32>
    %59 = vector.shape_cast %58 : vector<16x128xi1> to vector<1x16x128xi1>
    %60 = vector.shape_cast %54 : vector<8x128xf32> to vector<8x1x128xf32>
    %cst_35 = arith.constant -1.000000e+30 : f32
    %61 = vector.shape_cast %59 : vector<1x16x128xi1> to vector<1x16x128xi1>
    %62 = vector.broadcast %61 : vector<1x16x128xi1> to vector<8x16x128xi1>
    %63 = vector.shape_cast %60 : vector<8x1x128xf32> to vector<8x1x128xf32>
    %64 = vector.broadcast %63 : vector<8x1x128xf32> to vector<8x16x128xf32>
    %65 = vector.broadcast %cst_35 : f32 to vector<8x16x128xf32>
    %66 = arith.select %62, %64, %65 : vector<8x16x128xi1>, vector<8x16x128xf32>
    %cst_36 = arith.constant dense<0xFF800000> : vector<8x16xf32>
    %67 = vector.multi_reduction <maximumf>, %66, %cst_36 [2] : vector<8x16x128xf32> to vector<8x16xf32>
    %c0_37 = arith.constant 0 : index
    %c0_38 = arith.constant 0 : index
    %c0_39 = arith.constant 0 : index
    %68 = vector.load %arg22[%c0_37, %c0_38, %c0_39] : memref<1x8x128xf32, #tpu.memory_space<vmem>>, vector<1x8x128xf32>
    %69 = vector.shape_cast %68 : vector<1x8x128xf32> to vector<8x128xf32>
    %70 = vector.shape_cast %33 : vector<8x128xf32> to vector<1x8x128xf32>
    tpu.vector_store %arg22[%c0_37, %c0_38, %c0_39], %70 {strides = array<i32>} : memref<1x8x128xf32, #tpu.memory_space<vmem>>, vector<1x8x128xf32>,
    %c0_40 = arith.constant 0 : index
    %c0_41 = arith.constant 0 : index
    %c0_42 = arith.constant 0 : index
    %71 = vector.load %arg23[%c0_40, %c0_41, %c0_42] : memref<1x8x128xf32, #tpu.memory_space<vmem>>, vector<1x8x128xf32>
    %72 = vector.shape_cast %71 : vector<1x8x128xf32> to vector<8x128xf32>
    %73 = vector.shape_cast %54 : vector<8x128xf32> to vector<1x8x128xf32>
    tpu.vector_store %arg23[%c0_40, %c0_41, %c0_42], %73 {strides = array<i32>} : memref<1x8x128xf32, #tpu.memory_space<vmem>>, vector<1x8x128xf32>,
    %cst_43 = arith.constant dense<0.000000e+00> : vector<8xf32>
    %74 = vector.multi_reduction <add>, %67, %cst_43 [1] : vector<8x16xf32> to vector<8xf32>
    %75 = vector.shape_cast %74 : vector<8xf32> to vector<8x1xf32>
    %cst_44 = arith.constant 1.600000e+01 : f32
    %76 = vector.broadcast %cst_44 : f32 to vector<8x1xf32>
    %77 = arith.cmpf oeq, %75, %76 : vector<8x1xf32>
    %cst_45 = arith.constant 0.000000e+00 : f32
    %78 = vector.shape_cast %77 : vector<8x1xi1> to vector<8x1xi1>
    %79 = vector.broadcast %78 : vector<8x1xi1> to vector<8x16xi1>
    %80 = vector.broadcast %cst_45 : f32 to vector<8x16xf32>
    %81 = arith.select %79, %80, %67 : vector<8x16xi1>, vector<8x16xf32>
    %c0_46 = arith.constant 0 : index
    %c0_47 = arith.constant 0 : index
    %c0_48 = arith.constant 0 : index
    %82 = vector.load %arg17[%c0_46, %c0_47, %c0_48] : memref<1x256x32xf32, #tpu.memory_space<vmem>>, vector<1x256x32xf32>
    %83 = vector.shape_cast %82 : vector<1x256x32xf32> to vector<256x32xf32>
    %c0_49 = arith.constant 0 : index
    %c0_50 = arith.constant 0 : index
    %c0_51 = arith.constant 0 : index
    %84 = vector.load %arg18[%c0_49, %c0_50, %c0_51] : memref<1x15x32xf32, #tpu.memory_space<vmem>>, vector<1x15x32xf32>
    %85 = vector.shape_cast %84 : vector<1x15x32xf32> to vector<15x32xf32>
    %c0_52 = arith.constant 0 : index
    %c0_53 = arith.constant 0 : index
    %86 = vector.load %arg5[%c0_52, %c0_53] : memref<8x32xf32, #tpu.memory_space<vmem>>, vector<8x32xf32>
    %c0_54 = arith.constant 0 : index
    %c0_55 = arith.constant 0 : index
    %87 = vector.load %arg26[%c0_54, %c0_55] : memref<16x32xf32, #tpu.memory_space<vmem>>, vector<16x32xf32>
    %88 = arith.addf %3, %86 : vector<8x32xf32>
    %89 = vector.extract_strided_slice %83 {offsets = [0, 0], sizes = [128, 32], strides = [1, 1]} : vector<256x32xf32> to vector<128x32xf32>
    %90 = vector.extract_strided_slice %85 {offsets = [0, 0], sizes = [6, 32], strides = [1, 1]} : vector<15x32xf32> to vector<6x32xf32>
    %91 = vector.extract_strided_slice %89 {offsets = [0, 0], sizes = [32, 32], strides = [1, 1]} : vector<128x32xf32> to vector<32x32xf32>
    %92 = vector.extract_strided_slice %89 {offsets = [32, 0], sizes = [32, 32], strides = [1, 1]} : vector<128x32xf32> to vector<32x32xf32>
    %93 = vector.extract_strided_slice %89 {offsets = [64, 0], sizes = [32, 32], strides = [1, 1]} : vector<128x32xf32> to vector<32x32xf32>
    %94 = vector.extract_strided_slice %89 {offsets = [96, 0], sizes = [32, 32], strides = [1, 1]} : vector<128x32xf32> to vector<32x32xf32>
    %cst_56 = arith.constant dense<0.000000e+00> : vector<8x32xf32>
    %95 = tpu.matmul %88, %91, %cst_56 {dimension_numbers = #tpu.dot_dimension_numbers<[1], [0], [0], [1], [0, 0, 1, 1], [], []>} : vector<8x32xf32>, vector<32x32xf32>, vector<8x32xf32> -> vector<8x32xf32>
    %96 = vector.extract_strided_slice %90 {offsets = [0, 0], sizes = [1, 32], strides = [1, 1]} : vector<6x32xf32> to vector<1x32xf32>
    %97 = vector.broadcast %96 : vector<1x32xf32> to vector<8x32xf32>
    %98 = arith.addf %95, %97 : vector<8x32xf32>
    %cst_57 = arith.constant dense<0.000000e+00> : vector<16x32xf32>
    %99 = tpu.matmul %87, %92, %cst_57 {dimension_numbers = #tpu.dot_dimension_numbers<[1], [0], [0], [1], [0, 0, 1, 1], [], []>} : vector<16x32xf32>, vector<32x32xf32>, vector<16x32xf32> -> vector<16x32xf32>
    %100 = vector.extract_strided_slice %90 {offsets = [1, 0], sizes = [1, 32], strides = [1, 1]} : vector<6x32xf32> to vector<1x32xf32>
    %101 = vector.broadcast %100 : vector<1x32xf32> to vector<16x32xf32>
    %102 = arith.addf %99, %101 : vector<16x32xf32>
    %cst_58 = arith.constant dense<0.000000e+00> : vector<16x32xf32>
    %103 = tpu.matmul %87, %93, %cst_58 {dimension_numbers = #tpu.dot_dimension_numbers<[1], [0], [0], [1], [0, 0, 1, 1], [], []>} : vector<16x32xf32>, vector<32x32xf32>, vector<16x32xf32> -> vector<16x32xf32>
    %104 = vector.extract_strided_slice %90 {offsets = [2, 0], sizes = [1, 32], strides = [1, 1]} : vector<6x32xf32> to vector<1x32xf32>
    %105 = vector.broadcast %104 : vector<1x32xf32> to vector<16x32xf32>
    %106 = arith.addf %103, %105 : vector<16x32xf32>
    %cst_59 = arith.constant 0.000000e+00 : f32
    %107 = vector.broadcast %cst_59 : f32 to vector<8x32xf32>
    %108 = vector.extract_strided_slice %98 {offsets = [0, 0], sizes = [8, 8], strides = [1, 1]} : vector<8x32xf32> to vector<8x8xf32>
    %109 = vector.extract_strided_slice %102 {offsets = [0, 0], sizes = [16, 8], strides = [1, 1]} : vector<16x32xf32> to vector<16x8xf32>
    %cst_60 = arith.constant dense<0.000000e+00> : vector<8x16xf32>
    %110 = tpu.matmul %108, %109, %cst_60 {dimension_numbers = #tpu.dot_dimension_numbers<[1], [1], [0], [0], [0, 0, 1, 0], [], []>} : vector<8x8xf32>, vector<16x8xf32>, vector<8x16xf32> -> vector<8x16xf32>
    %cst_61 = arith.constant 0.353553385 : f32
    %111 = vector.broadcast %cst_61 : f32 to vector<8x16xf32>
    %112 = arith.mulf %110, %111 : vector<8x16xf32>
    %113 = arith.addf %112, %81 : vector<8x16xf32>
    %cst_62 = arith.constant dense<0xFF800000> : vector<8xf32>
    %114 = vector.multi_reduction <maximumf>, %113, %cst_62 [1] : vector<8x16xf32> to vector<8xf32>
    %115 = vector.shape_cast %114 : vector<8xf32> to vector<8x1xf32>
    %116 = vector.broadcast %115 : vector<8x1xf32> to vector<8x16xf32>
    %117 = arith.subf %113, %116 : vector<8x16xf32>
    %118 = math.exp %117 : vector<8x16xf32>
    %cst_63 = arith.constant dense<0.000000e+00> : vector<8xf32>
    %119 = vector.multi_reduction <add>, %118, %cst_63 [1] : vector<8x16xf32> to vector<8xf32>
    %120 = vector.shape_cast %119 : vector<8xf32> to vector<8x1xf32>
    %121 = vector.broadcast %120 : vector<8x1xf32> to vector<8x16xf32>
    %122 = arith.divf %118, %121 : vector<8x16xf32>
    %123 = vector.extract_strided_slice %106 {offsets = [0, 0], sizes = [16, 8], strides = [1, 1]} : vector<16x32xf32> to vector<16x8xf32>
    %cst_64 = arith.constant dense<0.000000e+00> : vector<8x8xf32>
    %124 = tpu.matmul %122, %123, %cst_64 {dimension_numbers = #tpu.dot_dimension_numbers<[1], [0], [0], [1], [0, 0, 1, 1], [], []>} : vector<8x16xf32>, vector<16x8xf32>, vector<8x8xf32> -> vector<8x8xf32>
    %125 = vector.extract_strided_slice %94 {offsets = [0, 0], sizes = [8, 32], strides = [1, 1]} : vector<32x32xf32> to vector<8x32xf32>
    %cst_65 = arith.constant dense<0.000000e+00> : vector<8x32xf32>
    %126 = tpu.matmul %124, %125, %cst_65 {dimension_numbers = #tpu.dot_dimension_numbers<[1], [0], [0], [1], [0, 0, 1, 1], [], []>} : vector<8x8xf32>, vector<8x32xf32>, vector<8x32xf32> -> vector<8x32xf32>
    %127 = arith.addf %107, %126 : vector<8x32xf32>
    %128 = vector.extract_strided_slice %98 {offsets = [0, 8], sizes = [8, 8], strides = [1, 1]} : vector<8x32xf32> to vector<8x8xf32>
    %129 = vector.extract_strided_slice %102 {offsets = [0, 8], sizes = [16, 8], strides = [1, 1]} : vector<16x32xf32> to vector<16x8xf32>
    %cst_66 = arith.constant dense<0.000000e+00> : vector<8x16xf32>
    %130 = tpu.matmul %128, %129, %cst_66 {dimension_numbers = #tpu.dot_dimension_numbers<[1], [1], [0], [0], [0, 0, 1, 0], [], []>} : vector<8x8xf32>, vector<16x8xf32>, vector<8x16xf32> -> vector<8x16xf32>
    %cst_67 = arith.constant 0.353553385 : f32
    %131 = vector.broadcast %cst_67 : f32 to vector<8x16xf32>
    %132 = arith.mulf %130, %131 : vector<8x16xf32>
    %133 = arith.addf %132, %81 : vector<8x16xf32>
    %cst_68 = arith.constant dense<0xFF800000> : vector<8xf32>
    %134 = vector.multi_reduction <maximumf>, %133, %cst_68 [1] : vector<8x16xf32> to vector<8xf32>
    %135 = vector.shape_cast %134 : vector<8xf32> to vector<8x1xf32>
    %136 = vector.broadcast %135 : vector<8x1xf32> to vector<8x16xf32>
    %137 = arith.subf %133, %136 : vector<8x16xf32>
    %138 = math.exp %137 : vector<8x16xf32>
    %cst_69 = arith.constant dense<0.000000e+00> : vector<8xf32>
    %139 = vector.multi_reduction <add>, %138, %cst_69 [1] : vector<8x16xf32> to vector<8xf32>
    %140 = vector.shape_cast %139 : vector<8xf32> to vector<8x1xf32>
    %141 = vector.broadcast %140 : vector<8x1xf32> to vector<8x16xf32>
    %142 = arith.divf %138, %141 : vector<8x16xf32>
    %143 = vector.extract_strided_slice %106 {offsets = [0, 8], sizes = [16, 8], strides = [1, 1]} : vector<16x32xf32> to vector<16x8xf32>
    %cst_70 = arith.constant dense<0.000000e+00> : vector<8x8xf32>
    %144 = tpu.matmul %142, %143, %cst_70 {dimension_numbers = #tpu.dot_dimension_numbers<[1], [0], [0], [1], [0, 0, 1, 1], [], []>} : vector<8x16xf32>, vector<16x8xf32>, vector<8x8xf32> -> vector<8x8xf32>
    %145 = vector.extract_strided_slice %94 {offsets = [8, 0], sizes = [8, 32], strides = [1, 1]} : vector<32x32xf32> to vector<8x32xf32>
    %cst_71 = arith.constant dense<0.000000e+00> : vector<8x32xf32>
    %146 = tpu.matmul %144, %145, %cst_71 {dimension_numbers = #tpu.dot_dimension_numbers<[1], [0], [0], [1], [0, 0, 1, 1], [], []>} : vector<8x8xf32>, vector<8x32xf32>, vector<8x32xf32> -> vector<8x32xf32>
    %147 = arith.addf %127, %146 : vector<8x32xf32>
    %148 = vector.extract_strided_slice %98 {offsets = [0, 16], sizes = [8, 8], strides = [1, 1]} : vector<8x32xf32> to vector<8x8xf32>
    %149 = vector.extract_strided_slice %102 {offsets = [0, 16], sizes = [16, 8], strides = [1, 1]} : vector<16x32xf32> to vector<16x8xf32>
    %cst_72 = arith.constant dense<0.000000e+00> : vector<8x16xf32>
    %150 = tpu.matmul %148, %149, %cst_72 {dimension_numbers = #tpu.dot_dimension_numbers<[1], [1], [0], [0], [0, 0, 1, 0], [], []>} : vector<8x8xf32>, vector<16x8xf32>, vector<8x16xf32> -> vector<8x16xf32>
    %cst_73 = arith.constant 0.353553385 : f32
    %151 = vector.broadcast %cst_73 : f32 to vector<8x16xf32>
    %152 = arith.mulf %150, %151 : vector<8x16xf32>
    %153 = arith.addf %152, %81 : vector<8x16xf32>
    %cst_74 = arith.constant dense<0xFF800000> : vector<8xf32>
    %154 = vector.multi_reduction <maximumf>, %153, %cst_74 [1] : vector<8x16xf32> to vector<8xf32>
    %155 = vector.shape_cast %154 : vector<8xf32> to vector<8x1xf32>
    %156 = vector.broadcast %155 : vector<8x1xf32> to vector<8x16xf32>
    %157 = arith.subf %153, %156 : vector<8x16xf32>
    %158 = math.exp %157 : vector<8x16xf32>
    %cst_75 = arith.constant dense<0.000000e+00> : vector<8xf32>
    %159 = vector.multi_reduction <add>, %158, %cst_75 [1] : vector<8x16xf32> to vector<8xf32>
    %160 = vector.shape_cast %159 : vector<8xf32> to vector<8x1xf32>
    %161 = vector.broadcast %160 : vector<8x1xf32> to vector<8x16xf32>
    %162 = arith.divf %158, %161 : vector<8x16xf32>
    %163 = vector.extract_strided_slice %106 {offsets = [0, 16], sizes = [16, 8], strides = [1, 1]} : vector<16x32xf32> to vector<16x8xf32>
    %cst_76 = arith.constant dense<0.000000e+00> : vector<8x8xf32>
    %164 = tpu.matmul %162, %163, %cst_76 {dimension_numbers = #tpu.dot_dimension_numbers<[1], [0], [0], [1], [0, 0, 1, 1], [], []>} : vector<8x16xf32>, vector<16x8xf32>, vector<8x8xf32> -> vector<8x8xf32>
    %165 = vector.extract_strided_slice %94 {offsets = [16, 0], sizes = [8, 32], strides = [1, 1]} : vector<32x32xf32> to vector<8x32xf32>
    %cst_77 = arith.constant dense<0.000000e+00> : vector<8x32xf32>
    %166 = tpu.matmul %164, %165, %cst_77 {dimension_numbers = #tpu.dot_dimension_numbers<[1], [0], [0], [1], [0, 0, 1, 1], [], []>} : vector<8x8xf32>, vector<8x32xf32>, vector<8x32xf32> -> vector<8x32xf32>
    %167 = arith.addf %147, %166 : vector<8x32xf32>
    %168 = vector.extract_strided_slice %98 {offsets = [0, 24], sizes = [8, 8], strides = [1, 1]} : vector<8x32xf32> to vector<8x8xf32>
    %169 = vector.extract_strided_slice %102 {offsets = [0, 24], sizes = [16, 8], strides = [1, 1]} : vector<16x32xf32> to vector<16x8xf32>
    %cst_78 = arith.constant dense<0.000000e+00> : vector<8x16xf32>
    %170 = tpu.matmul %168, %169, %cst_78 {dimension_numbers = #tpu.dot_dimension_numbers<[1], [1], [0], [0], [0, 0, 1, 0], [], []>} : vector<8x8xf32>, vector<16x8xf32>, vector<8x16xf32> -> vector<8x16xf32>
    %cst_79 = arith.constant 0.353553385 : f32
    %171 = vector.broadcast %cst_79 : f32 to vector<8x16xf32>
    %172 = arith.mulf %170, %171 : vector<8x16xf32>
    %173 = arith.addf %172, %81 : vector<8x16xf32>
    %cst_80 = arith.constant dense<0xFF800000> : vector<8xf32>
    %174 = vector.multi_reduction <maximumf>, %173, %cst_80 [1] : vector<8x16xf32> to vector<8xf32>
    %175 = vector.shape_cast %174 : vector<8xf32> to vector<8x1xf32>
    %176 = vector.broadcast %175 : vector<8x1xf32> to vector<8x16xf32>
    %177 = arith.subf %173, %176 : vector<8x16xf32>
    %178 = math.exp %177 : vector<8x16xf32>
    %cst_81 = arith.constant dense<0.000000e+00> : vector<8xf32>
    %179 = vector.multi_reduction <add>, %178, %cst_81 [1] : vector<8x16xf32> to vector<8xf32>
    %180 = vector.shape_cast %179 : vector<8xf32> to vector<8x1xf32>
    %181 = vector.broadcast %180 : vector<8x1xf32> to vector<8x16xf32>
    %182 = arith.divf %178, %181 : vector<8x16xf32>
    %183 = vector.extract_strided_slice %106 {offsets = [0, 24], sizes = [16, 8], strides = [1, 1]} : vector<16x32xf32> to vector<16x8xf32>
    %cst_82 = arith.constant dense<0.000000e+00> : vector<8x8xf32>
    %184 = tpu.matmul %182, %183, %cst_82 {dimension_numbers = #tpu.dot_dimension_numbers<[1], [0], [0], [1], [0, 0, 1, 1], [], []>} : vector<8x16xf32>, vector<16x8xf32>, vector<8x8xf32> -> vector<8x8xf32>
    %185 = vector.extract_strided_slice %94 {offsets = [24, 0], sizes = [8, 32], strides = [1, 1]} : vector<32x32xf32> to vector<8x32xf32>
    %cst_83 = arith.constant dense<0.000000e+00> : vector<8x32xf32>
    %186 = tpu.matmul %184, %185, %cst_83 {dimension_numbers = #tpu.dot_dimension_numbers<[1], [0], [0], [1], [0, 0, 1, 1], [], []>} : vector<8x8xf32>, vector<8x32xf32>, vector<8x32xf32> -> vector<8x32xf32>
    %187 = arith.addf %167, %186 : vector<8x32xf32>
    %188 = arith.addf %3, %187 : vector<8x32xf32>
    %189 = vector.extract_strided_slice %90 {offsets = [3, 0], sizes = [1, 32], strides = [1, 1]} : vector<6x32xf32> to vector<1x32xf32>
    %190 = vector.broadcast %189 : vector<1x32xf32> to vector<8x32xf32>
    %191 = arith.addf %188, %190 : vector<8x32xf32>
    %192 = vector.extract_strided_slice %90 {offsets = [4, 0], sizes = [1, 32], strides = [1, 1]} : vector<6x32xf32> to vector<1x32xf32>
    %193 = vector.extract_strided_slice %90 {offsets = [5, 0], sizes = [1, 32], strides = [1, 1]} : vector<6x32xf32> to vector<1x32xf32>
    %cst_84 = arith.constant dense<0.000000e+00> : vector<8xf32>
    %194 = vector.multi_reduction <add>, %191, %cst_84 [1] : vector<8x32xf32> to vector<8xf32>
    %195 = vector.shape_cast %194 : vector<8xf32> to vector<8x1xf32>
    %cst_85 = arith.constant 3.200000e+01 : f32
    %196 = vector.broadcast %cst_85 : f32 to vector<8x1xf32>
    %197 = arith.divf %195, %196 : vector<8x1xf32>
    %198 = vector.broadcast %197 : vector<8x1xf32> to vector<8x32xf32>
    %199 = arith.subf %191, %198 : vector<8x32xf32>
    %200 = arith.mulf %199, %199 : vector<8x32xf32>
    %cst_86 = arith.constant dense<0.000000e+00> : vector<8xf32>
    %201 = vector.multi_reduction <add>, %200, %cst_86 [1] : vector<8x32xf32> to vector<8xf32>
    %202 = vector.shape_cast %201 : vector<8xf32> to vector<8x1xf32>
    %cst_87 = arith.constant 3.200000e+01 : f32
    %203 = vector.broadcast %cst_87 : f32 to vector<8x1xf32>
    %204 = arith.divf %202, %203 : vector<8x1xf32>
    %205 = vector.broadcast %197 : vector<8x1xf32> to vector<8x32xf32>
    %206 = arith.subf %191, %205 : vector<8x32xf32>
    %cst_88 = arith.constant 9.99999974E-6 : f32
    %207 = vector.broadcast %cst_88 : f32 to vector<8x1xf32>
    %208 = arith.addf %204, %207 : vector<8x1xf32>
    %209 = math.rsqrt %208 : vector<8x1xf32>
    %210 = vector.broadcast %209 : vector<8x1xf32> to vector<8x32xf32>
    %211 = arith.mulf %206, %210 : vector<8x32xf32>
    %212 = vector.broadcast %192 : vector<1x32xf32> to vector<8x32xf32>
    %213 = arith.mulf %211, %212 : vector<8x32xf32>
    %214 = vector.broadcast %193 : vector<1x32xf32> to vector<8x32xf32>
    %215 = arith.addf %213, %214 : vector<8x32xf32>
    %216 = arith.addf %215, %86 : vector<8x32xf32>
    %217 = vector.extract_strided_slice %83 {offsets = [128, 0], sizes = [128, 32], strides = [1, 1]} : vector<256x32xf32> to vector<128x32xf32>
    %218 = vector.extract_strided_slice %85 {offsets = [6, 0], sizes = [6, 32], strides = [1, 1]} : vector<15x32xf32> to vector<6x32xf32>
    %219 = vector.extract_strided_slice %217 {offsets = [0, 0], sizes = [32, 32], strides = [1, 1]} : vector<128x32xf32> to vector<32x32xf32>
    %220 = vector.extract_strided_slice %217 {offsets = [32, 0], sizes = [32, 32], strides = [1, 1]} : vector<128x32xf32> to vector<32x32xf32>
    %221 = vector.extract_strided_slice %217 {offsets = [64, 0], sizes = [32, 32], strides = [1, 1]} : vector<128x32xf32> to vector<32x32xf32>
    %222 = vector.extract_strided_slice %217 {offsets = [96, 0], sizes = [32, 32], strides = [1, 1]} : vector<128x32xf32> to vector<32x32xf32>
    %cst_89 = arith.constant dense<0.000000e+00> : vector<8x32xf32>
    %223 = tpu.matmul %216, %219, %cst_89 {dimension_numbers = #tpu.dot_dimension_numbers<[1], [0], [0], [1], [0, 0, 1, 1], [], []>} : vector<8x32xf32>, vector<32x32xf32>, vector<8x32xf32> -> vector<8x32xf32>
    %224 = vector.extract_strided_slice %218 {offsets = [0, 0], sizes = [1, 32], strides = [1, 1]} : vector<6x32xf32> to vector<1x32xf32>
    %225 = vector.broadcast %224 : vector<1x32xf32> to vector<8x32xf32>
    %226 = arith.addf %223, %225 : vector<8x32xf32>
    %cst_90 = arith.constant dense<0.000000e+00> : vector<8x32xf32>
    %227 = tpu.matmul %216, %220, %cst_90 {dimension_numbers = #tpu.dot_dimension_numbers<[1], [0], [0], [1], [0, 0, 1, 1], [], []>} : vector<8x32xf32>, vector<32x32xf32>, vector<8x32xf32> -> vector<8x32xf32>
    %228 = vector.extract_strided_slice %218 {offsets = [1, 0], sizes = [1, 32], strides = [1, 1]} : vector<6x32xf32> to vector<1x32xf32>
    %229 = vector.broadcast %228 : vector<1x32xf32> to vector<8x32xf32>
    %230 = arith.addf %227, %229 : vector<8x32xf32>
    %cst_91 = arith.constant dense<0.000000e+00> : vector<8x32xf32>
    %231 = tpu.matmul %215, %221, %cst_91 {dimension_numbers = #tpu.dot_dimension_numbers<[1], [0], [0], [1], [0, 0, 1, 1], [], []>} : vector<8x32xf32>, vector<32x32xf32>, vector<8x32xf32> -> vector<8x32xf32>
    %232 = vector.extract_strided_slice %218 {offsets = [2, 0], sizes = [1, 32], strides = [1, 1]} : vector<6x32xf32> to vector<1x32xf32>
    %233 = vector.broadcast %232 : vector<1x32xf32> to vector<8x32xf32>
    %234 = arith.addf %231, %233 : vector<8x32xf32>
    %cst_92 = arith.constant 0.000000e+00 : f32
    %235 = vector.broadcast %cst_92 : f32 to vector<8x32xf32>
    %236 = vector.extract_strided_slice %226 {offsets = [0, 0], sizes = [8, 8], strides = [1, 1]} : vector<8x32xf32> to vector<8x8xf32>
    %237 = vector.extract_strided_slice %230 {offsets = [0, 0], sizes = [8, 8], strides = [1, 1]} : vector<8x32xf32> to vector<8x8xf32>
    %cst_93 = arith.constant dense<0.000000e+00> : vector<8x8xf32>
    %238 = tpu.matmul %236, %237, %cst_93 {dimension_numbers = #tpu.dot_dimension_numbers<[1], [1], [0], [0], [0, 0, 1, 0], [], []>} : vector<8x8xf32>, vector<8x8xf32>, vector<8x8xf32> -> vector<8x8xf32>
    %cst_94 = arith.constant 0.353553385 : f32
    %239 = vector.broadcast %cst_94 : f32 to vector<8x8xf32>
    %240 = arith.mulf %238, %239 : vector<8x8xf32>
    %cst_95 = arith.constant dense<0xFF800000> : vector<8xf32>
    %241 = vector.multi_reduction <maximumf>, %240, %cst_95 [1] : vector<8x8xf32> to vector<8xf32>
    %242 = vector.shape_cast %241 : vector<8xf32> to vector<8x1xf32>
    %243 = vector.broadcast %242 : vector<8x1xf32> to vector<8x8xf32>
    %244 = arith.subf %240, %243 : vector<8x8xf32>
    %245 = math.exp %244 : vector<8x8xf32>
    %cst_96 = arith.constant dense<0.000000e+00> : vector<8xf32>
    %246 = vector.multi_reduction <add>, %245, %cst_96 [1] : vector<8x8xf32> to vector<8xf32>
    %247 = vector.shape_cast %246 : vector<8xf32> to vector<8x1xf32>
    %248 = vector.broadcast %247 : vector<8x1xf32> to vector<8x8xf32>
    %249 = arith.divf %245, %248 : vector<8x8xf32>
    %250 = vector.extract_strided_slice %234 {offsets = [0, 0], sizes = [8, 8], strides = [1, 1]} : vector<8x32xf32> to vector<8x8xf32>
    %cst_97 = arith.constant dense<0.000000e+00> : vector<8x8xf32>
    %251 = tpu.matmul %249, %250, %cst_97 {dimension_numbers = #tpu.dot_dimension_numbers<[1], [0], [0], [1], [0, 0, 1, 1], [], []>} : vector<8x8xf32>, vector<8x8xf32>, vector<8x8xf32> -> vector<8x8xf32>
    %252 = vector.extract_strided_slice %222 {offsets = [0, 0], sizes = [8, 32], strides = [1, 1]} : vector<32x32xf32> to vector<8x32xf32>
    %cst_98 = arith.constant dense<0.000000e+00> : vector<8x32xf32>
    %253 = tpu.matmul %251, %252, %cst_98 {dimension_numbers = #tpu.dot_dimension_numbers<[1], [0], [0], [1], [0, 0, 1, 1], [], []>} : vector<8x8xf32>, vector<8x32xf32>, vector<8x32xf32> -> vector<8x32xf32>
    %254 = arith.addf %235, %253 : vector<8x32xf32>
    %255 = vector.extract_strided_slice %226 {offsets = [0, 8], sizes = [8, 8], strides = [1, 1]} : vector<8x32xf32> to vector<8x8xf32>
    %256 = vector.extract_strided_slice %230 {offsets = [0, 8], sizes = [8, 8], strides = [1, 1]} : vector<8x32xf32> to vector<8x8xf32>
    %cst_99 = arith.constant dense<0.000000e+00> : vector<8x8xf32>
    %257 = tpu.matmul %255, %256, %cst_99 {dimension_numbers = #tpu.dot_dimension_numbers<[1], [1], [0], [0], [0, 0, 1, 0], [], []>} : vector<8x8xf32>, vector<8x8xf32>, vector<8x8xf32> -> vector<8x8xf32>
    %cst_100 = arith.constant 0.353553385 : f32
    %258 = vector.broadcast %cst_100 : f32 to vector<8x8xf32>
    %259 = arith.mulf %257, %258 : vector<8x8xf32>
    %cst_101 = arith.constant dense<0xFF800000> : vector<8xf32>
    %260 = vector.multi_reduction <maximumf>, %259, %cst_101 [1] : vector<8x8xf32> to vector<8xf32>
    %261 = vector.shape_cast %260 : vector<8xf32> to vector<8x1xf32>
    %262 = vector.broadcast %261 : vector<8x1xf32> to vector<8x8xf32>
    %263 = arith.subf %259, %262 : vector<8x8xf32>
    %264 = math.exp %263 : vector<8x8xf32>
    %cst_102 = arith.constant dense<0.000000e+00> : vector<8xf32>
    %265 = vector.multi_reduction <add>, %264, %cst_102 [1] : vector<8x8xf32> to vector<8xf32>
    %266 = vector.shape_cast %265 : vector<8xf32> to vector<8x1xf32>
    %267 = vector.broadcast %266 : vector<8x1xf32> to vector<8x8xf32>
    %268 = arith.divf %264, %267 : vector<8x8xf32>
    %269 = vector.extract_strided_slice %234 {offsets = [0, 8], sizes = [8, 8], strides = [1, 1]} : vector<8x32xf32> to vector<8x8xf32>
    %cst_103 = arith.constant dense<0.000000e+00> : vector<8x8xf32>
    %270 = tpu.matmul %268, %269, %cst_103 {dimension_numbers = #tpu.dot_dimension_numbers<[1], [0], [0], [1], [0, 0, 1, 1], [], []>} : vector<8x8xf32>, vector<8x8xf32>, vector<8x8xf32> -> vector<8x8xf32>
    %271 = vector.extract_strided_slice %222 {offsets = [8, 0], sizes = [8, 32], strides = [1, 1]} : vector<32x32xf32> to vector<8x32xf32>
    %cst_104 = arith.constant dense<0.000000e+00> : vector<8x32xf32>
    %272 = tpu.matmul %270, %271, %cst_104 {dimension_numbers = #tpu.dot_dimension_numbers<[1], [0], [0], [1], [0, 0, 1, 1], [], []>} : vector<8x8xf32>, vector<8x32xf32>, vector<8x32xf32> -> vector<8x32xf32>
    %273 = arith.addf %254, %272 : vector<8x32xf32>
    %274 = vector.extract_strided_slice %226 {offsets = [0, 16], sizes = [8, 8], strides = [1, 1]} : vector<8x32xf32> to vector<8x8xf32>
    %275 = vector.extract_strided_slice %230 {offsets = [0, 16], sizes = [8, 8], strides = [1, 1]} : vector<8x32xf32> to vector<8x8xf32>
    %cst_105 = arith.constant dense<0.000000e+00> : vector<8x8xf32>
    %276 = tpu.matmul %274, %275, %cst_105 {dimension_numbers = #tpu.dot_dimension_numbers<[1], [1], [0], [0], [0, 0, 1, 0], [], []>} : vector<8x8xf32>, vector<8x8xf32>, vector<8x8xf32> -> vector<8x8xf32>
    %cst_106 = arith.constant 0.353553385 : f32
    %277 = vector.broadcast %cst_106 : f32 to vector<8x8xf32>
    %278 = arith.mulf %276, %277 : vector<8x8xf32>
    %cst_107 = arith.constant dense<0xFF800000> : vector<8xf32>
    %279 = vector.multi_reduction <maximumf>, %278, %cst_107 [1] : vector<8x8xf32> to vector<8xf32>
    %280 = vector.shape_cast %279 : vector<8xf32> to vector<8x1xf32>
    %281 = vector.broadcast %280 : vector<8x1xf32> to vector<8x8xf32>
    %282 = arith.subf %278, %281 : vector<8x8xf32>
    %283 = math.exp %282 : vector<8x8xf32>
    %cst_108 = arith.constant dense<0.000000e+00> : vector<8xf32>
    %284 = vector.multi_reduction <add>, %283, %cst_108 [1] : vector<8x8xf32> to vector<8xf32>
    %285 = vector.shape_cast %284 : vector<8xf32> to vector<8x1xf32>
    %286 = vector.broadcast %285 : vector<8x1xf32> to vector<8x8xf32>
    %287 = arith.divf %283, %286 : vector<8x8xf32>
    %288 = vector.extract_strided_slice %234 {offsets = [0, 16], sizes = [8, 8], strides = [1, 1]} : vector<8x32xf32> to vector<8x8xf32>
    %cst_109 = arith.constant dense<0.000000e+00> : vector<8x8xf32>
    %289 = tpu.matmul %287, %288, %cst_109 {dimension_numbers = #tpu.dot_dimension_numbers<[1], [0], [0], [1], [0, 0, 1, 1], [], []>} : vector<8x8xf32>, vector<8x8xf32>, vector<8x8xf32> -> vector<8x8xf32>
    %290 = vector.extract_strided_slice %222 {offsets = [16, 0], sizes = [8, 32], strides = [1, 1]} : vector<32x32xf32> to vector<8x32xf32>
    %cst_110 = arith.constant dense<0.000000e+00> : vector<8x32xf32>
    %291 = tpu.matmul %289, %290, %cst_110 {dimension_numbers = #tpu.dot_dimension_numbers<[1], [0], [0], [1], [0, 0, 1, 1], [], []>} : vector<8x8xf32>, vector<8x32xf32>, vector<8x32xf32> -> vector<8x32xf32>
    %292 = arith.addf %273, %291 : vector<8x32xf32>
    %293 = vector.extract_strided_slice %226 {offsets = [0, 24], sizes = [8, 8], strides = [1, 1]} : vector<8x32xf32> to vector<8x8xf32>
    %294 = vector.extract_strided_slice %230 {offsets = [0, 24], sizes = [8, 8], strides = [1, 1]} : vector<8x32xf32> to vector<8x8xf32>
    %cst_111 = arith.constant dense<0.000000e+00> : vector<8x8xf32>
    %295 = tpu.matmul %293, %294, %cst_111 {dimension_numbers = #tpu.dot_dimension_numbers<[1], [1], [0], [0], [0, 0, 1, 0], [], []>} : vector<8x8xf32>, vector<8x8xf32>, vector<8x8xf32> -> vector<8x8xf32>
    %cst_112 = arith.constant 0.353553385 : f32
    %296 = vector.broadcast %cst_112 : f32 to vector<8x8xf32>
    %297 = arith.mulf %295, %296 : vector<8x8xf32>
    %cst_113 = arith.constant dense<0xFF800000> : vector<8xf32>
    %298 = vector.multi_reduction <maximumf>, %297, %cst_113 [1] : vector<8x8xf32> to vector<8xf32>
    %299 = vector.shape_cast %298 : vector<8xf32> to vector<8x1xf32>
    %300 = vector.broadcast %299 : vector<8x1xf32> to vector<8x8xf32>
    %301 = arith.subf %297, %300 : vector<8x8xf32>
    %302 = math.exp %301 : vector<8x8xf32>
    %cst_114 = arith.constant dense<0.000000e+00> : vector<8xf32>
    %303 = vector.multi_reduction <add>, %302, %cst_114 [1] : vector<8x8xf32> to vector<8xf32>
    %304 = vector.shape_cast %303 : vector<8xf32> to vector<8x1xf32>
    %305 = vector.broadcast %304 : vector<8x1xf32> to vector<8x8xf32>
    %306 = arith.divf %302, %305 : vector<8x8xf32>
    %307 = vector.extract_strided_slice %234 {offsets = [0, 24], sizes = [8, 8], strides = [1, 1]} : vector<8x32xf32> to vector<8x8xf32>
    %cst_115 = arith.constant dense<0.000000e+00> : vector<8x8xf32>
    %308 = tpu.matmul %306, %307, %cst_115 {dimension_numbers = #tpu.dot_dimension_numbers<[1], [0], [0], [1], [0, 0, 1, 1], [], []>} : vector<8x8xf32>, vector<8x8xf32>, vector<8x8xf32> -> vector<8x8xf32>
    %309 = vector.extract_strided_slice %222 {offsets = [24, 0], sizes = [8, 32], strides = [1, 1]} : vector<32x32xf32> to vector<8x32xf32>
    %cst_116 = arith.constant dense<0.000000e+00> : vector<8x32xf32>
    %310 = tpu.matmul %308, %309, %cst_116 {dimension_numbers = #tpu.dot_dimension_numbers<[1], [0], [0], [1], [0, 0, 1, 1], [], []>} : vector<8x8xf32>, vector<8x32xf32>, vector<8x32xf32> -> vector<8x32xf32>
    %311 = arith.addf %292, %310 : vector<8x32xf32>
    %312 = arith.addf %215, %311 : vector<8x32xf32>
    %313 = vector.extract_strided_slice %218 {offsets = [3, 0], sizes = [1, 32], strides = [1, 1]} : vector<6x32xf32> to vector<1x32xf32>
    %314 = vector.broadcast %313 : vector<1x32xf32> to vector<8x32xf32>
    %315 = arith.addf %312, %314 : vector<8x32xf32>
    %316 = vector.extract_strided_slice %218 {offsets = [4, 0], sizes = [1, 32], strides = [1, 1]} : vector<6x32xf32> to vector<1x32xf32>
    %317 = vector.extract_strided_slice %218 {offsets = [5, 0], sizes = [1, 32], strides = [1, 1]} : vector<6x32xf32> to vector<1x32xf32>
    %cst_117 = arith.constant dense<0.000000e+00> : vector<8xf32>
    %318 = vector.multi_reduction <add>, %315, %cst_117 [1] : vector<8x32xf32> to vector<8xf32>
    %319 = vector.shape_cast %318 : vector<8xf32> to vector<8x1xf32>
    %cst_118 = arith.constant 3.200000e+01 : f32
    %320 = vector.broadcast %cst_118 : f32 to vector<8x1xf32>
    %321 = arith.divf %319, %320 : vector<8x1xf32>
    %322 = vector.broadcast %321 : vector<8x1xf32> to vector<8x32xf32>
    %323 = arith.subf %315, %322 : vector<8x32xf32>
    %324 = arith.mulf %323, %323 : vector<8x32xf32>
    %cst_119 = arith.constant dense<0.000000e+00> : vector<8xf32>
    %325 = vector.multi_reduction <add>, %324, %cst_119 [1] : vector<8x32xf32> to vector<8xf32>
    %326 = vector.shape_cast %325 : vector<8xf32> to vector<8x1xf32>
    %cst_120 = arith.constant 3.200000e+01 : f32
    %327 = vector.broadcast %cst_120 : f32 to vector<8x1xf32>
    %328 = arith.divf %326, %327 : vector<8x1xf32>
    %329 = vector.broadcast %321 : vector<8x1xf32> to vector<8x32xf32>
    %330 = arith.subf %315, %329 : vector<8x32xf32>
    %cst_121 = arith.constant 9.99999974E-6 : f32
    %331 = vector.broadcast %cst_121 : f32 to vector<8x1xf32>
    %332 = arith.addf %328, %331 : vector<8x1xf32>
    %333 = math.rsqrt %332 : vector<8x1xf32>
    %334 = vector.broadcast %333 : vector<8x1xf32> to vector<8x32xf32>
    %335 = arith.mulf %330, %334 : vector<8x32xf32>
    %336 = vector.broadcast %316 : vector<1x32xf32> to vector<8x32xf32>
    %337 = arith.mulf %335, %336 : vector<8x32xf32>
    %338 = vector.broadcast %317 : vector<1x32xf32> to vector<8x32xf32>
    %339 = arith.addf %337, %338 : vector<8x32xf32>
    %c0_122 = arith.constant 0 : index
    %c0_123 = arith.constant 0 : index
    %c0_124 = arith.constant 0 : index
    %340 = vector.load %arg19[%c0_122, %c0_123, %c0_124] : memref<1x32x64xf32, #tpu.memory_space<vmem>>, vector<1x32x64xf32>
    %341 = vector.shape_cast %340 : vector<1x32x64xf32> to vector<32x64xf32>
    %cst_125 = arith.constant dense<0.000000e+00> : vector<8x64xf32>
    %342 = tpu.matmul %339, %341, %cst_125 {dimension_numbers = #tpu.dot_dimension_numbers<[1], [0], [0], [1], [0, 0, 1, 1], [], []>} : vector<8x32xf32>, vector<32x64xf32>, vector<8x64xf32> -> vector<8x64xf32>
    %c0_126 = arith.constant 0 : index
    %c0_127 = arith.constant 0 : index
    %c0_128 = arith.constant 0 : index
    %343 = vector.load %arg21[%c0_126, %c0_127, %c0_128] : memref<1x1x64xf32, #tpu.memory_space<vmem>>, vector<1x1x64xf32>
    %344 = vector.shape_cast %343 : vector<1x1x64xf32> to vector<1x64xf32>
    %345 = vector.broadcast %344 : vector<1x64xf32> to vector<8x64xf32>
    %346 = arith.addf %342, %345 : vector<8x64xf32>
    %cst_129 = arith.constant 0.000000e+00 : f32
    %347 = vector.broadcast %cst_129 : f32 to vector<8x64xf32>
    %348 = arith.maximumf %346, %347 : vector<8x64xf32>
    %c0_130 = arith.constant 0 : index
    %c0_131 = arith.constant 0 : index
    %c0_132 = arith.constant 0 : index
    %349 = vector.load %arg20[%c0_130, %c0_131, %c0_132] : memref<1x64x32xf32, #tpu.memory_space<vmem>>, vector<1x64x32xf32>
    %350 = vector.shape_cast %349 : vector<1x64x32xf32> to vector<64x32xf32>
    %cst_133 = arith.constant dense<0.000000e+00> : vector<8x32xf32>
    %351 = tpu.matmul %348, %350, %cst_133 {dimension_numbers = #tpu.dot_dimension_numbers<[1], [0], [0], [1], [0, 0, 1, 1], [], []>} : vector<8x64xf32>, vector<64x32xf32>, vector<8x32xf32> -> vector<8x32xf32>
    %352 = vector.extract_strided_slice %85 {offsets = [12, 0], sizes = [1, 32], strides = [1, 1]} : vector<15x32xf32> to vector<1x32xf32>
    %353 = vector.broadcast %352 : vector<1x32xf32> to vector<8x32xf32>
    %354 = arith.addf %351, %353 : vector<8x32xf32>
    %355 = arith.addf %339, %354 : vector<8x32xf32>
    %356 = vector.extract_strided_slice %85 {offsets = [13, 0], sizes = [1, 32], strides = [1, 1]} : vector<15x32xf32> to vector<1x32xf32>
    %357 = vector.extract_strided_slice %85 {offsets = [14, 0], sizes = [1, 32], strides = [1, 1]} : vector<15x32xf32> to vector<1x32xf32>
    %cst_134 = arith.constant dense<0.000000e+00> : vector<8xf32>
    %358 = vector.multi_reduction <add>, %355, %cst_134 [1] : vector<8x32xf32> to vector<8xf32>
    %359 = vector.shape_cast %358 : vector<8xf32> to vector<8x1xf32>
    %cst_135 = arith.constant 3.200000e+01 : f32
    %360 = vector.broadcast %cst_135 : f32 to vector<8x1xf32>
    %361 = arith.divf %359, %360 : vector<8x1xf32>
    %362 = vector.broadcast %361 : vector<8x1xf32> to vector<8x32xf32>
    %363 = arith.subf %355, %362 : vector<8x32xf32>
    %364 = arith.mulf %363, %363 : vector<8x32xf32>
    %cst_136 = arith.constant dense<0.000000e+00> : vector<8xf32>
    %365 = vector.multi_reduction <add>, %364, %cst_136 [1] : vector<8x32xf32> to vector<8xf32>
    %366 = vector.shape_cast %365 : vector<8xf32> to vector<8x1xf32>
    %cst_137 = arith.constant 3.200000e+01 : f32
    %367 = vector.broadcast %cst_137 : f32 to vector<8x1xf32>
    %368 = arith.divf %366, %367 : vector<8x1xf32>
    %369 = vector.broadcast %361 : vector<8x1xf32> to vector<8x32xf32>
    %370 = arith.subf %355, %369 : vector<8x32xf32>
    %cst_138 = arith.constant 9.99999974E-6 : f32
    %371 = vector.broadcast %cst_138 : f32 to vector<8x1xf32>
    %372 = arith.addf %368, %371 : vector<8x1xf32>
    %373 = math.rsqrt %372 : vector<8x1xf32>
    %374 = vector.broadcast %373 : vector<8x1xf32> to vector<8x32xf32>
    %375 = arith.mulf %370, %374 : vector<8x32xf32>
    %376 = vector.broadcast %356 : vector<1x32xf32> to vector<8x32xf32>
    %377 = arith.mulf %375, %376 : vector<8x32xf32>
    %378 = vector.broadcast %357 : vector<1x32xf32> to vector<8x32xf32>
    %379 = arith.addf %377, %378 : vector<8x32xf32>
    %c0_139 = arith.constant 0 : index
    %c0_140 = arith.constant 0 : index
    %380 = vector.load %arg27[%c0_139, %c0_140] : memref<8x32xf32, #tpu.memory_space<vmem>>, vector<8x32xf32>
    tpu.vector_store %arg27[%c0_139, %c0_140], %379 {strides = array<i32>} : memref<8x32xf32, #tpu.memory_space<vmem>>, vector<8x32xf32>,
    %c2_i32 = arith.constant 2 : i32
    %381 = arith.cmpi eq, %arg0, %c2_i32 : i32
    %382 = arith.extui %381 : i1 to i32
    %c0_i32_141 = arith.constant 0 : i32
    %383 = arith.cmpi ne, %382, %c0_i32_141 : i32
    scf.if %383 {
      %c0_142 = arith.constant 0 : index
      %c0_143 = arith.constant 0 : index
      %384 = vector.load %arg6[%c0_142, %c0_143] : memref<2x32xf32, #tpu.memory_space<vmem>>, vector<2x32xf32>
      %385 = vector.extract_strided_slice %384 {offsets = [0, 0], sizes = [1, 32], strides = [1, 1]} : vector<2x32xf32> to vector<1x32xf32>
      %386 = vector.extract_strided_slice %384 {offsets = [1, 0], sizes = [1, 32], strides = [1, 1]} : vector<2x32xf32> to vector<1x32xf32>
      %cst_144 = arith.constant dense<0.000000e+00> : vector<8xf32>
      %387 = vector.multi_reduction <add>, %379, %cst_144 [1] : vector<8x32xf32> to vector<8xf32>
      %388 = vector.shape_cast %387 : vector<8xf32> to vector<8x1xf32>
      %cst_145 = arith.constant 3.200000e+01 : f32
      %389 = vector.broadcast %cst_145 : f32 to vector<8x1xf32>
      %390 = arith.divf %388, %389 : vector<8x1xf32>
      %391 = vector.broadcast %390 : vector<8x1xf32> to vector<8x32xf32>
      %392 = arith.subf %379, %391 : vector<8x32xf32>
      %393 = arith.mulf %392, %392 : vector<8x32xf32>
      %cst_146 = arith.constant dense<0.000000e+00> : vector<8xf32>
      %394 = vector.multi_reduction <add>, %393, %cst_146 [1] : vector<8x32xf32> to vector<8xf32>
      %395 = vector.shape_cast %394 : vector<8xf32> to vector<8x1xf32>
      %cst_147 = arith.constant 3.200000e+01 : f32
      %396 = vector.broadcast %cst_147 : f32 to vector<8x1xf32>
      %397 = arith.divf %395, %396 : vector<8x1xf32>
      %398 = vector.broadcast %390 : vector<8x1xf32> to vector<8x32xf32>
      %399 = arith.subf %379, %398 : vector<8x32xf32>
      %cst_148 = arith.constant 9.99999974E-6 : f32
      %400 = vector.broadcast %cst_148 : f32 to vector<8x1xf32>
      %401 = arith.addf %397, %400 : vector<8x1xf32>
      %402 = math.rsqrt %401 : vector<8x1xf32>
      %403 = vector.broadcast %402 : vector<8x1xf32> to vector<8x32xf32>
      %404 = arith.mulf %399, %403 : vector<8x32xf32>
      %405 = vector.broadcast %385 : vector<1x32xf32> to vector<8x32xf32>
      %406 = arith.mulf %404, %405 : vector<8x32xf32>
      %407 = vector.broadcast %386 : vector<1x32xf32> to vector<8x32xf32>
      %408 = arith.addf %406, %407 : vector<8x32xf32>
      %c0_149 = arith.constant 0 : index
      %c0_150 = arith.constant 0 : index
      %409 = vector.load %arg7[%c0_149, %c0_150] : memref<32x128xf32, #tpu.memory_space<vmem>>, vector<32x128xf32>
      %cst_151 = arith.constant dense<0.000000e+00> : vector<8x128xf32>
      %410 = tpu.matmul %408, %409, %cst_151 {dimension_numbers = #tpu.dot_dimension_numbers<[1], [0], [0], [1], [0, 0, 1, 1], [], []>} : vector<8x32xf32>, vector<32x128xf32>, vector<8x128xf32> -> vector<8x128xf32>
      %c0_152 = arith.constant 0 : index
      %c0_153 = arith.constant 0 : index
      %411 = vector.load %arg8[%c0_152, %c0_153] : memref<1x128xf32, #tpu.memory_space<vmem>>, vector<1x128xf32>
      %412 = vector.broadcast %411 : vector<1x128xf32> to vector<8x128xf32>
      %413 = arith.addf %410, %412 : vector<8x128xf32>
      %c0_154 = arith.constant 0 : index
      %c0_155 = arith.constant 0 : index
      %414 = vector.load %arg9[%c0_154, %c0_155] : memref<32x32xf32, #tpu.memory_space<vmem>>, vector<32x32xf32>
      %cst_156 = arith.constant dense<0.000000e+00> : vector<8x32xf32>
      %415 = tpu.matmul %408, %414, %cst_156 {dimension_numbers = #tpu.dot_dimension_numbers<[1], [0], [0], [1], [0, 0, 1, 1], [], []>} : vector<8x32xf32>, vector<32x32xf32>, vector<8x32xf32> -> vector<8x32xf32>
      %c0_157 = arith.constant 0 : index
      %c0_158 = arith.constant 0 : index
      %416 = vector.load %arg10[%c0_157, %c0_158] : memref<1x32xf32, #tpu.memory_space<vmem>>, vector<1x32xf32>
      %417 = vector.broadcast %416 : vector<1x32xf32> to vector<8x32xf32>
      %418 = arith.addf %415, %417 : vector<8x32xf32>
      %cst_159 = arith.constant 0.000000e+00 : f32
      %419 = vector.broadcast %cst_159 : f32 to vector<8x32xf32>
      %420 = arith.maximumf %418, %419 : vector<8x32xf32>
      %c0_160 = arith.constant 0 : index
      %c0_161 = arith.constant 0 : index
      %421 = vector.load %arg11[%c0_160, %c0_161] : memref<32x32xf32, #tpu.memory_space<vmem>>, vector<32x32xf32>
      %cst_162 = arith.constant dense<0.000000e+00> : vector<8x32xf32>
      %422 = tpu.matmul %420, %421, %cst_162 {dimension_numbers = #tpu.dot_dimension_numbers<[1], [0], [0], [1], [0, 0, 1, 1], [], []>} : vector<8x32xf32>, vector<32x32xf32>, vector<8x32xf32> -> vector<8x32xf32>
      %c0_163 = arith.constant 0 : index
      %c0_164 = arith.constant 0 : index
      %423 = vector.load %arg12[%c0_163, %c0_164] : memref<1x32xf32, #tpu.memory_space<vmem>>, vector<1x32xf32>
      %424 = vector.broadcast %423 : vector<1x32xf32> to vector<8x32xf32>
      %425 = arith.addf %422, %424 : vector<8x32xf32>
      %cst_165 = arith.constant 0.000000e+00 : f32
      %426 = vector.broadcast %cst_165 : f32 to vector<8x32xf32>
      %427 = arith.maximumf %425, %426 : vector<8x32xf32>
      %c0_166 = arith.constant 0 : index
      %c0_167 = arith.constant 0 : index
      %428 = vector.load %arg13[%c0_166, %c0_167] : memref<32x32xf32, #tpu.memory_space<vmem>>, vector<32x32xf32>
      %cst_168 = arith.constant dense<0.000000e+00> : vector<8x32xf32>
      %429 = tpu.matmul %427, %428, %cst_168 {dimension_numbers = #tpu.dot_dimension_numbers<[1], [0], [0], [1], [0, 0, 1, 1], [], []>} : vector<8x32xf32>, vector<32x32xf32>, vector<8x32xf32> -> vector<8x32xf32>
      %c0_169 = arith.constant 0 : index
      %c0_170 = arith.constant 0 : index
      %430 = vector.load %arg14[%c0_169, %c0_170] : memref<1x32xf32, #tpu.memory_space<vmem>>, vector<1x32xf32>
      %431 = vector.broadcast %430 : vector<1x32xf32> to vector<8x32xf32>
      %432 = arith.addf %429, %431 : vector<8x32xf32>
      %c0_171 = arith.constant 0 : index
      %c0_172 = arith.constant 0 : index
      %433 = vector.load %arg15[%c0_171, %c0_172] : memref<32x128xf32, #tpu.memory_space<vmem>>, vector<32x128xf32>
      %cst_173 = arith.constant dense<0.000000e+00> : vector<8x128xf32>
      %434 = tpu.matmul %432, %433, %cst_173 {dimension_numbers = #tpu.dot_dimension_numbers<[1], [0], [0], [1], [0, 0, 1, 1], [], []>} : vector<8x32xf32>, vector<32x128xf32>, vector<8x128xf32> -> vector<8x128xf32>
      %c0_174 = arith.constant 0 : index
      %c0_175 = arith.constant 0 : index
      %435 = vector.load %arg24[%c0_174, %c0_175] : memref<8x128xf32, #tpu.memory_space<vmem>>, vector<8x128xf32>
      tpu.vector_store %arg24[%c0_174, %c0_175], %413 {strides = array<i32>} : memref<8x128xf32, #tpu.memory_space<vmem>>, vector<8x128xf32>,
      %c0_176 = arith.constant 0 : index
      %c0_177 = arith.constant 0 : index
      %436 = vector.load %arg25[%c0_176, %c0_177] : memref<8x128xf32, #tpu.memory_space<vmem>>, vector<8x128xf32>
      tpu.vector_store %arg25[%c0_176, %c0_177], %434 {strides = array<i32>} : memref<8x128xf32, #tpu.memory_space<vmem>>, vector<8x128xf32>,
    } else {
    }
    return
  }
  func.func @transform_0(%arg0: i32) -> (i32, i32) {
    %c0_i32 = arith.constant 0 : i32
    %c0_i32_0 = arith.constant 0 : i32
    %c0_i32_1 = arith.constant 0 : i32
    return %c0_i32, %c0_i32_0 : i32, i32
  }
  func.func @transform_1(%arg0: i32) -> (i32, i32) {
    %c0_i32 = arith.constant 0 : i32
    %c0_i32_0 = arith.constant 0 : i32
    %c0_i32_1 = arith.constant 0 : i32
    return %c0_i32, %c0_i32_0 : i32, i32
  }
  func.func @transform_2(%arg0: i32) -> (i32, i32) {
    %c0_i32 = arith.constant 0 : i32
    %c0_i32_0 = arith.constant 0 : i32
    %c0_i32_1 = arith.constant 0 : i32
    return %c0_i32, %c0_i32_0 : i32, i32
  }
  func.func @transform_3(%arg0: i32) -> (i32, i32) {
    %c0_i32 = arith.constant 0 : i32
    %c0_i32_0 = arith.constant 0 : i32
    %c0_i32_1 = arith.constant 0 : i32
    return %c0_i32, %c0_i32_0 : i32, i32
  }
  func.func @transform_4(%arg0: i32) -> (i32, i32) {
    %c0_i32 = arith.constant 0 : i32
    %c0_i32_0 = arith.constant 0 : i32
    %c0_i32_1 = arith.constant 0 : i32
    return %c0_i32, %c0_i32_0 : i32, i32
  }
  func.func @transform_5(%arg0: i32) -> (i32, i32) {
    %c0_i32 = arith.constant 0 : i32
    %c0_i32_0 = arith.constant 0 : i32
    %c0_i32_1 = arith.constant 0 : i32
    return %c0_i32, %c0_i32_0 : i32, i32
  }
  func.func @transform_6(%arg0: i32) -> (i32, i32) {
    %c0_i32 = arith.constant 0 : i32
    %c0_i32_0 = arith.constant 0 : i32
    %c0_i32_1 = arith.constant 0 : i32
    return %c0_i32, %c0_i32_0 : i32, i32
  }
  func.func @transform_7(%arg0: i32) -> (i32, i32) {
    %c0_i32 = arith.constant 0 : i32
    %c0_i32_0 = arith.constant 0 : i32
    %c0_i32_1 = arith.constant 0 : i32
    return %c0_i32, %c0_i32_0 : i32, i32
  }
  func.func @transform_8(%arg0: i32) -> (i32, i32) {
    %c0_i32 = arith.constant 0 : i32
    %c0_i32_0 = arith.constant 0 : i32
    %c0_i32_1 = arith.constant 0 : i32
    return %c0_i32, %c0_i32_0 : i32, i32
  }
  func.func @transform_9(%arg0: i32) -> (i32, i32) {
    %c0_i32 = arith.constant 0 : i32
    %c0_i32_0 = arith.constant 0 : i32
    %c0_i32_1 = arith.constant 0 : i32
    return %c0_i32, %c0_i32_0 : i32, i32
  }
  func.func @transform_10(%arg0: i32) -> (i32, i32) {
    %c0_i32 = arith.constant 0 : i32
    %c0_i32_0 = arith.constant 0 : i32
    %c0_i32_1 = arith.constant 0 : i32
    return %c0_i32, %c0_i32_0 : i32, i32
  }
  func.func @transform_11(%arg0: i32) -> (i32, i32) {
    %c0_i32 = arith.constant 0 : i32
    %c0_i32_0 = arith.constant 0 : i32
    %c0_i32_1 = arith.constant 0 : i32
    return %c0_i32, %c0_i32_0 : i32, i32
  }
  func.func @transform_12(%arg0: i32) -> (i32, i32) {
    %c0_i32 = arith.constant 0 : i32
    %c0_i32_0 = arith.constant 0 : i32
    %c0_i32_1 = arith.constant 0 : i32
    return %c0_i32, %c0_i32_0 : i32, i32
  }
  func.func @transform_13(%arg0: i32) -> (i32, i32) {
    %c0_i32 = arith.constant 0 : i32
    %c0_i32_0 = arith.constant 0 : i32
    %c0_i32_1 = arith.constant 0 : i32
    return %c0_i32, %c0_i32_0 : i32, i32
  }
  func.func @transform_14(%arg0: i32) -> (i32, i32) {
    %c0_i32 = arith.constant 0 : i32
    %c0_i32_0 = arith.constant 0 : i32
    %c0_i32_1 = arith.constant 0 : i32
    return %c0_i32, %c0_i32_0 : i32, i32
  }
  func.func @transform_15(%arg0: i32) -> (i32, i32) {
    %c0_i32 = arith.constant 0 : i32
    %c0_i32_0 = arith.constant 0 : i32
    %c0_i32_1 = arith.constant 0 : i32
    return %c0_i32, %c0_i32_0 : i32, i32
  }
  func.func @transform_16(%arg0: i32) -> (i32, i32, i32) {
    %c0_i32 = arith.constant 0 : i32
    %c0_i32_0 = arith.constant 0 : i32
    %c0_i32_1 = arith.constant 0 : i32
    return %arg0, %c0_i32, %c0_i32_0 : i32, i32, i32
  }
  func.func @transform_17(%arg0: i32) -> (i32, i32, i32) {
    %c0_i32 = arith.constant 0 : i32
    %c0_i32_0 = arith.constant 0 : i32
    %c0_i32_1 = arith.constant 0 : i32
    return %arg0, %c0_i32, %c0_i32_0 : i32, i32, i32
  }
  func.func @transform_18(%arg0: i32) -> (i32, i32, i32) {
    %c0_i32 = arith.constant 0 : i32
    %c0_i32_0 = arith.constant 0 : i32
    %c0_i32_1 = arith.constant 0 : i32
    return %arg0, %c0_i32, %c0_i32_0 : i32, i32, i32
  }
  func.func @transform_19(%arg0: i32) -> (i32, i32, i32) {
    %c0_i32 = arith.constant 0 : i32
    %c0_i32_0 = arith.constant 0 : i32
    %c0_i32_1 = arith.constant 0 : i32
    return %arg0, %c0_i32, %c0_i32_0 : i32, i32, i32
  }
  func.func @transform_20(%arg0: i32) -> (i32, i32, i32) {
    %c0_i32 = arith.constant 0 : i32
    %c0_i32_0 = arith.constant 0 : i32
    %c0_i32_1 = arith.constant 0 : i32
    return %arg0, %c0_i32, %c0_i32_0 : i32, i32, i32
  }
  func.func @transform_21(%arg0: i32) -> (i32, i32, i32) {
    %c0_i32 = arith.constant 0 : i32
    %c0_i32_0 = arith.constant 0 : i32
    %c0_i32_1 = arith.constant 0 : i32
    return %arg0, %c0_i32, %c0_i32_0 : i32, i32, i32
  }
  func.func @transform_22(%arg0: i32) -> (i32, i32, i32) {
    %c0_i32 = arith.constant 0 : i32
    %c0_i32_0 = arith.constant 0 : i32
    %c0_i32_1 = arith.constant 0 : i32
    return %arg0, %c0_i32, %c0_i32_0 : i32, i32, i32
  }
  func.func @transform_23(%arg0: i32) -> (i32, i32) {
    %c0_i32 = arith.constant 0 : i32
    %c0_i32_0 = arith.constant 0 : i32
    %c0_i32_1 = arith.constant 0 : i32
    return %c0_i32, %c0_i32_0 : i32, i32
  }
  func.func @transform_24(%arg0: i32) -> (i32, i32) {
    %c0_i32 = arith.constant 0 : i32
    %c0_i32_0 = arith.constant 0 : i32
    %c0_i32_1 = arith.constant 0 : i32
    return %c0_i32, %c0_i32_0 : i32, i32
  }
}

</mosaic_0001>

<llo_original>
// kernel: tpu_custom_call.1
$region0: #{tpu_custom_call.1}
  #allocation0 [shape = 'u32[]', space=smem, size = 0x4, offset = 0x4, fixed_abs, tag = 'smem constant byte address 0x4 - core index']
  #allocation1 [shape = 'u32[144,128]{1,0:T(1,128)}', space=vmem, size = 0x12000, scoped, tag = 'internal scratch']
  #allocation2 [shape = 'f32[16,32]{1,0:T(8,128)}', space=vmem, size = 0x2000, scoped, tag = 'scratch operand']
  #allocation3 [shape = 'f32[8,32]{1,0:T(8,128)}', space=vmem, size = 0x1000, scoped, tag = 'scratch operand']
  %s0 = inlined_call_operand.vmem [shape: f32[16,8], index: 0, kind: input, shape index: {}]
  %s1 = inlined_call_operand.vmem [shape: f32[8,32], index: 1, kind: input, shape index: {}]
  %s2 = inlined_call_operand.vmem [shape: f32[4,32], index: 2, kind: input, shape index: {}]
  %s3 = inlined_call_operand.vmem [shape: f32[8,32], index: 3, kind: input, shape index: {}]
  %s4 = inlined_call_operand.vmem [shape: f32[8,32], index: 4, kind: input, shape index: {}]
  %s5 = inlined_call_operand.vmem [shape: f32[2,32], index: 5, kind: input, shape index: {}]
  %s6 = inlined_call_operand.vmem [shape: f32[32,128], index: 6, kind: input, shape index: {}]
  %s7 = inlined_call_operand.vmem [shape: f32[1,128], index: 7, kind: input, shape index: {}]
  %s8 = inlined_call_operand.vmem [shape: f32[32,32], index: 8, kind: input, shape index: {}]
  %s9 = inlined_call_operand.vmem [shape: f32[1,32], index: 9, kind: input, shape index: {}]
  %s10 = inlined_call_operand.vmem [shape: f32[32,32], index: 10, kind: input, shape index: {}]
  %s11 = inlined_call_operand.vmem [shape: f32[1,32], index: 11, kind: input, shape index: {}]
  %s12 = inlined_call_operand.vmem [shape: f32[32,32], index: 12, kind: input, shape index: {}]
  %s13 = inlined_call_operand.vmem [shape: f32[1,32], index: 13, kind: input, shape index: {}]
  %s14 = inlined_call_operand.vmem [shape: f32[32,128], index: 14, kind: input, shape index: {}]
  %s15 = inlined_call_operand.vmem [shape: s32[1,128], index: 15, kind: input, shape index: {}]
  %s16 = inlined_call_operand.vmem [shape: f32[3,256,32], index: 16, kind: input, shape index: {}]
  %s17 = inlined_call_operand.vmem [shape: f32[3,15,32], index: 17, kind: input, shape index: {}]
  %s18 = inlined_call_operand.vmem [shape: f32[3,32,64], index: 18, kind: input, shape index: {}]
  %s19 = inlined_call_operand.vmem [shape: f32[3,64,32], index: 19, kind: input, shape index: {}]
  %s20 = inlined_call_operand.vmem [shape: f32[3,1,64], index: 20, kind: input, shape index: {}]
  %s21 = inlined_call_operand.hbm [shape: f32[3,8,128], index: 21, kind: output, shape index: {0}]
  %s22 = inlined_call_operand.hbm [shape: f32[3,8,128], index: 22, kind: output, shape index: {1}]
  %s23 = inlined_call_operand.hbm [shape: f32[8,128], index: 23, kind: output, shape index: {2}]
  %s24 = inlined_call_operand.hbm [shape: f32[8,128], index: 24, kind: output, shape index: {3}]
  %25 = xla_tuple %s21, %s22, %s23, %s24
  %s26 = sld [smem:[#allocation0]]
  $region149: #{tpu_custom_call.1} parent=0
    _
  %s28 = ssub.s32 1, %s26
  %s29 = scalar_select 0, %s28, %s26
  $region1: #{tpu_custom_call.1} parent=0
    #allocation4 [shape = 'u8[8192]{0}', space=vmem, size = 0x2000, scoped, tag = 'output window, operand 0']
    #allocation5 [shape = 's32[2]{0}', space=sflag, size = 0x8, scoped, tag = 'scoped memory for tpu_custom_call.1']
    #allocation6 [shape = 'u8[8192]{0}', space=vmem, size = 0x2000, scoped, tag = 'output window, operand 1']
    #allocation7 [shape = 's32[2]{0}', space=sflag, size = 0x8, scoped, tag = 'scoped memory for tpu_custom_call.1']
    #allocation8 [shape = 'u8[4096]{0}', space=vmem, size = 0x1000, scoped, tag = 'output window, operand 2, single buffered']
    #allocation9 [shape = 'u8[4096]{0}', space=vmem, size = 0x1000, scoped, tag = 'output window, operand 3, single buffered']
    #allocation10 [shape = 's32[1]{0}', space=sflag, size = 0x4, scoped, tag = 'scoped memory for tpu_custom_call.1']
    %30 = vsyncpa [#allocation5], 0
    %s31 = scalar_lea.sflag [#allocation5], 1
    %32 = vsyncpa %s31, 0
    %33 = vsyncpa [#allocation7], 0
    %s34 = scalar_lea.sflag [#allocation7], 1
    %35 = vsyncpa %s34, 0
    %36 = vsyncpa [#allocation10], 0
    loop: start=0, step=1, limit=5
    $region2: #{tpu_custom_call.1} parent=1 // loop_pre_header
      _
    $region3: #{tpu_custom_call.1} parent=1 // loop_header
      %s38 = sphi 0, %s42
      %p39 = scmp.ge.s32.totalorder %s38, 5
      %s46 = sphi 0, %s46
      %s48 = sphi 0, %s46
      %s49 = sphi 0, %s48
      %s63 = sphi 0, %s49
      %s67 = sphi 0, %s67
      %s69 = sphi 0, %s67
      %s70 = sphi 0, %s69
      %s84 = sphi 0, %s70
      %s88 = sphi 0, %s88
      %s90 = sphi 0, %s88
      %s91 = sphi 0, %s90
      %s105 = sphi 0, %s91
      %s109 = sphi 0, %s109
      %s111 = sphi 0, %s109
      %s112 = sphi 0, %s111
      %s126 = sphi 0, %s112
      %s130 = sphi 0, %s130
      %s132 = sphi 0, %s130
      %s133 = sphi 0, %s132
      %s147 = sphi 0, %s133
      %s151 = sphi 0, %s151
      %s153 = sphi 0, %s151
      %s154 = sphi 0, %s153
      %s168 = sphi 0, %s154
      %s172 = sphi 0, %s172
      %s174 = sphi 0, %s172
      %s175 = sphi 0, %s174
      %s189 = sphi 0, %s175
      %s193 = sphi 0, %s193
      %s195 = sphi 0, %s193
      %s196 = sphi 0, %s195
      %s210 = sphi 0, %s196
      %s214 = sphi 0, %s214
      %s216 = sphi 0, %s214
      %s217 = sphi 0, %s216
      %s231 = sphi 0, %s217
      %s235 = sphi 0, %s235
      %s237 = sphi 0, %s235
      %s238 = sphi 0, %s237
      %s252 = sphi 0, %s238
      %s256 = sphi 0, %s256
      %s258 = sphi 0, %s256
      %s259 = sphi 0, %s258
      %s273 = sphi 0, %s259
      %s277 = sphi 0, %s277
      %s279 = sphi 0, %s277
      %s280 = sphi 0, %s279
      %s294 = sphi 0, %s280
      %s298 = sphi 0, %s298
      %s300 = sphi 0, %s298
      %s301 = sphi 0, %s300
      %s315 = sphi 0, %s301
      %s319 = sphi 0, %s319
      %s321 = sphi 0, %s319
      %s322 = sphi 0, %s321
      %s336 = sphi 0, %s322
      %s340 = sphi 0, %s340
      %s342 = sphi 0, %s340
      %s343 = sphi 0, %s342
      %s357 = sphi 0, %s343
      %s361 = sphi 0, %s361
      %s363 = sphi 0, %s361
      %s364 = sphi 0, %s363
      %s378 = sphi 0, %s364
      %s384 = sphi 0, %s386
      %s387 = sphi 0, %s384
      %s388 = sphi 0, %s387
      %s404 = sphi 0, %s388
      %s410 = sphi 0, %s412
      %s413 = sphi 0, %s410
      %s414 = sphi 0, %s413
      %s430 = sphi 0, %s414
      %s436 = sphi 0, %s438
      %s439 = sphi 0, %s436
      %s440 = sphi 0, %s439
      %s456 = sphi 0, %s440
      %s462 = sphi 0, %s464
      %s465 = sphi 0, %s462
      %s466 = sphi 0, %s465
      %s482 = sphi 0, %s466
      %s488 = sphi 0, %s490
      %s491 = sphi 0, %s488
      %s492 = sphi 0, %s491
      %s508 = sphi 0, %s492
      %s514 = sphi 0, %s516
      %s517 = sphi 0, %s514
      %s518 = sphi 0, %s517
      %s534 = sphi 0, %s518
      %s540 = sphi 0, %s542
      %s543 = sphi 0, %s540
      %s544 = sphi 0, %s543
      %s560 = sphi 0, %s544
      %s564 = sphi 0, %s564
      %s566 = sphi 0, %s564
      %s567 = sphi 0, %s566
      %s581 = sphi 0, %s567
      %s585 = sphi 0, %s585
      %s587 = sphi 0, %s585
      %s588 = sphi 0, %s587
      %s602 = sphi 0, %s588
    $region4: #{tpu_custom_call.1} parent=1 // loop_header_branch
      %41 = sbr.rel (%p39) target = $region8
    $region5: #{tpu_custom_call.1} parent=1 // loop_body
      %s43 = ssub.s32 %s38, 1
      %s44 = ssub.s32 %s38, 2
      %s45 = sadd.s32 %s38, 1
      %s47 = sadd.s32 %s46, 1
      %p50 = scmp.eq.s32.totalorder %s38, 2
      %p51 = scmp.ne.s32.totalorder %s46, %s48
      %p52 = scmp.eq.s32.totalorder %s38, 0
      %p53 = por %p51, %p52
      %p54 = scmp.ne.s32.totalorder %s46, %s48
      %p55 = scmp.eq.s32.totalorder %s43, 2
      %p56 = por %p54, %p55
      %p57 = scmp.ne.s32.totalorder %s48, %s49
      %p58 = scmp.eq.s32.totalorder %s43, 0
      %p59 = por %p57, %p58
      %p60 = scmp.ne.s32.totalorder %s48, %s49
      %p61 = scmp.eq.s32.totalorder %s44, 2
      %p62 = por %p60, %p61
      %p64 = scmp.ne.s32.totalorder %s49, %s63
      %p65 = scmp.eq.s32.totalorder %s44, 0
      %p66 = por %p64, %p65
      %s68 = sadd.s32 %s67, 1
      %p71 = scmp.eq.s32.totalorder %s38, 2
      %p72 = scmp.ne.s32.totalorder %s67, %s69
      %p73 = scmp.eq.s32.totalorder %s38, 0
      %p74 = por %p72, %p73
      %p75 = scmp.ne.s32.totalorder %s67, %s69
      %p76 = scmp.eq.s32.totalorder %s43, 2
      %p77 = por %p75, %p76
      %p78 = scmp.ne.s32.totalorder %s69, %s70
      %p79 = scmp.eq.s32.totalorder %s43, 0
      %p80 = por %p78, %p79
      %p81 = scmp.ne.s32.totalorder %s69, %s70
      %p82 = scmp.eq.s32.totalorder %s44, 2
      %p83 = por %p81, %p82
      %p85 = scmp.ne.s32.totalorder %s70, %s84
      %p86 = scmp.eq.s32.totalorder %s44, 0
      %p87 = por %p85, %p86
      %s89 = sadd.s32 %s88, 1
      %p92 = scmp.eq.s32.totalorder %s38, 2
      %p93 = scmp.ne.s32.totalorder %s88, %s90
      %p94 = scmp.eq.s32.totalorder %s38, 0
      %p95 = por %p93, %p94
      %p96 = scmp.ne.s32.totalorder %s88, %s90
      %p97 = scmp.eq.s32.totalorder %s43, 2
      %p98 = por %p96, %p97
      %p99 = scmp.ne.s32.totalorder %s90, %s91
      %p100 = scmp.eq.s32.totalorder %s43, 0
      %p101 = por %p99, %p100
      %p102 = scmp.ne.s32.totalorder %s90, %s91
      %p103 = scmp.eq.s32.totalorder %s44, 2
      %p104 = por %p102, %p103
      %p106 = scmp.ne.s32.totalorder %s91, %s105
      %p107 = scmp.eq.s32.totalorder %s44, 0
      %p108 = por %p106, %p107
      %s110 = sadd.s32 %s109, 1
      %p113 = scmp.eq.s32.totalorder %s38, 2
      %p114 = scmp.ne.s32.totalorder %s109, %s111
      %p115 = scmp.eq.s32.totalorder %s38, 0
      %p116 = por %p114, %p115
      %p117 = scmp.ne.s32.totalorder %s109, %s111
      %p118 = scmp.eq.s32.totalorder %s43, 2
      %p119 = por %p117, %p118
      %p120 = scmp.ne.s32.totalorder %s111, %s112
      %p121 = scmp.eq.s32.totalorder %s43, 0
      %p122 = por %p120, %p121
      %p123 = scmp.ne.s32.totalorder %s111, %s112
      %p124 = scmp.eq.s32.totalorder %s44, 2
      %p125 = por %p123, %p124
      %p127 = scmp.ne.s32.totalorder %s112, %s126
      %p128 = scmp.eq.s32.totalorder %s44, 0
      %p129 = por %p127, %p128
      %s131 = sadd.s32 %s130, 1
      %p134 = scmp.eq.s32.totalorder %s38, 2
      %p135 = scmp.ne.s32.totalorder %s130, %s132
      %p136 = scmp.eq.s32.totalorder %s38, 0
      %p137 = por %p135, %p136
      %p138 = scmp.ne.s32.totalorder %s130, %s132
      %p139 = scmp.eq.s32.totalorder %s43, 2
      %p140 = por %p138, %p139
      %p141 = scmp.ne.s32.totalorder %s132, %s133
      %p142 = scmp.eq.s32.totalorder %s43, 0
      %p143 = por %p141, %p142
      %p144 = scmp.ne.s32.totalorder %s132, %s133
      %p145 = scmp.eq.s32.totalorder %s44, 2
      %p146 = por %p144, %p145
      %p148 = scmp.ne.s32.totalorder %s133, %s147
      %p149 = scmp.eq.s32.totalorder %s44, 0
      %p150 = por %p148, %p149
      %s152 = sadd.s32 %s151, 1
      %p155 = scmp.eq.s32.totalorder %s38, 2
      %p156 = scmp.ne.s32.totalorder %s151, %s153
      %p157 = scmp.eq.s32.totalorder %s38, 0
      %p158 = por %p156, %p157
      %p159 = scmp.ne.s32.totalorder %s151, %s153
      %p160 = scmp.eq.s32.totalorder %s43, 2
      %p161 = por %p159, %p160
      %p162 = scmp.ne.s32.totalorder %s153, %s154
      %p163 = scmp.eq.s32.totalorder %s43, 0
      %p164 = por %p162, %p163
      %p165 = scmp.ne.s32.totalorder %s153, %s154
      %p166 = scmp.eq.s32.totalorder %s44, 2
      %p167 = por %p165, %p166
      %p169 = scmp.ne.s32.totalorder %s154, %s168
      %p170 = scmp.eq.s32.totalorder %s44, 0
      %p171 = por %p169, %p170
      %s173 = sadd.s32 %s172, 1
      %p176 = scmp.eq.s32.totalorder %s38, 2
      %p177 = scmp.ne.s32.totalorder %s172, %s174
      %p178 = scmp.eq.s32.totalorder %s38, 0
      %p179 = por %p177, %p178
      %p180 = scmp.ne.s32.totalorder %s172, %s174
      %p181 = scmp.eq.s32.totalorder %s43, 2
      %p182 = por %p180, %p181
      %p183 = scmp.ne.s32.totalorder %s174, %s175
      %p184 = scmp.eq.s32.totalorder %s43, 0
      %p185 = por %p183, %p184
      %p186 = scmp.ne.s32.totalorder %s174, %s175
      %p187 = scmp.eq.s32.totalorder %s44, 2
      %p188 = por %p186, %p187
      %p190 = scmp.ne.s32.totalorder %s175, %s189
      %p191 = scmp.eq.s32.totalorder %s44, 0
      %p192 = por %p190, %p191
      %s194 = sadd.s32 %s193, 1
      %p197 = scmp.eq.s32.totalorder %s38, 2
      %p198 = scmp.ne.s32.totalorder %s193, %s195
      %p199 = scmp.eq.s32.totalorder %s38, 0
      %p200 = por %p198, %p199
      %p201 = scmp.ne.s32.totalorder %s193, %s195
      %p202 = scmp.eq.s32.totalorder %s43, 2
      %p203 = por %p201, %p202
      %p204 = scmp.ne.s32.totalorder %s195, %s196
      %p205 = scmp.eq.s32.totalorder %s43, 0
      %p206 = por %p204, %p205
      %p207 = scmp.ne.s32.totalorder %s195, %s196
      %p208 = scmp.eq.s32.totalorder %s44, 2
      %p209 = por %p207, %p208
      %p211 = scmp.ne.s32.totalorder %s196, %s210
      %p212 = scmp.eq.s32.totalorder %s44, 0
      %p213 = por %p211, %p212
      %s215 = sadd.s32 %s214, 1
      %p218 = scmp.eq.s32.totalorder %s38, 2
      %p219 = scmp.ne.s32.totalorder %s214, %s216
      %p220 = scmp.eq.s32.totalorder %s38, 0
      %p221 = por %p219, %p220
      %p222 = scmp.ne.s32.totalorder %s214, %s216
      %p223 = scmp.eq.s32.totalorder %s43, 2
      %p224 = por %p222, %p223
      %p225 = scmp.ne.s32.totalorder %s216, %s217
      %p226 = scmp.eq.s32.totalorder %s43, 0
      %p227 = por %p225, %p226
      %p228 = scmp.ne.s32.totalorder %s216, %s217
      %p229 = scmp.eq.s32.totalorder %s44, 2
      %p230 = por %p228, %p229
      %p232 = scmp.ne.s32.totalorder %s217, %s231
      %p233 = scmp.eq.s32.totalorder %s44, 0
      %p234 = por %p232, %p233
      %s236 = sadd.s32 %s235, 1
      %p239 = scmp.eq.s32.totalorder %s38, 2
      %p240 = scmp.ne.s32.totalorder %s235, %s237
      %p241 = scmp.eq.s32.totalorder %s38, 0
      %p242 = por %p240, %p241
      %p243 = scmp.ne.s32.totalorder %s235, %s237
      %p244 = scmp.eq.s32.totalorder %s43, 2
      %p245 = por %p243, %p244
      %p246 = scmp.ne.s32.totalorder %s237, %s238
      %p247 = scmp.eq.s32.totalorder %s43, 0
      %p248 = por %p246, %p247
      %p249 = scmp.ne.s32.totalorder %s237, %s238
      %p250 = scmp.eq.s32.totalorder %s44, 2
      %p251 = por %p249, %p250
      %p253 = scmp.ne.s32.totalorder %s238, %s252
      %p254 = scmp.eq.s32.totalorder %s44, 0
      %p255 = por %p253, %p254
      %s257 = sadd.s32 %s256, 1
      %p260 = scmp.eq.s32.totalorder %s38, 2
      %p261 = scmp.ne.s32.totalorder %s256, %s258
      %p262 = scmp.eq.s32.totalorder %s38, 0
      %p263 = por %p261, %p262
      %p264 = scmp.ne.s32.totalorder %s256, %s258
      %p265 = scmp.eq.s32.totalorder %s43, 2
      %p266 = por %p264, %p265
      %p267 = scmp.ne.s32.totalorder %s258, %s259
      %p268 = scmp.eq.s32.totalorder %s43, 0
      %p269 = por %p267, %p268
      %p270 = scmp.ne.s32.totalorder %s258, %s259
      %p271 = scmp.eq.s32.totalorder %s44, 2
      %p272 = por %p270, %p271
      %p274 = scmp.ne.s32.totalorder %s259, %s273
      %p275 = scmp.eq.s32.totalorder %s44, 0
      %p276 = por %p274, %p275
      %s278 = sadd.s32 %s277, 1
      %p281 = scmp.eq.s32.totalorder %s38, 2
      %p282 = scmp.ne.s32.totalorder %s277, %s279
      %p283 = scmp.eq.s32.totalorder %s38, 0
      %p284 = por %p282, %p283
      %p285 = scmp.ne.s32.totalorder %s277, %s279
      %p286 = scmp.eq.s32.totalorder %s43, 2
      %p287 = por %p285, %p286
      %p288 = scmp.ne.s32.totalorder %s279, %s280
      %p289 = scmp.eq.s32.totalorder %s43, 0
      %p290 = por %p288, %p289
      %p291 = scmp.ne.s32.totalorder %s279, %s280
      %p292 = scmp.eq.s32.totalorder %s44, 2
      %p293 = por %p291, %p292
      %p295 = scmp.ne.s32.totalorder %s280, %s294
      %p296 = scmp.eq.s32.totalorder %s44, 0
      %p297 = por %p295, %p296
      %s299 = sadd.s32 %s298, 1
      %p302 = scmp.eq.s32.totalorder %s38, 2
      %p303 = scmp.ne.s32.totalorder %s298, %s300
      %p304 = scmp.eq.s32.totalorder %s38, 0
      %p305 = por %p303, %p304
      %p306 = scmp.ne.s32.totalorder %s298, %s300
      %p307 = scmp.eq.s32.totalorder %s43, 2
      %p308 = por %p306, %p307
      %p309 = scmp.ne.s32.totalorder %s300, %s301
      %p310 = scmp.eq.s32.totalorder %s43, 0
      %p311 = por %p309, %p310
      %p312 = scmp.ne.s32.totalorder %s300, %s301
      %p313 = scmp.eq.s32.totalorder %s44, 2
      %p314 = por %p312, %p313
      %p316 = scmp.ne.s32.totalorder %s301, %s315
      %p317 = scmp.eq.s32.totalorder %s44, 0
      %p318 = por %p316, %p317
      %s320 = sadd.s32 %s319, 1
      %p323 = scmp.eq.s32.totalorder %s38, 2
      %p324 = scmp.ne.s32.totalorder %s319, %s321
      %p325 = scmp.eq.s32.totalorder %s38, 0
      %p326 = por %p324, %p325
      %p327 = scmp.ne.s32.totalorder %s319, %s321
      %p328 = scmp.eq.s32.totalorder %s43, 2
      %p329 = por %p327, %p328
      %p330 = scmp.ne.s32.totalorder %s321, %s322
      %p331 = scmp.eq.s32.totalorder %s43, 0
      %p332 = por %p330, %p331
      %p333 = scmp.ne.s32.totalorder %s321, %s322
      %p334 = scmp.eq.s32.totalorder %s44, 2
      %p335 = por %p333, %p334
      %p337 = scmp.ne.s32.totalorder %s322, %s336
      %p338 = scmp.eq.s32.totalorder %s44, 0
      %p339 = por %p337, %p338
      %s341 = sadd.s32 %s340, 1
      %p344 = scmp.eq.s32.totalorder %s38, 2
      %p345 = scmp.ne.s32.totalorder %s340, %s342
      %p346 = scmp.eq.s32.totalorder %s38, 0
      %p347 = por %p345, %p346
      %p348 = scmp.ne.s32.totalorder %s340, %s342
      %p349 = scmp.eq.s32.totalorder %s43, 2
      %p350 = por %p348, %p349
      %p351 = scmp.ne.s32.totalorder %s342, %s343
      %p352 = scmp.eq.s32.totalorder %s43, 0
      %p353 = por %p351, %p352
      %p354 = scmp.ne.s32.totalorder %s342, %s343
      %p355 = scmp.eq.s32.totalorder %s44, 2
      %p356 = por %p354, %p355
      %p358 = scmp.ne.s32.totalorder %s343, %s357
      %p359 = scmp.eq.s32.totalorder %s44, 0
      %p360 = por %p358, %p359
      %s362 = sadd.s32 %s361, 1
      %p365 = scmp.eq.s32.totalorder %s38, 2
      %p366 = scmp.ne.s32.totalorder %s361, %s363
      %p367 = scmp.eq.s32.totalorder %s38, 0
      %p368 = por %p366, %p367
      %p369 = scmp.ne.s32.totalorder %s361, %s363
      %p370 = scmp.eq.s32.totalorder %s43, 2
      %p371 = por %p369, %p370
      %p372 = scmp.ne.s32.totalorder %s363, %s364
      %p373 = scmp.eq.s32.totalorder %s43, 0
      %p374 = por %p372, %p373
      %p375 = scmp.ne.s32.totalorder %s363, %s364
      %p376 = scmp.eq.s32.totalorder %s44, 2
      %p377 = por %p375, %p376
      %p379 = scmp.ne.s32.totalorder %s364, %s378
      %p380 = scmp.eq.s32.totalorder %s44, 0
      %p381 = por %p379, %p380
      %s382 = ssub.s32 %s38, %s45
      %p383 = scmp.eq.s32.totalorder %s382, 0
      %s385 = sadd.s32 %s384, 1
      %s386 = scalar_select %p383, %s384, %s385
      %p389 = pneg %p383
      %p390 = scmp.eq.s32.totalorder %s38, 2
      %p391 = por %p389, %p390
      %p392 = scmp.ne.s32.totalorder %s384, %s387
      %p393 = scmp.eq.s32.totalorder %s38, 0
      %p394 = por %p392, %p393
      %p395 = scmp.ne.s32.totalorder %s384, %s387
      %p396 = scmp.eq.s32.totalorder %s43, 2
      %p397 = por %p395, %p396
      %p398 = scmp.ne.s32.totalorder %s387, %s388
      %p399 = scmp.eq.s32.totalorder %s43, 0
      %p400 = por %p398, %p399
      %p401 = scmp.ne.s32.totalorder %s387, %s388
      %p402 = scmp.eq.s32.totalorder %s44, 2
      %p403 = por %p401, %p402
      %p405 = scmp.ne.s32.totalorder %s388, %s404
      %p406 = scmp.eq.s32.totalorder %s44, 0
      %p407 = por %p405, %p406
      %s408 = ssub.s32 %s38, %s45
      %p409 = scmp.eq.s32.totalorder %s408, 0
      %s411 = sadd.s32 %s410, 1
      %s412 = scalar_select %p409, %s410, %s411
      %p415 = pneg %p409
      %p416 = scmp.eq.s32.totalorder %s38, 2
      %p417 = por %p415, %p416
      %p418 = scmp.ne.s32.totalorder %s410, %s413
      %p419 = scmp.eq.s32.totalorder %s38, 0
      %p420 = por %p418, %p419
      %p421 = scmp.ne.s32.totalorder %s410, %s413
      %p422 = scmp.eq.s32.totalorder %s43, 2
      %p423 = por %p421, %p422
      %p424 = scmp.ne.s32.totalorder %s413, %s414
      %p425 = scmp.eq.s32.totalorder %s43, 0
      %p426 = por %p424, %p425
      %p427 = scmp.ne.s32.totalorder %s413, %s414
      %p428 = scmp.eq.s32.totalorder %s44, 2
      %p429 = por %p427, %p428
      %p431 = scmp.ne.s32.totalorder %s414, %s430
      %p432 = scmp.eq.s32.totalorder %s44, 0
      %p433 = por %p431, %p432
      %s434 = ssub.s32 %s38, %s45
      %p435 = scmp.eq.s32.totalorder %s434, 0
      %s437 = sadd.s32 %s436, 1
      %s438 = scalar_select %p435, %s436, %s437
      %p441 = pneg %p435
      %p442 = scmp.eq.s32.totalorder %s38, 2
      %p443 = por %p441, %p442
      %p444 = scmp.ne.s32.totalorder %s436, %s439
      %p445 = scmp.eq.s32.totalorder %s38, 0
      %p446 = por %p444, %p445
      %p447 = scmp.ne.s32.totalorder %s436, %s439
      %p448 = scmp.eq.s32.totalorder %s43, 2
      %p449 = por %p447, %p448
      %p450 = scmp.ne.s32.totalorder %s439, %s440
      %p451 = scmp.eq.s32.totalorder %s43, 0
      %p452 = por %p450, %p451
      %p453 = scmp.ne.s32.totalorder %s439, %s440
      %p454 = scmp.eq.s32.totalorder %s44, 2
      %p455 = por %p453, %p454
      %p457 = scmp.ne.s32.totalorder %s440, %s456
      %p458 = scmp.eq.s32.totalorder %s44, 0
      %p459 = por %p457, %p458
      %s460 = ssub.s32 %s38, %s45
      %p461 = scmp.eq.s32.totalorder %s460, 0
      %s463 = sadd.s32 %s462, 1
      %s464 = scalar_select %p461, %s462, %s463
      %p467 = pneg %p461
      %p468 = scmp.eq.s32.totalorder %s38, 2
      %p469 = por %p467, %p468
      %p470 = scmp.ne.s32.totalorder %s462, %s465
      %p471 = scmp.eq.s32.totalorder %s38, 0
      %p472 = por %p470, %p471
      %p473 = scmp.ne.s32.totalorder %s462, %s465
      %p474 = scmp.eq.s32.totalorder %s43, 2
      %p475 = por %p473, %p474
      %p476 = scmp.ne.s32.totalorder %s465, %s466
      %p477 = scmp.eq.s32.totalorder %s43, 0
      %p478 = por %p476, %p477
      %p479 = scmp.ne.s32.totalorder %s465, %s466
      %p480 = scmp.eq.s32.totalorder %s44, 2
      %p481 = por %p479, %p480
      %p483 = scmp.ne.s32.totalorder %s466, %s482
      %p484 = scmp.eq.s32.totalorder %s44, 0
      %p485 = por %p483, %p484
      %s486 = ssub.s32 %s38, %s45
      %p487 = scmp.eq.s32.totalorder %s486, 0
      %s489 = sadd.s32 %s488, 1
      %s490 = scalar_select %p487, %s488, %s489
      %p493 = pneg %p487
      %p494 = scmp.eq.s32.totalorder %s38, 2
      %p495 = por %p493, %p494
      %p496 = scmp.ne.s32.totalorder %s488, %s491
      %p497 = scmp.eq.s32.totalorder %s38, 0
      %p498 = por %p496, %p497
      %p499 = scmp.ne.s32.totalorder %s488, %s491
      %p500 = scmp.eq.s32.totalorder %s43, 2
      %p501 = por %p499, %p500
      %p502 = scmp.ne.s32.totalorder %s491, %s492
      %p503 = scmp.eq.s32.totalorder %s43, 0
      %p504 = por %p502, %p503
      %p505 = scmp.ne.s32.totalorder %s491, %s492
      %p506 = scmp.eq.s32.totalorder %s44, 2
      %p507 = por %p505, %p506
      %p509 = scmp.ne.s32.totalorder %s492, %s508
      %p510 = scmp.eq.s32.totalorder %s44, 0
      %p511 = por %p509, %p510
      %s512 = ssub.s32 %s38, %s45
      %p513 = scmp.eq.s32.totalorder %s512, 0
      %s515 = sadd.s32 %s514, 1
      %s516 = scalar_select %p513, %s514, %s515
      %p519 = pneg %p513
      %p520 = scmp.eq.s32.totalorder %s38, 2
      %p521 = por %p519, %p520
      %p522 = scmp.ne.s32.totalorder %s514, %s517
      %p523 = scmp.eq.s32.totalorder %s38, 0
      %p524 = por %p522, %p523
      %p525 = scmp.ne.s32.totalorder %s514, %s517
      %p526 = scmp.eq.s32.totalorder %s43, 2
      %p527 = por %p525, %p526
      %p528 = scmp.ne.s32.totalorder %s517, %s518
      %p529 = scmp.eq.s32.totalorder %s43, 0
      %p530 = por %p528, %p529
      %p531 = scmp.ne.s32.totalorder %s517, %s518
      %p532 = scmp.eq.s32.totalorder %s44, 2
      %p533 = por %p531, %p532
      %p535 = scmp.ne.s32.totalorder %s518, %s534
      %p536 = scmp.eq.s32.totalorder %s44, 0
      %p537 = por %p535, %p536
      %s538 = ssub.s32 %s38, %s45
      %p539 = scmp.eq.s32.totalorder %s538, 0
      %s541 = sadd.s32 %s540, 1
      %s542 = scalar_select %p539, %s540, %s541
      %p545 = pneg %p539
      %p546 = scmp.eq.s32.totalorder %s38, 2
      %p547 = por %p545, %p546
      %p548 = scmp.ne.s32.totalorder %s540, %s543
      %p549 = scmp.eq.s32.totalorder %s38, 0
      %p550 = por %p548, %p549
      %p551 = scmp.ne.s32.totalorder %s540, %s543
      %p552 = scmp.eq.s32.totalorder %s43, 2
      %p553 = por %p551, %p552
      %p554 = scmp.ne.s32.totalorder %s543, %s544
      %p555 = scmp.eq.s32.totalorder %s43, 0
      %p556 = por %p554, %p555
      %p557 = scmp.ne.s32.totalorder %s543, %s544
      %p558 = scmp.eq.s32.totalorder %s44, 2
      %p559 = por %p557, %p558
      %p561 = scmp.ne.s32.totalorder %s544, %s560
      %p562 = scmp.eq.s32.totalorder %s44, 0
      %p563 = por %p561, %p562
      %s565 = sadd.s32 %s564, 1
      %p568 = scmp.eq.s32.totalorder %s38, 2
      %p569 = scmp.ne.s32.totalorder %s564, %s566
      %p570 = scmp.eq.s32.totalorder %s38, 0
      %p571 = por %p569, %p570
      %p572 = scmp.ne.s32.totalorder %s564, %s566
      %p573 = scmp.eq.s32.totalorder %s43, 2
      %p574 = por %p572, %p573
      %p575 = scmp.ne.s32.totalorder %s566, %s567
      %p576 = scmp.eq.s32.totalorder %s43, 0
      %p577 = por %p575, %p576
      %p578 = scmp.ne.s32.totalorder %s566, %s567
      %p579 = scmp.eq.s32.totalorder %s44, 2
      %p580 = por %p578, %p579
      %p582 = scmp.ne.s32.totalorder %s567, %s581
      %p583 = scmp.eq.s32.totalorder %s44, 0
      %p584 = por %p582, %p583
      %s586 = sadd.s32 %s585, 1
      %p589 = scmp.eq.s32.totalorder %s38, 2
      %p590 = scmp.ne.s32.totalorder %s585, %s587
      %p591 = scmp.eq.s32.totalorder %s38, 0
      %p592 = por %p590, %p591
      %p593 = scmp.ne.s32.totalorder %s585, %s587
      %p594 = scmp.eq.s32.totalorder %s43, 2
      %p595 = por %p593, %p594
      %p596 = scmp.ne.s32.totalorder %s587, %s588
      %p597 = scmp.eq.s32.totalorder %s43, 0
      %p598 = por %p596, %p597
      %p599 = scmp.ne.s32.totalorder %s587, %s588
      %p600 = scmp.eq.s32.totalorder %s44, 2
      %p601 = por %p599, %p600
      %p603 = scmp.ne.s32.totalorder %s588, %s602
      %p604 = scmp.eq.s32.totalorder %s44, 0
      %p605 = por %p603, %p604
      %p606 = scmp.le.s32.totalorder 1, %s38
      %p607 = scmp.lt.s32.totalorder %s38, 4
      %p608 = pnand %p606, %p607
      %p609 = pneg %p608
      // Predicated region
      $region9: #{tpu_custom_call.1} parent=5 // pred_check
        _
      $region10: #{tpu_custom_call.1} parent=5 // pred_check_branch
        %611 = sbr.rel (%p608) target = $region12
      $region11: #{tpu_custom_call.1} parent=5 // pred_region
        %s612 = ssub.s32 %s38, 1
        // Predicated region
        $region13: #{tpu_custom_call.1} parent=11 // pred_check
          %p613 = pneg %p59
        $region14: #{tpu_custom_call.1} parent=11 // pred_check_branch
          %615 = sbr.rel (%p613) target = $region16
        $region15: #{tpu_custom_call.1} parent=11 // pred_region
          _
        $region16: #{tpu_custom_call.1} parent=11 // pred_fallthru
          _
        // Predicated region
        $region17: #{tpu_custom_call.1} parent=11 // pred_check
          %p616 = pneg %p80
        $region18: #{tpu_custom_call.1} parent=11 // pred_check_branch
          %618 = sbr.rel (%p616) target = $region20
        $region19: #{tpu_custom_call.1} parent=11 // pred_region
          _
        $region20: #{tpu_custom_call.1} parent=11 // pred_fallthru
          _
        // Predicated region
        $region21: #{tpu_custom_call.1} parent=11 // pred_check
          %p619 = pneg %p101
        $region22: #{tpu_custom_call.1} parent=11 // pred_check_branch
          %621 = sbr.rel (%p619) target = $region24
        $region23: #{tpu_custom_call.1} parent=11 // pred_region
          _
        $region24: #{tpu_custom_call.1} parent=11 // pred_fallthru
          _
        // Predicated region
        $region25: #{tpu_custom_call.1} parent=11 // pred_check
          %p622 = pneg %p122
        $region26: #{tpu_custom_call.1} parent=11 // pred_check_branch
          %624 = sbr.rel (%p622) target = $region28
        $region27: #{tpu_custom_call.1} parent=11 // pred_region
          _
        $region28: #{tpu_custom_call.1} parent=11 // pred_fallthru
          _
        // Predicated region
        $region29: #{tpu_custom_call.1} parent=11 // pred_check
          %p625 = pneg %p143
        $region30: #{tpu_custom_call.1} parent=11 // pred_check_branch
          %627 = sbr.rel (%p625) target = $region32
        $region31: #{tpu_custom_call.1} parent=11 // pred_region
          _
        $region32: #{tpu_custom_call.1} parent=11 // pred_fallthru
          _
        // Predicated region
        $region33: #{tpu_custom_call.1} parent=11 // pred_check
          %p628 = pneg %p164
        $region34: #{tpu_custom_call.1} parent=11 // pred_check_branch
          %630 = sbr.rel (%p628) target = $region36
        $region35: #{tpu_custom_call.1} parent=11 // pred_region
          _
        $region36: #{tpu_custom_call.1} parent=11 // pred_fallthru
          _
        // Predicated region
        $region37: #{tpu_custom_call.1} parent=11 // pred_check
          %p631 = pneg %p185
        $region38: #{tpu_custom_call.1} parent=11 // pred_check_branch
          %633 = sbr.rel (%p631) target = $region40
        $region39: #{tpu_custom_call.1} parent=11 // pred_region
          _
        $region40: #{tpu_custom_call.1} parent=11 // pred_fallthru
          _
        // Predicated region
        $region41: #{tpu_custom_call.1} parent=11 // pred_check
          %p634 = pneg %p206
        $region42: #{tpu_custom_call.1} parent=11 // pred_check_branch
          %636 = sbr.rel (%p634) target = $region44
        $region43: #{tpu_custom_call.1} parent=11 // pred_region
          _
        $region44: #{tpu_custom_call.1} parent=11 // pred_fallthru
          _
        // Predicated region
        $region45: #{tpu_custom_call.1} parent=11 // pred_check
          %p637 = pneg %p227
        $region46: #{tpu_custom_call.1} parent=11 // pred_check_branch
          %639 = sbr.rel (%p637) target = $region48
        $region47: #{tpu_custom_call.1} parent=11 // pred_region
          _
        $region48: #{tpu_custom_call.1} parent=11 // pred_fallthru
          _
        // Predicated region
        $region49: #{tpu_custom_call.1} parent=11 // pred_check
          %p640 = pneg %p248
        $region50: #{tpu_custom_call.1} parent=11 // pred_check_branch
          %642 = sbr.rel (%p640) target = $region52
        $region51: #{tpu_custom_call.1} parent=11 // pred_region
          _
        $region52: #{tpu_custom_call.1} parent=11 // pred_fallthru
          _
        // Predicated region
        $region53: #{tpu_custom_call.1} parent=11 // pred_check
          %p643 = pneg %p269
        $region54: #{tpu_custom_call.1} parent=11 // pred_check_branch
          %645 = sbr.rel (%p643) target = $region56
        $region55: #{tpu_custom_call.1} parent=11 // pred_region
          _
        $region56: #{tpu_custom_call.1} parent=11 // pred_fallthru
          _
        // Predicated region
        $region57: #{tpu_custom_call.1} parent=11 // pred_check
          %p646 = pneg %p290
        $region58: #{tpu_custom_call.1} parent=11 // pred_check_branch
          %648 = sbr.rel (%p646) target = $region60
        $region59: #{tpu_custom_call.1} parent=11 // pred_region
          _
        $region60: #{tpu_custom_call.1} parent=11 // pred_fallthru
          _
        // Predicated region
        $region61: #{tpu_custom_call.1} parent=11 // pred_check
          %p649 = pneg %p311
        $region62: #{tpu_custom_call.1} parent=11 // pred_check_branch
          %651 = sbr.rel (%p649) target = $region64
        $region63: #{tpu_custom_call.1} parent=11 // pred_region
          _
        $region64: #{tpu_custom_call.1} parent=11 // pred_fallthru
          _
        // Predicated region
        $region65: #{tpu_custom_call.1} parent=11 // pred_check
          %p652 = pneg %p332
        $region66: #{tpu_custom_call.1} parent=11 // pred_check_branch
          %654 = sbr.rel (%p652) target = $region68
        $region67: #{tpu_custom_call.1} parent=11 // pred_region
          _
        $region68: #{tpu_custom_call.1} parent=11 // pred_fallthru
          _
        // Predicated region
        $region69: #{tpu_custom_call.1} parent=11 // pred_check
          %p655 = pneg %p353
        $region70: #{tpu_custom_call.1} parent=11 // pred_check_branch
          %657 = sbr.rel (%p655) target = $region72
        $region71: #{tpu_custom_call.1} parent=11 // pred_region
          _
        $region72: #{tpu_custom_call.1} parent=11 // pred_fallthru
          _
        // Predicated region
        $region73: #{tpu_custom_call.1} parent=11 // pred_check
          %p658 = pneg %p374
        $region74: #{tpu_custom_call.1} parent=11 // pred_check_branch
          %660 = sbr.rel (%p658) target = $region76
        $region75: #{tpu_custom_call.1} parent=11 // pred_region
          _
        $region76: #{tpu_custom_call.1} parent=11 // pred_fallthru
          _
      $region12: #{tpu_custom_call.1} parent=5 // pred_fallthru
        _
      %p661 = scmp.lt.s32.totalorder %s38, 3
      // Predicated region
      $region77: #{tpu_custom_call.1} parent=5 // pred_check
        %p662 = pneg %p661
      $region78: #{tpu_custom_call.1} parent=5 // pred_check_branch
        %664 = sbr.rel (%p662) target = $region80
      $region79: #{tpu_custom_call.1} parent=5 // pred_region
        // Predicated region
        $region81: #{tpu_custom_call.1} parent=79 // pred_check
          %p665 = pneg %p394
        $region82: #{tpu_custom_call.1} parent=79 // pred_check_branch
          %667 = sbr.rel (%p665) target = $region84
        $region83: #{tpu_custom_call.1} parent=79 // pred_region
          %p668 = scmp.lt.s32.totalorder %s38, 2
          %s669 = scalar_select %p668, %s38, 2
          %s670 = smul.addr %s669, 32
          %s671 = smul.addr %s670, 8
          %s672 = scalar_lea.vmem %s16, %s671
        $region84: #{tpu_custom_call.1} parent=79 // pred_fallthru
          _
        // Predicated region
        $region85: #{tpu_custom_call.1} parent=79 // pred_check
          %p673 = pneg %p420
        $region86: #{tpu_custom_call.1} parent=79 // pred_check_branch
          %675 = sbr.rel (%p673) target = $region88
        $region87: #{tpu_custom_call.1} parent=79 // pred_region
          %p676 = scmp.lt.s32.totalorder %s38, 2
          %s677 = scalar_select %p676, %s38, 2
          %s678 = smul.addr %s677, 2
          %s679 = smul.addr %s678, 8
          %s680 = scalar_lea.vmem %s17, %s679
        $region88: #{tpu_custom_call.1} parent=79 // pred_fallthru
          _
        // Predicated region
        $region89: #{tpu_custom_call.1} parent=79 // pred_check
          %p681 = pneg %p446
        $region90: #{tpu_custom_call.1} parent=79 // pred_check_branch
          %683 = sbr.rel (%p681) target = $region92
        $region91: #{tpu_custom_call.1} parent=79 // pred_region
          %p684 = scmp.lt.s32.totalorder %s38, 2
          %s685 = scalar_select %p684, %s38, 2
          %s686 = smul.addr %s685, 4
          %s687 = smul.addr %s686, 8
          %s688 = scalar_lea.vmem %s18, %s687
        $region92: #{tpu_custom_call.1} parent=79 // pred_fallthru
          _
        // Predicated region
        $region93: #{tpu_custom_call.1} parent=79 // pred_check
          %p689 = pneg %p472
        $region94: #{tpu_custom_call.1} parent=79 // pred_check_branch
          %691 = sbr.rel (%p689) target = $region96
        $region95: #{tpu_custom_call.1} parent=79 // pred_region
          %p692 = scmp.lt.s32.totalorder %s38, 2
          %s693 = scalar_select %p692, %s38, 2
          %s694 = smul.addr %s693, 8
          %s695 = smul.addr %s694, 8
          %s696 = scalar_lea.vmem %s19, %s695
        $region96: #{tpu_custom_call.1} parent=79 // pred_fallthru
          _
        // Predicated region
        $region97: #{tpu_custom_call.1} parent=79 // pred_check
          %p697 = pneg %p498
        $region98: #{tpu_custom_call.1} parent=79 // pred_check_branch
          %699 = sbr.rel (%p697) target = $region100
        $region99: #{tpu_custom_call.1} parent=79 // pred_region
          %p700 = scmp.lt.s32.totalorder %s38, 2
          %s701 = scalar_select %p700, %s38, 2
          %s702 = scalar_lea.vmem %s20, %s701
        $region100: #{tpu_custom_call.1} parent=79 // pred_fallthru
          _
      $region80: #{tpu_custom_call.1} parent=5 // pred_fallthru
        _
      %p703 = scmp.le.s32.totalorder 1, %s38
      %p704 = scmp.lt.s32.totalorder %s38, 4
      %p705 = pnand %p703, %p704
      %p706 = pneg %p705
      // Predicated region
      $region101: #{tpu_custom_call.1} parent=5 // pred_check
        _
      $region102: #{tpu_custom_call.1} parent=5 // pred_check_branch
        %708 = sbr.rel (%p705) target = $region104
      $region103: #{tpu_custom_call.1} parent=5 // pred_region
        %s709 = ssub.s32 %s38, 1
        %p710 = pneg %p59
        %p711 = pneg %p56
        %p712 = pneg %p80
        %p713 = pneg %p77
        %p714 = pneg %p101
        %p715 = pneg %p98
        %p716 = pneg %p122
        %p717 = pneg %p119
        %p718 = pneg %p143
        %p719 = pneg %p140
        %p720 = pneg %p164
        %p721 = pneg %p161
        %p722 = pneg %p185
        %p723 = pneg %p182
        %p724 = pneg %p206
        %p725 = pneg %p203
        %p726 = pneg %p227
        %p727 = pneg %p224
        %p728 = pneg %p248
        %p729 = pneg %p245
        %p730 = pneg %p269
        %p731 = pneg %p266
        %p732 = pneg %p290
        %p733 = pneg %p287
        %p734 = pneg %p311
        %p735 = pneg %p308
        %p736 = pneg %p332
        %p737 = pneg %p329
        %p738 = pneg %p353
        %p739 = pneg %p350
        %p740 = pneg %p374
        %p741 = pneg %p371
        %p742 = scmp.lt.s32.totalorder %s43, 2
        %s743 = scalar_select %p742, %s43, 2
        %s744 = smul.addr %s743, 32
        %s745 = smul.addr %s744, 8
        %s746 = scalar_lea.vmem %s16, %s745
        %p747 = pneg %p400
        %p748 = pneg %p397
        %p749 = scmp.lt.s32.totalorder %s43, 2
        %s750 = scalar_select %p749, %s43, 2
        %s751 = smul.addr %s750, 2
        %s752 = smul.addr %s751, 8
        %s753 = scalar_lea.vmem %s17, %s752
        %p754 = pneg %p426
        %p755 = pneg %p423
        %p756 = scmp.lt.s32.totalorder %s43, 2
        %s757 = scalar_select %p756, %s43, 2
        %s758 = smul.addr %s757, 4
        %s759 = smul.addr %s758, 8
        %s760 = scalar_lea.vmem %s18, %s759
        %p761 = pneg %p452
        %p762 = pneg %p449
        %p763 = scmp.lt.s32.totalorder %s43, 2
        %s764 = scalar_select %p763, %s43, 2
        %s765 = smul.addr %s764, 8
        %s766 = smul.addr %s765, 8
        %s767 = scalar_lea.vmem %s19, %s766
        %p768 = pneg %p478
        %p769 = pneg %p475
        %p770 = scmp.lt.s32.totalorder %s43, 2
        %s771 = scalar_select %p770, %s43, 2
        %s772 = scalar_lea.vmem %s20, %s771
        %p773 = pneg %p504
        %p774 = pneg %p501
        %p775 = pneg %p530
        %p776 = pneg %p527
        %s777 = sand.u32 %s517, 1
        %s778 = scalar_lea.sflag [#allocation5], %s777
        %s779 = sand.u32 %s517, 1
        %s780 = smul.addr %s779, 8
        %s781 = scalar_lea.vmem [#allocation4], %s780
        %p782 = pneg %p556
        %p783 = pneg %p553
        %s784 = sand.u32 %s43, 1
        %s785 = scalar_lea.sflag [#allocation7], %s784
        %s786 = sand.u32 %s543, 1
        %s787 = smul.addr %s786, 8
        %s788 = scalar_lea.vmem [#allocation6], %s787
        %p789 = pneg %p577
        %p790 = pneg %p574
        %p791 = pneg %p598
        %p792 = pneg %p595
        %p793 = scmp.lt.s32.totalorder %s43, 2
        %s794 = scalar_select %p793, %s43, 2
        %s795 = smul.addr %s794, 32
        %s796 = smul.addr %s795, 8
        %s797 = scalar_lea.vmem %s16, %s796
        %p798 = scmp.lt.s32.totalorder %s43, 2
        %s799 = scalar_select %p798, %s43, 2
        %s800 = smul.addr %s799, 2
        %s801 = smul.addr %s800, 8
        %s802 = scalar_lea.vmem %s17, %s801
        %p803 = scmp.lt.s32.totalorder %s43, 2
        %s804 = scalar_select %p803, %s43, 2
        %s805 = smul.addr %s804, 4
        %s806 = smul.addr %s805, 8
        %s807 = scalar_lea.vmem %s18, %s806
        %p808 = scmp.lt.s32.totalorder %s43, 2
        %s809 = scalar_select %p808, %s43, 2
        %s810 = smul.addr %s809, 8
        %s811 = smul.addr %s810, 8
        %s812 = scalar_lea.vmem %s19, %s811
        %p813 = scmp.lt.s32.totalorder %s43, 2
        %s814 = scalar_select %p813, %s43, 2
        %s815 = scalar_lea.vmem %s20, %s814
        %p816 = scmp.eq.s32.totalorder %s43, 0
        // Predicated region
        $region105: #{tpu_custom_call.1} parent=103 // pred_check
          %p817 = pneg %p816
        $region106: #{tpu_custom_call.1} parent=103 // pred_check_branch
          %819 = sbr.rel (%p817) target = $region108
        $region107: #{tpu_custom_call.1} parent=103 // pred_region
          %v820 = vld [vmem:[%s2] sm:$0xf]
          %v821 = vld [vmem:[%s0] sm:$0xff]
          %v822 = vld [vmem:[%s0 + $0x8] sm:$0xff]
          %v823 = vld [vmem:[%s1] sm:$0xff]
          %v824 = vlaneseq
          %v825 = vshrl.u32 %v824, 7
          %v826 = vsub.s32 0, %v825
          %v827 = vrot.slane %v820, %v826
          %vm828 = vcmask 64512
          %v830 = vsel %vm828, %v821, 0
          %v833 = vsel %vm828, %v822, 0
          %835 = vmatprep.subr.mxu0 0.0
          %836 = vmatpush1.msra.mxu0 %v823
          %837 = vmatprep.subr.mxu0 0.0
          %838 = vmatpush1.msra.mxu0 0.0
          %839 = vmatprep.subr.mxu0 0.0
          %840 = vmatpush1.msra.mxu0 0.0
          %841 = vmatprep.subr.mxu0 0.0
          %842 = vmatpush1.msra.mxu0 0.0
          %843 = vmatprep.subr.mxu0 0.0
          %844 = vmatpush1.msra.mxu0 0.0
          %845 = vmatprep.subr.mxu0 0.0
          %846 = vmatpush1.msra.mxu0 0.0
          %847 = vmatprep.subr.mxu0 0.0
          %848 = vmatpush1.msra.mxu0 0.0
          %849 = vmatprep.subr.mxu0 0.0
          %850 = vmatpush1.msra.mxu0 0.0
          %851 = vmatprep.subr.mxu0 0.0
          %852 = vmatpush1.msra.mxu0 0.0
          %853 = vmatprep.subr.mxu0 0.0
          %854 = vmatpush1.msra.mxu0 0.0
          %855 = vmatprep.subr.mxu0 0.0
          %856 = vmatpush1.msra.mxu0 0.0
          %857 = vmatprep.subr.mxu0 0.0
          %858 = vmatpush1.msra.mxu0 0.0
          %859 = vmatprep.subr.mxu0 0.0
          %860 = vmatpush1.msra.mxu0 0.0
          %861 = vmatprep.subr.mxu0 0.0
          %862 = vmatpush1.msra.mxu0 0.0
          %863 = vmatprep.subr.mxu0 0.0
          %864 = vmatpush1.msra.mxu0 0.0
          %865 = vmatprep.subr.mxu0 0.0
          %866 = vmatpush1.msra.mxu0 0.0
          %867 = vmatprep.subr.mxu0 0.0
          %868 = vmatpush1.msra.mxu0 0.0
          %869 = vmatprep.subr.mxu0 0.0
          %870 = vmatpush1.msra.mxu0 0.0
          %871 = vmatprep.subr.mxu0 0.0
          %872 = vmatpush1.msra.mxu0 0.0
          %873 = vmatprep.subr.mxu0 0.0
          %874 = vmatpush1.msra.mxu0 0.0
          %875 = vmatprep.subr.mxu0 0.0
          %876 = vmatpush1.msra.mxu0 0.0
          %877 = vmatprep.subr.mxu0 0.0
          %878 = vmatpush1.msra.mxu0 0.0
          %879 = vmatprep.subr.mxu0 0.0
          %880 = vmatpush1.msra.mxu0 0.0
          %881 = vmatprep.subr.mxu0 0.0
          %882 = vmatpush1.msra.mxu0 0.0
          %883 = vmatprep.subr.mxu0 0.0
          %884 = vmatpush1.msra.mxu0 0.0
          %885 = vmatprep.subr.mxu0 0.0
          %886 = vmatpush1.msra.mxu0 0.0
          %887 = vmatprep.subr.mxu0 0.0
          %888 = vmatpush1.msra.mxu0 0.0
          %889 = vmatprep.subr.mxu0 0.0
          %890 = vmatpush1.msra.mxu0 0.0
          %891 = vmatprep.subr.mxu0 0.0
          %892 = vmatpush1.msra.mxu0 0.0
          %893 = vmatprep.subr.mxu0 0.0
          %894 = vmatpush1.msra.mxu0 0.0
          %895 = vmatprep.subr.mxu0 0.0
          %896 = vmatpush1.msra.mxu0 0.0
          %897 = vmatprep.subr.mxu0 0.0
          %898 = vmatpush1.msra.mxu0 0.0
          %899 = vmatprep.mubr.f32.mxu0 0.0
          %900 = vmatmul.mubr.f32.gmra.mrb[0].mxu0 %v830
          %v901 = vpop.f32.mrb[0].mxu0
          %v902 = vadd.f32 %v827, %v901
          %v903 = vpop.f32.mrb[0].mxu0
          %904 = vmatprep.mubr.f32.mxu0 0.0
          %905 = vmatmul.mubr.f32.gmra.mrb[0].mxu0 %v833
          %v906 = vpop.f32.mrb[0].mxu0
          %v907 = vadd.f32 %v827, %v906
          %v908 = vpop.f32.mrb[0].mxu0
          %909 = vdwg.mxu0
          %vm910 = vcmask 261120
          %v911 = vsel %vm910, %v902, 0.0
          %v912 = vsel %vm910, %v907, 0.0
          %v913 = vadd.f32 %v911, %v912
          %v914 = vrot.slane %v913, 4
          %v915 = vadd.f32 %v913, %v914
          %v916 = vrot.slane %v915, 2
          %v917 = vadd.f32 %v915, %v916
          %v918 = vrot.slane %v917, 1
          %v919 = vadd.f32 %v917, %v918
          %v920 = vrcp.pop 16.0
          %v921 = vmul.f32 %v919, %v920
          %v922 = vsub.f32 %v902, %v921
          %v923 = vsub.f32 %v907, %v921
          %v924 = vmul.f32 %v922, %v922
          %v925 = vmul.f32 %v923, %v923
          %v926 = vsel %vm910, %v924, 0.0
          %v927 = vsel %vm910, %v925, 0.0
          %v928 = vadd.f32 %v926, %v927
          %v929 = vrot.slane %v928, 4
          %v930 = vadd.f32 %v928, %v929
          %v931 = vrot.slane %v930, 2
          %v932 = vadd.f32 %v930, %v931
          %v933 = vrot.slane %v932, 1
          %v934 = vadd.f32 %v932, %v933
          %v935 = vmul.f32 %v934, %v920
          %v936 = vadd.f32 %v935, 1e-05
          %v937 = vrsqrt.pop %v936
          %v938 = vmul.f32 %v922, %v937
          %v939 = vmul.f32 %v923, %v937
          %v940 = vlaneseq
          %v941 = vshrl.u32 %v940, 7
          %v942 = vsub.s32 1, %v941
          %v943 = vrot.slane %v820, %v942
          %v944 = vmul.f32 %v938, %v943
          %v945 = vmul.f32 %v939, %v943
          %v946 = vlaneseq
          %v947 = vshrl.u32 %v946, 7
          %v948 = vsub.s32 2, %v947
          %v949 = vrot.slane %v820, %v948
          %v950 = vadd.f32 %v944, %v949
          %v951 = vadd.f32 %v945, %v949
          %v952 = vmax.f32 %v950, 0.0
          %v953 = vmax.f32 %v951, 0.0
          %v954 = vlaneseq
          %v955 = vshrl.u32 %v954, 7
          %v956 = vsub.s32 3, %v955
          %v957 = vrot.slane %v820, %v956
          %v958 = vadd.f32 %v952, %v957
          %v959 = vadd.f32 %v953, %v957
          %960 = vst.msk [vmem:[#allocation2] sm:$0xff] %vm910, %v958
          %961 = vst.msk [vmem:[#allocation2 + $0x8] sm:$0xff] %vm910, %v959
          %v962 = vld [vmem:[%s3] sm:$0xff]
          %963 = vst.msk [vmem:[#allocation3] sm:$0xff] %vm910, %v962
        $region108: #{tpu_custom_call.1} parent=103 // pred_fallthru
          _
        %v964 = vld [vmem:[#allocation3] sm:$0xff]
        %v965 = vld [vmem:[%s5] sm:$0x3]
        %vm966 = vcmask 261120
        %v967 = vsel %vm966, %v964, 0.0
        %968 = vadd.xlane.f32.xlu0 %v967
        %v969 = vpop.xlane.xlu0 %968
        %v970 = vrcp.pop 32.0
        %v971 = vmul.f32 %v969, %v970
        %v972 = vsub.f32 %v964, %v971
        %v973 = vmul.f32 %v972, %v972
        %v974 = vsel %vm966, %v973, 0.0
        %975 = vadd.xlane.f32.xlu0 %v974
        %v976 = vpop.xlane.xlu0 %975
        %v977 = vmul.f32 %v976, %v970
        %v978 = vadd.f32 %v977, 1e-05
        %v979 = vrsqrt.pop %v978
        %v980 = vmul.f32 %v972, %v979
        %v981 = vlaneseq
        %v982 = vshrl.u32 %v981, 7
        %v983 = vsub.s32 0, %v982
        %v984 = vrot.slane %v965, %v983
        %v985 = vmul.f32 %v980, %v984
        %v986 = vlaneseq
        %v987 = vshrl.u32 %v986, 7
        %v988 = vsub.s32 1, %v987
        %v989 = vrot.slane %v965, %v988
        %v990 = vadd.f32 %v985, %v989
        %v991 = vld [vmem:[%s6] sm:$0xff]
        %v992 = vld [vmem:[%s6 + $0x8] sm:$0xff]
        %v993 = vld [vmem:[%s6 + $0x10] sm:$0xff]
        %v994 = vld [vmem:[%s6 + $0x18] sm:$0xff]
        %v995 = vld [vmem:[%s7] sm:$0x1]
        %v997 = vlaneseq
        %v998 = vshrl.u32 %v997, 7
        %v999 = vsub.s32 0, %v998
        %v1000 = vrot.slane %v995, %v999
        %v1003 = vsel %vm966, %v990, 0
        %1005 = vmatprep.subr.mxu0 0.0
        %1006 = vmatpush1.msra.mxu0 %v991
        %1007 = vmatprep.subr.mxu0 0.0
        %1008 = vmatpush1.msra.mxu0 %v992
        %1009 = vmatprep.subr.mxu0 0.0
        %1010 = vmatpush1.msra.mxu0 %v993
        %1011 = vmatprep.subr.mxu0 0.0
        %1012 = vmatpush1.msra.mxu0 %v994
        %1013 = vmatprep.subr.mxu0 0.0
        %1014 = vmatpush1.msra.mxu0 0.0
        %1015 = vmatprep.subr.mxu0 0.0
        %1016 = vmatpush1.msra.mxu0 0.0
        %1017 = vmatprep.subr.mxu0 0.0
        %1018 = vmatpush1.msra.mxu0 0.0
        %1019 = vmatprep.subr.mxu0 0.0
        %1020 = vmatpush1.msra.mxu0 0.0
        %1021 = vmatprep.subr.mxu0 0.0
        %1022 = vmatpush1.msra.mxu0 0.0
        %1023 = vmatprep.subr.mxu0 0.0
        %1024 = vmatpush1.msra.mxu0 0.0
        %1025 = vmatprep.subr.mxu0 0.0
        %1026 = vmatpush1.msra.mxu0 0.0
        %1027 = vmatprep.subr.mxu0 0.0
        %1028 = vmatpush1.msra.mxu0 0.0
        %1029 = vmatprep.subr.mxu0 0.0
        %1030 = vmatpush1.msra.mxu0 0.0
        %1031 = vmatprep.subr.mxu0 0.0
        %1032 = vmatpush1.msra.mxu0 0.0
        %1033 = vmatprep.subr.mxu0 0.0
        %1034 = vmatpush1.msra.mxu0 0.0
        %1035 = vmatprep.subr.mxu0 0.0
        %1036 = vmatpush1.msra.mxu0 0.0
        %1037 = vmatprep.subr.mxu0 0.0
        %1038 = vmatpush1.msra.mxu0 0.0
        %1039 = vmatprep.subr.mxu0 0.0
        %1040 = vmatpush1.msra.mxu0 0.0
        %1041 = vmatprep.subr.mxu0 0.0
        %1042 = vmatpush1.msra.mxu0 0.0
        %1043 = vmatprep.subr.mxu0 0.0
        %1044 = vmatpush1.msra.mxu0 0.0
        %1045 = vmatprep.subr.mxu0 0.0
        %1046 = vmatpush1.msra.mxu0 0.0
        %1047 = vmatprep.subr.mxu0 0.0
        %1048 = vmatpush1.msra.mxu0 0.0
        %1049 = vmatprep.subr.mxu0 0.0
        %1050 = vmatpush1.msra.mxu0 0.0
        %1051 = vmatprep.subr.mxu0 0.0
        %1052 = vmatpush1.msra.mxu0 0.0
        %1053 = vmatprep.subr.mxu0 0.0
        %1054 = vmatpush1.msra.mxu0 0.0
        %1055 = vmatprep.subr.mxu0 0.0
        %1056 = vmatpush1.msra.mxu0 0.0
        %1057 = vmatprep.subr.mxu0 0.0
        %1058 = vmatpush1.msra.mxu0 0.0
        %1059 = vmatprep.subr.mxu0 0.0
        %1060 = vmatpush1.msra.mxu0 0.0
        %1061 = vmatprep.subr.mxu0 0.0
        %1062 = vmatpush1.msra.mxu0 0.0
        %1063 = vmatprep.subr.mxu0 0.0
        %1064 = vmatpush1.msra.mxu0 0.0
        %1065 = vmatprep.subr.mxu0 0.0
        %1066 = vmatpush1.msra.mxu0 0.0
        %1067 = vmatprep.subr.mxu0 0.0
        %1068 = vmatpush1.msra.mxu0 0.0
        %1069 = vmatprep.mubr.f32.mxu0 0.0
        %1070 = vmatmul.mubr.f32.gmra.mrb[0].mxu0 %v1003
        %v1071 = vpop.f32.mrb[0].mxu0
        %v1072 = vadd.f32 %v1000, %v1071
        %v1073 = vpop.f32.mrb[0].mxu0
        %1074 = vdwg.mxu0
        %v1075 = vld [vmem:[%s8] sm:$0xff]
        %v1076 = vld [vmem:[%s8 + $0x8] sm:$0xff]
        %v1077 = vld [vmem:[%s8 + $0x10] sm:$0xff]
        %v1078 = vld [vmem:[%s8 + $0x18] sm:$0xff]
        %v1079 = vld [vmem:[%s9] sm:$0x1]
        %v1081 = vlaneseq
        %v1082 = vshrl.u32 %v1081, 7
        %v1083 = vsub.s32 0, %v1082
        %v1084 = vrot.slane %v1079, %v1083
        %1086 = vmatprep.subr.mxu0 0.0
        %1087 = vmatpush1.msra.mxu0 %v1075
        %1088 = vmatprep.subr.mxu0 0.0
        %1089 = vmatpush1.msra.mxu0 %v1076
        %1090 = vmatprep.subr.mxu0 0.0
        %1091 = vmatpush1.msra.mxu0 %v1077
        %1092 = vmatprep.subr.mxu0 0.0
        %1093 = vmatpush1.msra.mxu0 %v1078
        %1094 = vmatprep.subr.mxu0 0.0
        %1095 = vmatpush1.msra.mxu0 0.0
        %1096 = vmatprep.subr.mxu0 0.0
        %1097 = vmatpush1.msra.mxu0 0.0
        %1098 = vmatprep.subr.mxu0 0.0
        %1099 = vmatpush1.msra.mxu0 0.0
        %1100 = vmatprep.subr.mxu0 0.0
        %1101 = vmatpush1.msra.mxu0 0.0
        %1102 = vmatprep.subr.mxu0 0.0
        %1103 = vmatpush1.msra.mxu0 0.0
        %1104 = vmatprep.subr.mxu0 0.0
        %1105 = vmatpush1.msra.mxu0 0.0
        %1106 = vmatprep.subr.mxu0 0.0
        %1107 = vmatpush1.msra.mxu0 0.0
        %1108 = vmatprep.subr.mxu0 0.0
        %1109 = vmatpush1.msra.mxu0 0.0
        %1110 = vmatprep.subr.mxu0 0.0
        %1111 = vmatpush1.msra.mxu0 0.0
        %1112 = vmatprep.subr.mxu0 0.0
        %1113 = vmatpush1.msra.mxu0 0.0
        %1114 = vmatprep.subr.mxu0 0.0
        %1115 = vmatpush1.msra.mxu0 0.0
        %1116 = vmatprep.subr.mxu0 0.0
        %1117 = vmatpush1.msra.mxu0 0.0
        %1118 = vmatprep.subr.mxu0 0.0
        %1119 = vmatpush1.msra.mxu0 0.0
        %1120 = vmatprep.subr.mxu0 0.0
        %1121 = vmatpush1.msra.mxu0 0.0
        %1122 = vmatprep.subr.mxu0 0.0
        %1123 = vmatpush1.msra.mxu0 0.0
        %1124 = vmatprep.subr.mxu0 0.0
        %1125 = vmatpush1.msra.mxu0 0.0
        %1126 = vmatprep.subr.mxu0 0.0
        %1127 = vmatpush1.msra.mxu0 0.0
        %1128 = vmatprep.subr.mxu0 0.0
        %1129 = vmatpush1.msra.mxu0 0.0
        %1130 = vmatprep.subr.mxu0 0.0
        %1131 = vmatpush1.msra.mxu0 0.0
        %1132 = vmatprep.subr.mxu0 0.0
        %1133 = vmatpush1.msra.mxu0 0.0
        %1134 = vmatprep.subr.mxu0 0.0
        %1135 = vmatpush1.msra.mxu0 0.0
        %1136 = vmatprep.subr.mxu0 0.0
        %1137 = vmatpush1.msra.mxu0 0.0
        %1138 = vmatprep.subr.mxu0 0.0
        %1139 = vmatpush1.msra.mxu0 0.0
        %1140 = vmatprep.subr.mxu0 0.0
        %1141 = vmatpush1.msra.mxu0 0.0
        %1142 = vmatprep.subr.mxu0 0.0
        %1143 = vmatpush1.msra.mxu0 0.0
        %1144 = vmatprep.subr.mxu0 0.0
        %1145 = vmatpush1.msra.mxu0 0.0
        %1146 = vmatprep.subr.mxu0 0.0
        %1147 = vmatpush1.msra.mxu0 0.0
        %1148 = vmatprep.subr.mxu0 0.0
        %1149 = vmatpush1.msra.mxu0 0.0
        %1150 = vmatprep.mubr.f32.mxu0 0.0
        %1151 = vmatmul.mubr.f32.gmra.mrb[0].mxu0 %v1003
        %v1152 = vpop.f32.mrb[0].mxu0
        %v1153 = vadd.f32 %v1084, %v1152
        %v1154 = vpop.f32.mrb[0].mxu0
        %1155 = vdwg.mxu0
        %v1156 = vmax.f32 %v1153, 0.0
        %v1157 = vld [vmem:[%s10] sm:$0xff]
        %v1158 = vld [vmem:[%s10 + $0x8] sm:$0xff]
        %v1159 = vld [vmem:[%s10 + $0x10] sm:$0xff]
        %v1160 = vld [vmem:[%s10 + $0x18] sm:$0xff]
        %v1161 = vld [vmem:[%s11] sm:$0x1]
        %v1163 = vlaneseq
        %v1164 = vshrl.u32 %v1163, 7
        %v1165 = vsub.s32 0, %v1164
        %v1166 = vrot.slane %v1161, %v1165
        %v1169 = vsel %vm966, %v1156, 0
        %1171 = vmatprep.subr.mxu0 0.0
        %1172 = vmatpush1.msra.mxu0 %v1157
        %1173 = vmatprep.subr.mxu0 0.0
        %1174 = vmatpush1.msra.mxu0 %v1158
        %1175 = vmatprep.subr.mxu0 0.0
        %1176 = vmatpush1.msra.mxu0 %v1159
        %1177 = vmatprep.subr.mxu0 0.0
        %1178 = vmatpush1.msra.mxu0 %v1160
        %1179 = vmatprep.subr.mxu0 0.0
        %1180 = vmatpush1.msra.mxu0 0.0
        %1181 = vmatprep.subr.mxu0 0.0
        %1182 = vmatpush1.msra.mxu0 0.0
        %1183 = vmatprep.subr.mxu0 0.0
        %1184 = vmatpush1.msra.mxu0 0.0
        %1185 = vmatprep.subr.mxu0 0.0
        %1186 = vmatpush1.msra.mxu0 0.0
        %1187 = vmatprep.subr.mxu0 0.0
        %1188 = vmatpush1.msra.mxu0 0.0
        %1189 = vmatprep.subr.mxu0 0.0
        %1190 = vmatpush1.msra.mxu0 0.0
        %1191 = vmatprep.subr.mxu0 0.0
        %1192 = vmatpush1.msra.mxu0 0.0
        %1193 = vmatprep.subr.mxu0 0.0
        %1194 = vmatpush1.msra.mxu0 0.0
        %1195 = vmatprep.subr.mxu0 0.0
        %1196 = vmatpush1.msra.mxu0 0.0
        %1197 = vmatprep.subr.mxu0 0.0
        %1198 = vmatpush1.msra.mxu0 0.0
        %1199 = vmatprep.subr.mxu0 0.0
        %1200 = vmatpush1.msra.mxu0 0.0
        %1201 = vmatprep.subr.mxu0 0.0
        %1202 = vmatpush1.msra.mxu0 0.0
        %1203 = vmatprep.subr.mxu0 0.0
        %1204 = vmatpush1.msra.mxu0 0.0
        %1205 = vmatprep.subr.mxu0 0.0
        %1206 = vmatpush1.msra.mxu0 0.0
        %1207 = vmatprep.subr.mxu0 0.0
        %1208 = vmatpush1.msra.mxu0 0.0
        %1209 = vmatprep.subr.mxu0 0.0
        %1210 = vmatpush1.msra.mxu0 0.0
        %1211 = vmatprep.subr.mxu0 0.0
        %1212 = vmatpush1.msra.mxu0 0.0
        %1213 = vmatprep.subr.mxu0 0.0
        %1214 = vmatpush1.msra.mxu0 0.0
        %1215 = vmatprep.subr.mxu0 0.0
        %1216 = vmatpush1.msra.mxu0 0.0
        %1217 = vmatprep.subr.mxu0 0.0
        %1218 = vmatpush1.msra.mxu0 0.0
        %1219 = vmatprep.subr.mxu0 0.0
        %1220 = vmatpush1.msra.mxu0 0.0
        %1221 = vmatprep.subr.mxu0 0.0
        %1222 = vmatpush1.msra.mxu0 0.0
        %1223 = vmatprep.subr.mxu0 0.0
        %1224 = vmatpush1.msra.mxu0 0.0
        %1225 = vmatprep.subr.mxu0 0.0
        %1226 = vmatpush1.msra.mxu0 0.0
        %1227 = vmatprep.subr.mxu0 0.0
        %1228 = vmatpush1.msra.mxu0 0.0
        %1229 = vmatprep.subr.mxu0 0.0
        %1230 = vmatpush1.msra.mxu0 0.0
        %1231 = vmatprep.subr.mxu0 0.0
        %1232 = vmatpush1.msra.mxu0 0.0
        %1233 = vmatprep.subr.mxu0 0.0
        %1234 = vmatpush1.msra.mxu0 0.0
        %1235 = vmatprep.mubr.f32.mxu0 0.0
        %1236 = vmatmul.mubr.f32.gmra.mrb[0].mxu0 %v1169
        %v1237 = vpop.f32.mrb[0].mxu0
        %v1238 = vadd.f32 %v1166, %v1237
        %v1239 = vpop.f32.mrb[0].mxu0
        %1240 = vdwg.mxu0
        %v1241 = vmax.f32 %v1238, 0.0
        %v1242 = vld [vmem:[%s12] sm:$0xff]
        %v1243 = vld [vmem:[%s12 + $0x8] sm:$0xff]
        %v1244 = vld [vmem:[%s12 + $0x10] sm:$0xff]
        %v1245 = vld [vmem:[%s12 + $0x18] sm:$0xff]
        %v1246 = vld [vmem:[%s13] sm:$0x1]
        %v1248 = vlaneseq
        %v1249 = vshrl.u32 %v1248, 7
        %v1250 = vsub.s32 0, %v1249
        %v1251 = vrot.slane %v1246, %v1250
        %v1254 = vsel %vm966, %v1241, 0
        %1256 = vmatprep.subr.mxu0 0.0
        %1257 = vmatpush1.msra.mxu0 %v1242
        %1258 = vmatprep.subr.mxu0 0.0
        %1259 = vmatpush1.msra.mxu0 %v1243
        %1260 = vmatprep.subr.mxu0 0.0
        %1261 = vmatpush1.msra.mxu0 %v1244
        %1262 = vmatprep.subr.mxu0 0.0
        %1263 = vmatpush1.msra.mxu0 %v1245
        %1264 = vmatprep.subr.mxu0 0.0
        %1265 = vmatpush1.msra.mxu0 0.0
        %1266 = vmatprep.subr.mxu0 0.0
        %1267 = vmatpush1.msra.mxu0 0.0
        %1268 = vmatprep.subr.mxu0 0.0
        %1269 = vmatpush1.msra.mxu0 0.0
        %1270 = vmatprep.subr.mxu0 0.0
        %1271 = vmatpush1.msra.mxu0 0.0
        %1272 = vmatprep.subr.mxu0 0.0
        %1273 = vmatpush1.msra.mxu0 0.0
        %1274 = vmatprep.subr.mxu0 0.0
        %1275 = vmatpush1.msra.mxu0 0.0
        %1276 = vmatprep.subr.mxu0 0.0
        %1277 = vmatpush1.msra.mxu0 0.0
        %1278 = vmatprep.subr.mxu0 0.0
        %1279 = vmatpush1.msra.mxu0 0.0
        %1280 = vmatprep.subr.mxu0 0.0
        %1281 = vmatpush1.msra.mxu0 0.0
        %1282 = vmatprep.subr.mxu0 0.0
        %1283 = vmatpush1.msra.mxu0 0.0
        %1284 = vmatprep.subr.mxu0 0.0
        %1285 = vmatpush1.msra.mxu0 0.0
        %1286 = vmatprep.subr.mxu0 0.0
        %1287 = vmatpush1.msra.mxu0 0.0
        %1288 = vmatprep.subr.mxu0 0.0
        %1289 = vmatpush1.msra.mxu0 0.0
        %1290 = vmatprep.subr.mxu0 0.0
        %1291 = vmatpush1.msra.mxu0 0.0
        %1292 = vmatprep.subr.mxu0 0.0
        %1293 = vmatpush1.msra.mxu0 0.0
        %1294 = vmatprep.subr.mxu0 0.0
        %1295 = vmatpush1.msra.mxu0 0.0
        %1296 = vmatprep.subr.mxu0 0.0
        %1297 = vmatpush1.msra.mxu0 0.0
        %1298 = vmatprep.subr.mxu0 0.0
        %1299 = vmatpush1.msra.mxu0 0.0
        %1300 = vmatprep.subr.mxu0 0.0
        %1301 = vmatpush1.msra.mxu0 0.0
        %1302 = vmatprep.subr.mxu0 0.0
        %1303 = vmatpush1.msra.mxu0 0.0
        %1304 = vmatprep.subr.mxu0 0.0
        %1305 = vmatpush1.msra.mxu0 0.0
        %1306 = vmatprep.subr.mxu0 0.0
        %1307 = vmatpush1.msra.mxu0 0.0
        %1308 = vmatprep.subr.mxu0 0.0
        %1309 = vmatpush1.msra.mxu0 0.0
        %1310 = vmatprep.subr.mxu0 0.0
        %1311 = vmatpush1.msra.mxu0 0.0
        %1312 = vmatprep.subr.mxu0 0.0
        %1313 = vmatpush1.msra.mxu0 0.0
        %1314 = vmatprep.subr.mxu0 0.0
        %1315 = vmatpush1.msra.mxu0 0.0
        %1316 = vmatprep.subr.mxu0 0.0
        %1317 = vmatpush1.msra.mxu0 0.0
        %1318 = vmatprep.subr.mxu0 0.0
        %1319 = vmatpush1.msra.mxu0 0.0
        %1320 = vmatprep.mubr.f32.mxu0 0.0
        %1321 = vmatmul.mubr.f32.gmra.mrb[0].mxu0 %v1254
        %v1322 = vpop.f32.mrb[0].mxu0
        %v1323 = vadd.f32 %v1251, %v1322
        %v1324 = vpop.f32.mrb[0].mxu0
        %1325 = vdwg.mxu0
        %v1326 = vld [vmem:[%s14] sm:$0xff]
        %v1327 = vld [vmem:[%s14 + $0x8] sm:$0xff]
        %v1328 = vld [vmem:[%s14 + $0x10] sm:$0xff]
        %v1329 = vld [vmem:[%s14 + $0x18] sm:$0xff]
        %v1331 = vsel %vm966, %v1323, 0
        %1333 = vmatprep.subr.mxu0 0.0
        %1334 = vmatpush1.msra.mxu0 %v1326
        %1335 = vmatprep.subr.mxu0 0.0
        %1336 = vmatpush1.msra.mxu0 %v1327
        %1337 = vmatprep.subr.mxu0 0.0
        %1338 = vmatpush1.msra.mxu0 %v1328
        %1339 = vmatprep.subr.mxu0 0.0
        %1340 = vmatpush1.msra.mxu0 %v1329
        %1341 = vmatprep.subr.mxu0 0.0
        %1342 = vmatpush1.msra.mxu0 0.0
        %1343 = vmatprep.subr.mxu0 0.0
        %1344 = vmatpush1.msra.mxu0 0.0
        %1345 = vmatprep.subr.mxu0 0.0
        %1346 = vmatpush1.msra.mxu0 0.0
        %1347 = vmatprep.subr.mxu0 0.0
        %1348 = vmatpush1.msra.mxu0 0.0
        %1349 = vmatprep.subr.mxu0 0.0
        %1350 = vmatpush1.msra.mxu0 0.0
        %1351 = vmatprep.subr.mxu0 0.0
        %1352 = vmatpush1.msra.mxu0 0.0
        %1353 = vmatprep.subr.mxu0 0.0
        %1354 = vmatpush1.msra.mxu0 0.0
        %1355 = vmatprep.subr.mxu0 0.0
        %1356 = vmatpush1.msra.mxu0 0.0
        %1357 = vmatprep.subr.mxu0 0.0
        %1358 = vmatpush1.msra.mxu0 0.0
        %1359 = vmatprep.subr.mxu0 0.0
        %1360 = vmatpush1.msra.mxu0 0.0
        %1361 = vmatprep.subr.mxu0 0.0
        %1362 = vmatpush1.msra.mxu0 0.0
        %1363 = vmatprep.subr.mxu0 0.0
        %1364 = vmatpush1.msra.mxu0 0.0
        %1365 = vmatprep.subr.mxu0 0.0
        %1366 = vmatpush1.msra.mxu0 0.0
        %1367 = vmatprep.subr.mxu0 0.0
        %1368 = vmatpush1.msra.mxu0 0.0
        %1369 = vmatprep.subr.mxu0 0.0
        %1370 = vmatpush1.msra.mxu0 0.0
        %1371 = vmatprep.subr.mxu0 0.0
        %1372 = vmatpush1.msra.mxu0 0.0
        %1373 = vmatprep.subr.mxu0 0.0
        %1374 = vmatpush1.msra.mxu0 0.0
        %1375 = vmatprep.subr.mxu0 0.0
        %1376 = vmatpush1.msra.mxu0 0.0
        %1377 = vmatprep.subr.mxu0 0.0
        %1378 = vmatpush1.msra.mxu0 0.0
        %1379 = vmatprep.subr.mxu0 0.0
        %1380 = vmatpush1.msra.mxu0 0.0
        %1381 = vmatprep.subr.mxu0 0.0
        %1382 = vmatpush1.msra.mxu0 0.0
        %1383 = vmatprep.subr.mxu0 0.0
        %1384 = vmatpush1.msra.mxu0 0.0
        %1385 = vmatprep.subr.mxu0 0.0
        %1386 = vmatpush1.msra.mxu0 0.0
        %1387 = vmatprep.subr.mxu0 0.0
        %1388 = vmatpush1.msra.mxu0 0.0
        %1389 = vmatprep.subr.mxu0 0.0
        %1390 = vmatpush1.msra.mxu0 0.0
        %1391 = vmatprep.subr.mxu0 0.0
        %1392 = vmatpush1.msra.mxu0 0.0
        %1393 = vmatprep.subr.mxu0 0.0
        %1394 = vmatpush1.msra.mxu0 0.0
        %1395 = vmatprep.subr.mxu0 0.0
        %1396 = vmatpush1.msra.mxu0 0.0
        %1397 = vmatprep.mubr.f32.mxu0 0.0
        %1398 = vmatmul.mubr.f32.gmra.mrb[0].mxu0 %v1331
        %v1399 = vpop.f32.mrb[0].mxu0
        %v1400 = vadd.f32 0.0, %v1399
        %v1401 = vpop.f32.mrb[0].mxu0
        %1402 = vdwg.mxu0
        %v1403 = vld [vmem:[%s15] sm:$0x1]
        %v1404 = vlaneseq
        %v1405 = vshrl.u32 %v1404, 7
        %v1406 = vadd.s32 %v1405, 8
        %v1407 = vlaneseq
        %v1408 = vshrl.u32 %v1407, 7
        %v1409 = vsub.s32 0, %v1408
        %v1410 = vrot.slane %v1403, %v1409
        %vm1411 = vcmp.eq.s32.totalorder %v1410, %v1405
        %vm1412 = vcmp.eq.s32.totalorder %v1410, %v1406
        %v1414 = vcombine.high %v1400, %v1400
        %v1416 = vunpack.c.l.s4 1966171168
        %v1417 = vunpack.c.0.s8 %v1416
        %v1418 = vlaneseq
        %v1419 = vshrl.u32 %v1418, 7
        %v1420 = vsub.s32 %v1417, %v1419
        %v1421 = vrot.slane %v1400, %v1420
        %v1423 = vunpack.c.l.s4 1966171168
        %v1424 = vunpack.c.0.s8 %v1423
        %v1425 = vlaneseq
        %v1426 = vshrl.u32 %v1425, 7
        %v1427 = vsub.s32 %v1424, %v1426
        %v1428 = vrot.slane %v1414, %v1427
        %v1429 = vcombine.high %v1421, %v1421
        %v1430 = vcombine.high %v1428, %v1428
        %v1432 = vunpack.c.l.s4 1966171168
        %v1433 = vunpack.c.0.s8 %v1432
        %v1434 = vlaneseq
        %v1435 = vshrl.u32 %v1434, 7
        %v1436 = vsub.s32 %v1433, %v1435
        %v1437 = vrot.slane %v1421, %v1436
        %v1439 = vunpack.c.l.s4 1966171168
        %v1440 = vunpack.c.0.s8 %v1439
        %v1441 = vlaneseq
        %v1442 = vshrl.u32 %v1441, 7
        %v1443 = vsub.s32 %v1440, %v1442
        %v1444 = vrot.slane %v1428, %v1443
        %v1446 = vunpack.c.l.s4 1966171168
        %v1447 = vunpack.c.0.s8 %v1446
        %v1448 = vlaneseq
        %v1449 = vshrl.u32 %v1448, 7
        %v1450 = vsub.s32 %v1447, %v1449
        %v1451 = vrot.slane %v1429, %v1450
        %v1453 = vunpack.c.l.s4 1966171168
        %v1454 = vunpack.c.0.s8 %v1453
        %v1455 = vlaneseq
        %v1456 = vshrl.u32 %v1455, 7
        %v1457 = vsub.s32 %v1454, %v1456
        %v1458 = vrot.slane %v1430, %v1457
        %v1459 = vcombine.high %v1437, %v1437
        %v1460 = vcombine.high %v1444, %v1444
        %v1461 = vcombine.high %v1451, %v1451
        %v1462 = vcombine.high %v1458, %v1458
        %v1463 = vsel %vm1411, 1, 0
        %v1464 = vsel %vm1412, 1, 0
        %vm1465 = vcmp.eq.s32.totalorder %v1463, 1
        %vm1466 = vcmp.eq.s32.totalorder %v1464, 1
        %v1467 = vlaneseq
        %v1468 = vshrl.u32 %v1467, 7
        %v1469 = vsub.s32 0, %v1468
        %v1470 = vrot.slane %v1437, %v1469
        %v1471 = vlaneseq
        %v1472 = vshrl.u32 %v1471, 7
        %v1473 = vsub.s32 0, %v1472
        %v1474 = vrot.slane %v1451, %v1473
        %v1475 = vlaneseq
        %v1476 = vshrl.u32 %v1475, 7
        %v1477 = vsub.s32 0, %v1476
        %v1478 = vrot.slane %v1459, %v1477
        %v1479 = vlaneseq
        %v1480 = vshrl.u32 %v1479, 7
        %v1481 = vsub.s32 0, %v1480
        %v1482 = vrot.slane %v1461, %v1481
        %v1483 = vlaneseq
        %v1484 = vshrl.u32 %v1483, 7
        %v1485 = vsub.s32 0, %v1484
        %v1486 = vrot.slane %v1444, %v1485
        %v1487 = vlaneseq
        %v1488 = vshrl.u32 %v1487, 7
        %v1489 = vsub.s32 0, %v1488
        %v1490 = vrot.slane %v1458, %v1489
        %v1491 = vlaneseq
        %v1492 = vshrl.u32 %v1491, 7
        %v1493 = vsub.s32 0, %v1492
        %v1494 = vrot.slane %v1460, %v1493
        %v1495 = vlaneseq
        %v1496 = vshrl.u32 %v1495, 7
        %v1497 = vsub.s32 0, %v1496
        %v1498 = vrot.slane %v1462, %v1497
        %v1507 = vsel %vm1465, %v1470, -1e+30
        %v1508 = vsel %vm1466, %v1470, -1e+30
        %v1509 = vsel %vm1465, %v1474, -1e+30
        %v1510 = vsel %vm1466, %v1474, -1e+30
        %v1511 = vsel %vm1465, %v1478, -1e+30
        %v1512 = vsel %vm1466, %v1478, -1e+30
        %v1513 = vsel %vm1465, %v1482, -1e+30
        %v1514 = vsel %vm1466, %v1482, -1e+30
        %v1515 = vsel %vm1465, %v1486, -1e+30
        %v1516 = vsel %vm1466, %v1486, -1e+30
        %v1517 = vsel %vm1465, %v1490, -1e+30
        %v1518 = vsel %vm1466, %v1490, -1e+30
        %v1519 = vsel %vm1465, %v1494, -1e+30
        %v1520 = vsel %vm1466, %v1494, -1e+30
        %v1521 = vsel %vm1465, %v1498, -1e+30
        %v1522 = vsel %vm1466, %v1498, -1e+30
        %1523 = vmax.xlane.f32.xlu0 %v1507
        %v1524 = vpop.xlane.xlu0 %1523
        %1525 = vmax.xlane.f32.xlu0 %v1508
        %v1526 = vpop.xlane.xlu0 %1525
        %1527 = vmax.xlane.f32.xlu0 %v1509
        %v1528 = vpop.xlane.xlu0 %1527
        %1529 = vmax.xlane.f32.xlu0 %v1510
        %v1530 = vpop.xlane.xlu0 %1529
        %1531 = vmax.xlane.f32.xlu0 %v1511
        %v1532 = vpop.xlane.xlu0 %1531
        %1533 = vmax.xlane.f32.xlu0 %v1512
        %v1534 = vpop.xlane.xlu0 %1533
        %1535 = vmax.xlane.f32.xlu0 %v1513
        %v1536 = vpop.xlane.xlu0 %1535
        %1537 = vmax.xlane.f32.xlu0 %v1514
        %v1538 = vpop.xlane.xlu0 %1537
        %1539 = vmax.xlane.f32.xlu0 %v1515
        %v1540 = vpop.xlane.xlu0 %1539
        %1541 = vmax.xlane.f32.xlu0 %v1516
        %v1542 = vpop.xlane.xlu0 %1541
        %1543 = vmax.xlane.f32.xlu0 %v1517
        %v1544 = vpop.xlane.xlu0 %1543
        %1545 = vmax.xlane.f32.xlu0 %v1518
        %v1546 = vpop.xlane.xlu0 %1545
        %1547 = vmax.xlane.f32.xlu0 %v1519
        %v1548 = vpop.xlane.xlu0 %1547
        %1549 = vmax.xlane.f32.xlu0 %v1520
        %v1550 = vpop.xlane.xlu0 %1549
        %1551 = vmax.xlane.f32.xlu0 %v1521
        %v1552 = vpop.xlane.xlu0 %1551
        %1553 = vmax.xlane.f32.xlu0 %v1522
        %v1554 = vpop.xlane.xlu0 %1553
        %1555 = vst [vmem:[%s781] sm:$0xff] %v1072
        %1556 = vst [vmem:[%s788] sm:$0xff] %v1400
        %v1573 = vlaneseq
        %v1574 = vand.u32 %v1573, 127
        %v1575 = vlaneseq
        %v1576 = vshrl.u32 %v1575, 7
        %v1577 = vsub.s32 %v1574, %v1576
        %v1578 = vrot.slane %v1524, %v1577
        %v1579 = vadd.s32 %v1574, 4294967288
        %v1580 = vlaneseq
        %v1581 = vshrl.u32 %v1580, 7
        %v1582 = vsub.s32 %v1579, %v1581
        %v1583 = vrot.slane %v1526, %v1582
        %vm1584 = vcmask 130112
        %v1585 = vsel %vm1584, %v1583, %v1578
        %v1586 = vlaneseq
        %v1587 = vshrl.u32 %v1586, 7
        %v1588 = vsub.s32 %v1574, %v1587
        %v1589 = vrot.slane %v1528, %v1588
        %v1590 = vlaneseq
        %v1591 = vshrl.u32 %v1590, 7
        %v1592 = vsub.s32 %v1579, %v1591
        %v1593 = vrot.slane %v1530, %v1592
        %v1594 = vsel %vm1584, %v1593, %v1589
        %v1595 = vlaneseq
        %v1596 = vshrl.u32 %v1595, 7
        %v1597 = vsub.s32 %v1574, %v1596
        %v1598 = vrot.slane %v1532, %v1597
        %v1599 = vlaneseq
        %v1600 = vshrl.u32 %v1599, 7
        %v1601 = vsub.s32 %v1579, %v1600
        %v1602 = vrot.slane %v1534, %v1601
        %v1603 = vsel %vm1584, %v1602, %v1598
        %v1604 = vlaneseq
        %v1605 = vshrl.u32 %v1604, 7
        %v1606 = vsub.s32 %v1574, %v1605
        %v1607 = vrot.slane %v1536, %v1606
        %v1608 = vlaneseq
        %v1609 = vshrl.u32 %v1608, 7
        %v1610 = vsub.s32 %v1579, %v1609
        %v1611 = vrot.slane %v1538, %v1610
        %v1612 = vsel %vm1584, %v1611, %v1607
        %v1613 = vlaneseq
        %v1614 = vshrl.u32 %v1613, 7
        %v1615 = vsub.s32 %v1574, %v1614
        %v1616 = vrot.slane %v1540, %v1615
        %v1617 = vlaneseq
        %v1618 = vshrl.u32 %v1617, 7
        %v1619 = vsub.s32 %v1579, %v1618
        %v1620 = vrot.slane %v1542, %v1619
        %v1621 = vsel %vm1584, %v1620, %v1616
        %v1622 = vlaneseq
        %v1623 = vshrl.u32 %v1622, 7
        %v1624 = vsub.s32 %v1574, %v1623
        %v1625 = vrot.slane %v1544, %v1624
        %v1626 = vlaneseq
        %v1627 = vshrl.u32 %v1626, 7
        %v1628 = vsub.s32 %v1579, %v1627
        %v1629 = vrot.slane %v1546, %v1628
        %v1630 = vsel %vm1584, %v1629, %v1625
        %v1631 = vlaneseq
        %v1632 = vshrl.u32 %v1631, 7
        %v1633 = vsub.s32 %v1574, %v1632
        %v1634 = vrot.slane %v1548, %v1633
        %v1635 = vlaneseq
        %v1636 = vshrl.u32 %v1635, 7
        %v1637 = vsub.s32 %v1579, %v1636
        %v1638 = vrot.slane %v1550, %v1637
        %v1639 = vsel %vm1584, %v1638, %v1634
        %v1640 = vlaneseq
        %v1641 = vshrl.u32 %v1640, 7
        %v1642 = vsub.s32 %v1574, %v1641
        %v1643 = vrot.slane %v1552, %v1642
        %v1644 = vlaneseq
        %v1645 = vshrl.u32 %v1644, 7
        %v1646 = vsub.s32 %v1579, %v1645
        %v1647 = vrot.slane %v1554, %v1646
        %v1648 = vsel %vm1584, %v1647, %v1643
        %vm1649 = vcmask 1041409
        %v1650 = vsel %vm1649, %v1594, %v1585
        %vm1651 = vcmask 1042434
        %v1652 = vsel %vm1651, %v1603, %v1650
        %vm1653 = vcmask 1043459
        %v1654 = vsel %vm1653, %v1612, %v1652
        %vm1655 = vcmask 1044484
        %v1656 = vsel %vm1655, %v1621, %v1654
        %vm1657 = vcmask 1045509
        %v1658 = vsel %vm1657, %v1630, %v1656
        %vm1659 = vcmask 1046534
        %v1660 = vsel %vm1659, %v1639, %v1658
        %vm1661 = vcmask 1047559
        %v1662 = vsel %vm1661, %v1648, %v1660
        %vm1664 = vcmask 130048
        %v1665 = vsel %vm1664, %v1662, 0.0
        %1666 = vadd.xlane.f32.xlu0 %v1665
        %v1667 = vpop.xlane.xlu0 %1666
        %vm1668 = vcmp.eq.f32.partialorder %v1667, 16.0
        %v1669 = vsel %vm1668, 1, 0
        %vm1670 = vcmp.eq.s32.totalorder %v1669, 1
        %v1671 = vsel %vm1670, 0.0, %v1662
        %v1672 = vld [vmem:[%s797] sm:$0xff]
        %v1673 = vld [vmem:[%s797 + $0x8] sm:$0xff]
        %v1674 = vld [vmem:[%s797 + $0x10] sm:$0xff]
        %v1675 = vld [vmem:[%s797 + $0x18] sm:$0xff]
        %v1676 = vld [vmem:[%s797 + $0x20] sm:$0xff]
        %v1677 = vld [vmem:[%s797 + $0x28] sm:$0xff]
        %v1678 = vld [vmem:[%s797 + $0x30] sm:$0xff]
        %v1679 = vld [vmem:[%s797 + $0x38] sm:$0xff]
        %v1680 = vld [vmem:[%s797 + $0x40] sm:$0xff]
        %v1681 = vld [vmem:[%s797 + $0x48] sm:$0xff]
        %v1682 = vld [vmem:[%s797 + $0x50] sm:$0xff]
        %v1683 = vld [vmem:[%s797 + $0x58] sm:$0xff]
        %v1684 = vld [vmem:[%s797 + $0x60] sm:$0xff]
        %v1685 = vld [vmem:[%s797 + $0x68] sm:$0xff]
        %v1686 = vld [vmem:[%s797 + $0x70] sm:$0xff]
        %v1687 = vld [vmem:[%s797 + $0x78] sm:$0xff]
        %v1688 = vld [vmem:[%s797 + $0x80] sm:$0xff]
        %v1689 = vld [vmem:[%s797 + $0x88] sm:$0xff]
        %v1690 = vld [vmem:[%s797 + $0x90] sm:$0xff]
        %v1691 = vld [vmem:[%s797 + $0x98] sm:$0xff]
        %v1692 = vld [vmem:[%s797 + $0xa0] sm:$0xff]
        %v1693 = vld [vmem:[%s797 + $0xa8] sm:$0xff]
        %v1694 = vld [vmem:[%s797 + $0xb0] sm:$0xff]
        %v1695 = vld [vmem:[%s797 + $0xb8] sm:$0xff]
        %v1696 = vld [vmem:[%s797 + $0xc0] sm:$0xff]
        %v1697 = vld [vmem:[%s797 + $0xc8] sm:$0xff]
        %v1698 = vld [vmem:[%s797 + $0xd0] sm:$0xff]
        %v1699 = vld [vmem:[%s797 + $0xd8] sm:$0xff]
        %v1700 = vld [vmem:[%s797 + $0xe0] sm:$0xff]
        %v1701 = vld [vmem:[%s797 + $0xe8] sm:$0xff]
        %v1702 = vld [vmem:[%s797 + $0xf0] sm:$0xff]
        %v1703 = vld [vmem:[%s797 + $0xf8] sm:$0xff]
        %v1704 = vld [vmem:[%s802] sm:$0xff]
        %v1705 = vld [vmem:[%s802 + $0x8] sm:$0x7f]
        %v1706 = vld [vmem:[%s4] sm:$0xff]
        %v1707 = vld [vmem:[#allocation2] sm:$0xff]
        %v1708 = vld [vmem:[#allocation2 + $0x8] sm:$0xff]
        %v1709 = vadd.f32 %v964, %v1706
        %v1710 = vlaneseq
        %v1711 = vshrl.u32 %v1710, 7
        %v1712 = vsub.s32 0, %v1711
        %v1713 = vrot.slane %v1704, %v1712
        %v1715 = vsel %vm966, %v1709, 0
        %1717 = vmatprep.subr.mxu0 0.0
        %1718 = vmatpush1.msra.mxu0 %v1672
        %1719 = vmatprep.subr.mxu0 0.0
        %1720 = vmatpush1.msra.mxu0 %v1673
        %1721 = vmatprep.subr.mxu0 0.0
        %1722 = vmatpush1.msra.mxu0 %v1674
        %1723 = vmatprep.subr.mxu0 0.0
        %1724 = vmatpush1.msra.mxu0 %v1675
        %1725 = vmatprep.subr.mxu0 0.0
        %1726 = vmatpush1.msra.mxu0 0.0
        %1727 = vmatprep.subr.mxu0 0.0
        %1728 = vmatpush1.msra.mxu0 0.0
        %1729 = vmatprep.subr.mxu0 0.0
        %1730 = vmatpush1.msra.mxu0 0.0
        %1731 = vmatprep.subr.mxu0 0.0
        %1732 = vmatpush1.msra.mxu0 0.0
        %1733 = vmatprep.subr.mxu0 0.0
        %1734 = vmatpush1.msra.mxu0 0.0
        %1735 = vmatprep.subr.mxu0 0.0
        %1736 = vmatpush1.msra.mxu0 0.0
        %1737 = vmatprep.subr.mxu0 0.0
        %1738 = vmatpush1.msra.mxu0 0.0
        %1739 = vmatprep.subr.mxu0 0.0
        %1740 = vmatpush1.msra.mxu0 0.0
        %1741 = vmatprep.subr.mxu0 0.0
        %1742 = vmatpush1.msra.mxu0 0.0
        %1743 = vmatprep.subr.mxu0 0.0
        %1744 = vmatpush1.msra.mxu0 0.0
        %1745 = vmatprep.subr.mxu0 0.0
        %1746 = vmatpush1.msra.mxu0 0.0
        %1747 = vmatprep.subr.mxu0 0.0
        %1748 = vmatpush1.msra.mxu0 0.0
        %1749 = vmatprep.subr.mxu0 0.0
        %1750 = vmatpush1.msra.mxu0 0.0
        %1751 = vmatprep.subr.mxu0 0.0
        %1752 = vmatpush1.msra.mxu0 0.0
        %1753 = vmatprep.subr.mxu0 0.0
        %1754 = vmatpush1.msra.mxu0 0.0
        %1755 = vmatprep.subr.mxu0 0.0
        %1756 = vmatpush1.msra.mxu0 0.0
        %1757 = vmatprep.subr.mxu0 0.0
        %1758 = vmatpush1.msra.mxu0 0.0
        %1759 = vmatprep.subr.mxu0 0.0
        %1760 = vmatpush1.msra.mxu0 0.0
        %1761 = vmatprep.subr.mxu0 0.0
        %1762 = vmatpush1.msra.mxu0 0.0
        %1763 = vmatprep.subr.mxu0 0.0
        %1764 = vmatpush1.msra.mxu0 0.0
        %1765 = vmatprep.subr.mxu0 0.0
        %1766 = vmatpush1.msra.mxu0 0.0
        %1767 = vmatprep.subr.mxu0 0.0
        %1768 = vmatpush1.msra.mxu0 0.0
        %1769 = vmatprep.subr.mxu0 0.0
        %1770 = vmatpush1.msra.mxu0 0.0
        %1771 = vmatprep.subr.mxu0 0.0
        %1772 = vmatpush1.msra.mxu0 0.0
        %1773 = vmatprep.subr.mxu0 0.0
        %1774 = vmatpush1.msra.mxu0 0.0
        %1775 = vmatprep.subr.mxu0 0.0
        %1776 = vmatpush1.msra.mxu0 0.0
        %1777 = vmatprep.subr.mxu0 0.0
        %1778 = vmatpush1.msra.mxu0 0.0
        %1779 = vmatprep.subr.mxu0 0.0
        %1780 = vmatpush1.msra.mxu0 0.0
        %1781 = vmatprep.mubr.f32.mxu0 0.0
        %1782 = vmatmul.mubr.f32.gmra.mrb[0].mxu0 %v1715
        %v1783 = vpop.f32.mrb[0].mxu0
        %v1784 = vadd.f32 %v1713, %v1783
        %v1785 = vpop.f32.mrb[0].mxu0
        %1786 = vdwg.mxu0
        %v1787 = vlaneseq
        %v1788 = vshrl.u32 %v1787, 7
        %v1789 = vsub.s32 1, %v1788
        %v1790 = vrot.slane %v1704, %v1789
        %v1792 = vsel %vm966, %v1707, 0
        %v1795 = vsel %vm966, %v1708, 0
        %1797 = vmatprep.subr.mxu0 0.0
        %1798 = vmatpush1.msra.mxu0 %v1676
        %1799 = vmatprep.subr.mxu0 0.0
        %1800 = vmatpush1.msra.mxu0 %v1677
        %1801 = vmatprep.subr.mxu0 0.0
        %1802 = vmatpush1.msra.mxu0 %v1678
        %1803 = vmatprep.subr.mxu0 0.0
        %1804 = vmatpush1.msra.mxu0 %v1679
        %1805 = vmatprep.subr.mxu0 0.0
        %1806 = vmatpush1.msra.mxu0 0.0
        %1807 = vmatprep.subr.mxu0 0.0
        %1808 = vmatpush1.msra.mxu0 0.0
        %1809 = vmatprep.subr.mxu0 0.0
        %1810 = vmatpush1.msra.mxu0 0.0
        %1811 = vmatprep.subr.mxu0 0.0
        %1812 = vmatpush1.msra.mxu0 0.0
        %1813 = vmatprep.subr.mxu0 0.0
        %1814 = vmatpush1.msra.mxu0 0.0
        %1815 = vmatprep.subr.mxu0 0.0
        %1816 = vmatpush1.msra.mxu0 0.0
        %1817 = vmatprep.subr.mxu0 0.0
        %1818 = vmatpush1.msra.mxu0 0.0
        %1819 = vmatprep.subr.mxu0 0.0
        %1820 = vmatpush1.msra.mxu0 0.0
        %1821 = vmatprep.subr.mxu0 0.0
        %1822 = vmatpush1.msra.mxu0 0.0
        %1823 = vmatprep.subr.mxu0 0.0
        %1824 = vmatpush1.msra.mxu0 0.0
        %1825 = vmatprep.subr.mxu0 0.0
        %1826 = vmatpush1.msra.mxu0 0.0
        %1827 = vmatprep.subr.mxu0 0.0
        %1828 = vmatpush1.msra.mxu0 0.0
        %1829 = vmatprep.subr.mxu0 0.0
        %1830 = vmatpush1.msra.mxu0 0.0
        %1831 = vmatprep.subr.mxu0 0.0
        %1832 = vmatpush1.msra.mxu0 0.0
        %1833 = vmatprep.subr.mxu0 0.0
        %1834 = vmatpush1.msra.mxu0 0.0
        %1835 = vmatprep.subr.mxu0 0.0
        %1836 = vmatpush1.msra.mxu0 0.0
        %1837 = vmatprep.subr.mxu0 0.0
        %1838 = vmatpush1.msra.mxu0 0.0
        %1839 = vmatprep.subr.mxu0 0.0
        %1840 = vmatpush1.msra.mxu0 0.0
        %1841 = vmatprep.subr.mxu0 0.0
        %1842 = vmatpush1.msra.mxu0 0.0
        %1843 = vmatprep.subr.mxu0 0.0
        %1844 = vmatpush1.msra.mxu0 0.0
        %1845 = vmatprep.subr.mxu0 0.0
        %1846 = vmatpush1.msra.mxu0 0.0
        %1847 = vmatprep.subr.mxu0 0.0
        %1848 = vmatpush1.msra.mxu0 0.0
        %1849 = vmatprep.subr.mxu0 0.0
        %1850 = vmatpush1.msra.mxu0 0.0
        %1851 = vmatprep.subr.mxu0 0.0
        %1852 = vmatpush1.msra.mxu0 0.0
        %1853 = vmatprep.subr.mxu0 0.0
        %1854 = vmatpush1.msra.mxu0 0.0
        %1855 = vmatprep.subr.mxu0 0.0
        %1856 = vmatpush1.msra.mxu0 0.0
        %1857 = vmatprep.subr.mxu0 0.0
        %1858 = vmatpush1.msra.mxu0 0.0
        %1859 = vmatprep.subr.mxu0 0.0
        %1860 = vmatpush1.msra.mxu0 0.0
        %1861 = vmatprep.mubr.f32.mxu0 0.0
        %1862 = vmatmul.mubr.f32.gmra.mrb[0].mxu0 %v1792
        %v1863 = vpop.f32.mrb[0].mxu0
        %v1864 = vadd.f32 %v1790, %v1863
        %v1865 = vpop.f32.mrb[0].mxu0
        %1866 = vmatprep.mubr.f32.mxu0 0.0
        %1867 = vmatmul.mubr.f32.gmra.mrb[0].mxu0 %v1795
        %v1868 = vpop.f32.mrb[0].mxu0
        %v1869 = vadd.f32 %v1790, %v1868
        %v1870 = vpop.f32.mrb[0].mxu0
        %1871 = vdwg.mxu0
        %v1872 = vlaneseq
        %v1873 = vshrl.u32 %v1872, 7
        %v1874 = vsub.s32 2, %v1873
        %v1875 = vrot.slane %v1704, %v1874
        %1876 = vmatprep.subr.mxu0 0.0
        %1877 = vmatpush1.msra.mxu0 %v1680
        %1878 = vmatprep.subr.mxu0 0.0
        %1879 = vmatpush1.msra.mxu0 %v1681
        %1880 = vmatprep.subr.mxu0 0.0
        %1881 = vmatpush1.msra.mxu0 %v1682
        %1882 = vmatprep.subr.mxu0 0.0
        %1883 = vmatpush1.msra.mxu0 %v1683
        %1884 = vmatprep.subr.mxu0 0.0
        %1885 = vmatpush1.msra.mxu0 0.0
        %1886 = vmatprep.subr.mxu0 0.0
        %1887 = vmatpush1.msra.mxu0 0.0
        %1888 = vmatprep.subr.mxu0 0.0
        %1889 = vmatpush1.msra.mxu0 0.0
        %1890 = vmatprep.subr.mxu0 0.0
        %1891 = vmatpush1.msra.mxu0 0.0
        %1892 = vmatprep.subr.mxu0 0.0
        %1893 = vmatpush1.msra.mxu0 0.0
        %1894 = vmatprep.subr.mxu0 0.0
        %1895 = vmatpush1.msra.mxu0 0.0
        %1896 = vmatprep.subr.mxu0 0.0
        %1897 = vmatpush1.msra.mxu0 0.0
        %1898 = vmatprep.subr.mxu0 0.0
        %1899 = vmatpush1.msra.mxu0 0.0
        %1900 = vmatprep.subr.mxu0 0.0
        %1901 = vmatpush1.msra.mxu0 0.0
        %1902 = vmatprep.subr.mxu0 0.0
        %1903 = vmatpush1.msra.mxu0 0.0
        %1904 = vmatprep.subr.mxu0 0.0
        %1905 = vmatpush1.msra.mxu0 0.0
        %1906 = vmatprep.subr.mxu0 0.0
        %1907 = vmatpush1.msra.mxu0 0.0
        %1908 = vmatprep.subr.mxu0 0.0
        %1909 = vmatpush1.msra.mxu0 0.0
        %1910 = vmatprep.subr.mxu0 0.0
        %1911 = vmatpush1.msra.mxu0 0.0
        %1912 = vmatprep.subr.mxu0 0.0
        %1913 = vmatpush1.msra.mxu0 0.0
        %1914 = vmatprep.subr.mxu0 0.0
        %1915 = vmatpush1.msra.mxu0 0.0
        %1916 = vmatprep.subr.mxu0 0.0
        %1917 = vmatpush1.msra.mxu0 0.0
        %1918 = vmatprep.subr.mxu0 0.0
        %1919 = vmatpush1.msra.mxu0 0.0
        %1920 = vmatprep.subr.mxu0 0.0
        %1921 = vmatpush1.msra.mxu0 0.0
        %1922 = vmatprep.subr.mxu0 0.0
        %1923 = vmatpush1.msra.mxu0 0.0
        %1924 = vmatprep.subr.mxu0 0.0
        %1925 = vmatpush1.msra.mxu0 0.0
        %1926 = vmatprep.subr.mxu0 0.0
        %1927 = vmatpush1.msra.mxu0 0.0
        %1928 = vmatprep.subr.mxu0 0.0
        %1929 = vmatpush1.msra.mxu0 0.0
        %1930 = vmatprep.subr.mxu0 0.0
        %1931 = vmatpush1.msra.mxu0 0.0
        %1932 = vmatprep.subr.mxu0 0.0
        %1933 = vmatpush1.msra.mxu0 0.0
        %1934 = vmatprep.subr.mxu0 0.0
        %1935 = vmatpush1.msra.mxu0 0.0
        %1936 = vmatprep.subr.mxu0 0.0
        %1937 = vmatpush1.msra.mxu0 0.0
        %1938 = vmatprep.subr.mxu0 0.0
        %1939 = vmatpush1.msra.mxu0 0.0
        %1940 = vmatprep.mubr.f32.mxu0 0.0
        %1941 = vmatmul.mubr.f32.gmra.mrb[0].mxu0 %v1792
        %v1942 = vpop.f32.mrb[0].mxu0
        %v1943 = vadd.f32 %v1875, %v1942
        %v1944 = vpop.f32.mrb[0].mxu0
        %1945 = vmatprep.mubr.f32.mxu0 0.0
        %1946 = vmatmul.mubr.f32.gmra.mrb[0].mxu0 %v1795
        %v1947 = vpop.f32.mrb[0].mxu0
        %v1948 = vadd.f32 %v1875, %v1947
        %v1949 = vpop.f32.mrb[0].mxu0
        %1950 = vdwg.mxu0
        %vm1951 = vcmask 64512
        %v1953 = vsel %vm1951, %v1784, 0
        %v1956 = vsel %vm1951, %v1864, 0
        %v1959 = vsel %vm1951, %v1869, 0
        %1961 = vmatprep.subr.mxu0 0.0
        %1962 = vmatpush1.xpose.msra.mxu0 %v1956
        %1963 = vmatprep.subr.mxu0 0.0
        %1964 = vmatpush1.xpose.msra.mxu0 %v1959
        %1965 = vmatprep.subr.mxu0 0.0
        %1966 = vmatpush1.xpose.msra.mxu0 0.0
        %1967 = vmatprep.subr.mxu0 0.0
        %1968 = vmatpush1.xpose.msra.mxu0 0.0
        %1969 = vmatprep.subr.mxu0 0.0
        %1970 = vmatpush1.xpose.msra.mxu0 0.0
        %1971 = vmatprep.subr.mxu0 0.0
        %1972 = vmatpush1.xpose.msra.mxu0 0.0
        %1973 = vmatprep.subr.mxu0 0.0
        %1974 = vmatpush1.xpose.msra.mxu0 0.0
        %1975 = vmatprep.subr.mxu0 0.0
        %1976 = vmatpush1.xpose.msra.mxu0 0.0
        %1977 = vmatprep.subr.mxu0 0.0
        %1978 = vmatpush1.xpose.msra.mxu0 0.0
        %1979 = vmatprep.subr.mxu0 0.0
        %1980 = vmatpush1.xpose.msra.mxu0 0.0
        %1981 = vmatprep.subr.mxu0 0.0
        %1982 = vmatpush1.xpose.msra.mxu0 0.0
        %1983 = vmatprep.subr.mxu0 0.0
        %1984 = vmatpush1.xpose.msra.mxu0 0.0
        %1985 = vmatprep.subr.mxu0 0.0
        %1986 = vmatpush1.xpose.msra.mxu0 0.0
        %1987 = vmatprep.subr.mxu0 0.0
        %1988 = vmatpush1.xpose.msra.mxu0 0.0
        %1989 = vmatprep.subr.mxu0 0.0
        %1990 = vmatpush1.xpose.msra.mxu0 0.0
        %1991 = vmatprep.subr.mxu0 0.0
        %1992 = vmatpush1.xpose.msra.mxu0 0.0
        %1993 = vmatprep.subr.mxu0 0.0
        %1994 = vmatpush1.xpose.msra.mxu0 0.0
        %1995 = vmatprep.subr.mxu0 0.0
        %1996 = vmatpush1.xpose.msra.mxu0 0.0
        %1997 = vmatprep.subr.mxu0 0.0
        %1998 = vmatpush1.xpose.msra.mxu0 0.0
        %1999 = vmatprep.subr.mxu0 0.0
        %2000 = vmatpush1.xpose.msra.mxu0 0.0
        %2001 = vmatprep.subr.mxu0 0.0
        %2002 = vmatpush1.xpose.msra.mxu0 0.0
        %2003 = vmatprep.subr.mxu0 0.0
        %2004 = vmatpush1.xpose.msra.mxu0 0.0
        %2005 = vmatprep.subr.mxu0 0.0
        %2006 = vmatpush1.xpose.msra.mxu0 0.0
        %2007 = vmatprep.subr.mxu0 0.0
        %2008 = vmatpush1.xpose.msra.mxu0 0.0
        %2009 = vmatprep.subr.mxu0 0.0
        %2010 = vmatpush1.xpose.msra.mxu0 0.0
        %2011 = vmatprep.subr.mxu0 0.0
        %2012 = vmatpush1.xpose.msra.mxu0 0.0
        %2013 = vmatprep.subr.mxu0 0.0
        %2014 = vmatpush1.xpose.msra.mxu0 0.0
        %2015 = vmatprep.subr.mxu0 0.0
        %2016 = vmatpush1.xpose.msra.mxu0 0.0
        %2017 = vmatprep.subr.mxu0 0.0
        %2018 = vmatpush1.xpose.msra.mxu0 0.0
        %2019 = vmatprep.subr.mxu0 0.0
        %2020 = vmatpush1.xpose.msra.mxu0 0.0
        %2021 = vmatprep.subr.mxu0 0.0
        %2022 = vmatpush1.xpose.msra.mxu0 0.0
        %2023 = vmatprep.subr.mxu0 0.0
        %2024 = vmatpush1.xpose.msra.mxu0 0.0
        %2025 = vmatprep.mubr.f32.mxu0 0.0
        %2026 = vmatmul.mubr.f32.gmra.mrb[0].mxu0 %v1953
        %v2027 = vpop.f32.mrb[0].mxu0
        %v2028 = vadd.f32 0.0, %v2027
        %v2029 = vpop.f32.mrb[0].mxu0
        %2030 = vdwg.mxu0
        %v2031 = vmul.f32 %v2028, 0.35355338
        %v2032 = vadd.f32 %v2031, %v1671
        %v2033 = vsel %vm1664, %v2032, -inf
        %2034 = vmax.xlane.f32.xlu0 %v2033
        %v2035 = vpop.xlane.xlu0 %2034
        %v2036 = vsub.f32 %v2032, %v2035
        %v2037 = vmul.f32 %v2036, 1.442695
        %v2038 = vpow.pop %v2037
        %v2039 = vsel %vm1664, %v2038, 0.0
        %2040 = vadd.xlane.f32.xlu0 %v2039
        %v2041 = vpop.xlane.xlu0 %2040
        %v2042 = vrcp.pop %v2041
        %v2043 = vmul.f32 %v2038, %v2042
        %v2045 = vsel %vm1664, %v2043, 0
        %2047 = vmatprep.subr.mxu0 0.0
        %2048 = vmatpush1.msra.mxu0 %v1943
        %2049 = vmatprep.subr.mxu0 0.0
        %2050 = vmatpush1.msra.mxu0 %v1948
        %2051 = vmatprep.subr.mxu0 0.0
        %2052 = vmatpush1.msra.mxu0 0.0
        %2053 = vmatprep.subr.mxu0 0.0
        %2054 = vmatpush1.msra.mxu0 0.0
        %2055 = vmatprep.subr.mxu0 0.0
        %2056 = vmatpush1.msra.mxu0 0.0
        %2057 = vmatprep.subr.mxu0 0.0
        %2058 = vmatpush1.msra.mxu0 0.0
        %2059 = vmatprep.subr.mxu0 0.0
        %2060 = vmatpush1.msra.mxu0 0.0
        %2061 = vmatprep.subr.mxu0 0.0
        %2062 = vmatpush1.msra.mxu0 0.0
        %2063 = vmatprep.subr.mxu0 0.0
        %2064 = vmatpush1.msra.mxu0 0.0
        %2065 = vmatprep.subr.mxu0 0.0
        %2066 = vmatpush1.msra.mxu0 0.0
        %2067 = vmatprep.subr.mxu0 0.0
        %2068 = vmatpush1.msra.mxu0 0.0
        %2069 = vmatprep.subr.mxu0 0.0
        %2070 = vmatpush1.msra.mxu0 0.0
        %2071 = vmatprep.subr.mxu0 0.0
        %2072 = vmatpush1.msra.mxu0 0.0
        %2073 = vmatprep.subr.mxu0 0.0
        %2074 = vmatpush1.msra.mxu0 0.0
        %2075 = vmatprep.subr.mxu0 0.0
        %2076 = vmatpush1.msra.mxu0 0.0
        %2077 = vmatprep.subr.mxu0 0.0
        %2078 = vmatpush1.msra.mxu0 0.0
        %2079 = vmatprep.subr.mxu0 0.0
        %2080 = vmatpush1.msra.mxu0 0.0
        %2081 = vmatprep.subr.mxu0 0.0
        %2082 = vmatpush1.msra.mxu0 0.0
        %2083 = vmatprep.subr.mxu0 0.0
        %2084 = vmatpush1.msra.mxu0 0.0
        %2085 = vmatprep.subr.mxu0 0.0
        %2086 = vmatpush1.msra.mxu0 0.0
        %2087 = vmatprep.subr.mxu0 0.0
        %2088 = vmatpush1.msra.mxu0 0.0
        %2089 = vmatprep.subr.mxu0 0.0
        %2090 = vmatpush1.msra.mxu0 0.0
        %2091 = vmatprep.subr.mxu0 0.0
        %2092 = vmatpush1.msra.mxu0 0.0
        %2093 = vmatprep.subr.mxu0 0.0
        %2094 = vmatpush1.msra.mxu0 0.0
        %2095 = vmatprep.subr.mxu0 0.0
        %2096 = vmatpush1.msra.mxu0 0.0
        %2097 = vmatprep.subr.mxu0 0.0
        %2098 = vmatpush1.msra.mxu0 0.0
        %2099 = vmatprep.subr.mxu0 0.0
        %2100 = vmatpush1.msra.mxu0 0.0
        %2101 = vmatprep.subr.mxu0 0.0
        %2102 = vmatpush1.msra.mxu0 0.0
        %2103 = vmatprep.subr.mxu0 0.0
        %2104 = vmatpush1.msra.mxu0 0.0
        %2105 = vmatprep.subr.mxu0 0.0
        %2106 = vmatpush1.msra.mxu0 0.0
        %2107 = vmatprep.subr.mxu0 0.0
        %2108 = vmatpush1.msra.mxu0 0.0
        %2109 = vmatprep.subr.mxu0 0.0
        %2110 = vmatpush1.msra.mxu0 0.0
        %2111 = vmatprep.mubr.f32.mxu0 0.0
        %2112 = vmatmul.mubr.f32.gmra.mrb[0].mxu0 %v2045
        %v2113 = vpop.f32.mrb[0].mxu0
        %v2114 = vadd.f32 0.0, %v2113
        %v2115 = vpop.f32.mrb[0].mxu0
        %2116 = vdwg.mxu0
        %2117 = vrot.lane.b32.xlu0 %v1784, 120
        %v2118 = vpop.permute.xlu0 %2117
        %2119 = vrot.lane.b32.xlu0 %v1864, 120
        %v2120 = vpop.permute.xlu0 %2119
        %2121 = vrot.lane.b32.xlu0 %v1869, 120
        %v2122 = vpop.permute.xlu0 %2121
        %v2123 = vsel %vm1951, %v2118, 0
        %v2125 = vsel %vm1951, %v2120, 0
        %v2127 = vsel %vm1951, %v2122, 0
        %2129 = vmatprep.subr.mxu0 0.0
        %2130 = vmatpush1.xpose.msra.mxu0 %v2125
        %2131 = vmatprep.subr.mxu0 0.0
        %2132 = vmatpush1.xpose.msra.mxu0 %v2127
        %2133 = vmatprep.subr.mxu0 0.0
        %2134 = vmatpush1.xpose.msra.mxu0 0.0
        %2135 = vmatprep.subr.mxu0 0.0
        %2136 = vmatpush1.xpose.msra.mxu0 0.0
        %2137 = vmatprep.subr.mxu0 0.0
        %2138 = vmatpush1.xpose.msra.mxu0 0.0
        %2139 = vmatprep.subr.mxu0 0.0
        %2140 = vmatpush1.xpose.msra.mxu0 0.0
        %2141 = vmatprep.subr.mxu0 0.0
        %2142 = vmatpush1.xpose.msra.mxu0 0.0
        %2143 = vmatprep.subr.mxu0 0.0
        %2144 = vmatpush1.xpose.msra.mxu0 0.0
        %2145 = vmatprep.subr.mxu0 0.0
        %2146 = vmatpush1.xpose.msra.mxu0 0.0
        %2147 = vmatprep.subr.mxu0 0.0
        %2148 = vmatpush1.xpose.msra.mxu0 0.0
        %2149 = vmatprep.subr.mxu0 0.0
        %2150 = vmatpush1.xpose.msra.mxu0 0.0
        %2151 = vmatprep.subr.mxu0 0.0
        %2152 = vmatpush1.xpose.msra.mxu0 0.0
        %2153 = vmatprep.subr.mxu0 0.0
        %2154 = vmatpush1.xpose.msra.mxu0 0.0
        %2155 = vmatprep.subr.mxu0 0.0
        %2156 = vmatpush1.xpose.msra.mxu0 0.0
        %2157 = vmatprep.subr.mxu0 0.0
        %2158 = vmatpush1.xpose.msra.mxu0 0.0
        %2159 = vmatprep.subr.mxu0 0.0
        %2160 = vmatpush1.xpose.msra.mxu0 0.0
        %2161 = vmatprep.subr.mxu0 0.0
        %2162 = vmatpush1.xpose.msra.mxu0 0.0
        %2163 = vmatprep.subr.mxu0 0.0
        %2164 = vmatpush1.xpose.msra.mxu0 0.0
        %2165 = vmatprep.subr.mxu0 0.0
        %2166 = vmatpush1.xpose.msra.mxu0 0.0
        %2167 = vmatprep.subr.mxu0 0.0
        %2168 = vmatpush1.xpose.msra.mxu0 0.0
        %2169 = vmatprep.subr.mxu0 0.0
        %2170 = vmatpush1.xpose.msra.mxu0 0.0
        %2171 = vmatprep.subr.mxu0 0.0
        %2172 = vmatpush1.xpose.msra.mxu0 0.0
        %2173 = vmatprep.subr.mxu0 0.0
        %2174 = vmatpush1.xpose.msra.mxu0 0.0
        %2175 = vmatprep.subr.mxu0 0.0
        %2176 = vmatpush1.xpose.msra.mxu0 0.0
        %2177 = vmatprep.subr.mxu0 0.0
        %2178 = vmatpush1.xpose.msra.mxu0 0.0
        %2179 = vmatprep.subr.mxu0 0.0
        %2180 = vmatpush1.xpose.msra.mxu0 0.0
        %2181 = vmatprep.subr.mxu0 0.0
        %2182 = vmatpush1.xpose.msra.mxu0 0.0
        %2183 = vmatprep.subr.mxu0 0.0
        %2184 = vmatpush1.xpose.msra.mxu0 0.0
        %2185 = vmatprep.subr.mxu0 0.0
        %2186 = vmatpush1.xpose.msra.mxu0 0.0
        %2187 = vmatprep.subr.mxu0 0.0
        %2188 = vmatpush1.xpose.msra.mxu0 0.0
        %2189 = vmatprep.subr.mxu0 0.0
        %2190 = vmatpush1.xpose.msra.mxu0 0.0
        %2191 = vmatprep.subr.mxu0 0.0
        %2192 = vmatpush1.xpose.msra.mxu0 0.0
        %2193 = vmatprep.mubr.f32.mxu0 0.0
        %2194 = vmatmul.mubr.f32.gmra.mrb[0].mxu0 %v2123
        %v2195 = vpop.f32.mrb[0].mxu0
        %v2196 = vadd.f32 0.0, %v2195
        %v2197 = vpop.f32.mrb[0].mxu0
        %2198 = vdwg.mxu0
        %v2199 = vmul.f32 %v2196, 0.35355338
        %v2200 = vadd.f32 %v2199, %v1671
        %v2201 = vsel %vm1664, %v2200, -inf
        %2202 = vmax.xlane.f32.xlu0 %v2201
        %v2203 = vpop.xlane.xlu0 %2202
        %v2204 = vsub.f32 %v2200, %v2203
        %v2205 = vmul.f32 %v2204, 1.442695
        %v2206 = vpow.pop %v2205
        %v2207 = vsel %vm1664, %v2206, 0.0
        %2208 = vadd.xlane.f32.xlu0 %v2207
        %v2209 = vpop.xlane.xlu0 %2208
        %v2210 = vrcp.pop %v2209
        %v2211 = vmul.f32 %v2206, %v2210
        %2214 = vrot.lane.b32.xlu0 %v1943, 120
        %v2215 = vpop.permute.xlu0 %2214
        %2216 = vrot.lane.b32.xlu0 %v1948, 120
        %v2217 = vpop.permute.xlu0 %2216
        %v2221 = vsel %vm1664, %v2211, 0
        %2223 = vmatprep.subr.mxu0 0.0
        %2224 = vmatpush1.msra.mxu0 %v2215
        %2225 = vmatprep.subr.mxu0 0.0
        %2226 = vmatpush1.msra.mxu0 %v2217
        %2227 = vmatprep.subr.mxu0 0.0
        %2228 = vmatpush1.msra.mxu0 0.0
        %2229 = vmatprep.subr.mxu0 0.0
        %2230 = vmatpush1.msra.mxu0 0.0
        %2231 = vmatprep.subr.mxu0 0.0
        %2232 = vmatpush1.msra.mxu0 0.0
        %2233 = vmatprep.subr.mxu0 0.0
        %2234 = vmatpush1.msra.mxu0 0.0
        %2235 = vmatprep.subr.mxu0 0.0
        %2236 = vmatpush1.msra.mxu0 0.0
        %2237 = vmatprep.subr.mxu0 0.0
        %2238 = vmatpush1.msra.mxu0 0.0
        %2239 = vmatprep.subr.mxu0 0.0
        %2240 = vmatpush1.msra.mxu0 0.0
        %2241 = vmatprep.subr.mxu0 0.0
        %2242 = vmatpush1.msra.mxu0 0.0
        %2243 = vmatprep.subr.mxu0 0.0
        %2244 = vmatpush1.msra.mxu0 0.0
        %2245 = vmatprep.subr.mxu0 0.0
        %2246 = vmatpush1.msra.mxu0 0.0
        %2247 = vmatprep.subr.mxu0 0.0
        %2248 = vmatpush1.msra.mxu0 0.0
        %2249 = vmatprep.subr.mxu0 0.0
        %2250 = vmatpush1.msra.mxu0 0.0
        %2251 = vmatprep.subr.mxu0 0.0
        %2252 = vmatpush1.msra.mxu0 0.0
        %2253 = vmatprep.subr.mxu0 0.0
        %2254 = vmatpush1.msra.mxu0 0.0
        %2255 = vmatprep.subr.mxu0 0.0
        %2256 = vmatpush1.msra.mxu0 0.0
        %2257 = vmatprep.subr.mxu0 0.0
        %2258 = vmatpush1.msra.mxu0 0.0
        %2259 = vmatprep.subr.mxu0 0.0
        %2260 = vmatpush1.msra.mxu0 0.0
        %2261 = vmatprep.subr.mxu0 0.0
        %2262 = vmatpush1.msra.mxu0 0.0
        %2263 = vmatprep.subr.mxu0 0.0
        %2264 = vmatpush1.msra.mxu0 0.0
        %2265 = vmatprep.subr.mxu0 0.0
        %2266 = vmatpush1.msra.mxu0 0.0
        %2267 = vmatprep.subr.mxu0 0.0
        %2268 = vmatpush1.msra.mxu0 0.0
        %2269 = vmatprep.subr.mxu0 0.0
        %2270 = vmatpush1.msra.mxu0 0.0
        %2271 = vmatprep.subr.mxu0 0.0
        %2272 = vmatpush1.msra.mxu0 0.0
        %2273 = vmatprep.subr.mxu0 0.0
        %2274 = vmatpush1.msra.mxu0 0.0
        %2275 = vmatprep.subr.mxu0 0.0
        %2276 = vmatpush1.msra.mxu0 0.0
        %2277 = vmatprep.subr.mxu0 0.0
        %2278 = vmatpush1.msra.mxu0 0.0
        %2279 = vmatprep.subr.mxu0 0.0
        %2280 = vmatpush1.msra.mxu0 0.0
        %2281 = vmatprep.subr.mxu0 0.0
        %2282 = vmatpush1.msra.mxu0 0.0
        %2283 = vmatprep.subr.mxu0 0.0
        %2284 = vmatpush1.msra.mxu0 0.0
        %2285 = vmatprep.subr.mxu0 0.0
        %2286 = vmatpush1.msra.mxu0 0.0
        %2287 = vmatprep.mubr.f32.mxu0 0.0
        %2288 = vmatmul.mubr.f32.gmra.mrb[0].mxu0 %v2221
        %v2289 = vpop.f32.mrb[0].mxu0
        %v2290 = vadd.f32 0.0, %v2289
        %v2291 = vpop.f32.mrb[0].mxu0
        %2292 = vdwg.mxu0
        %v2294 = vsel %vm1951, %v2290, 0
        %2296 = vmatprep.subr.mxu0 0.0
        %2297 = vmatpush1.msra.mxu0 %v1685
        %2298 = vmatprep.subr.mxu0 0.0
        %2299 = vmatpush1.msra.mxu0 0.0
        %2300 = vmatprep.subr.mxu0 0.0
        %2301 = vmatpush1.msra.mxu0 0.0
        %2302 = vmatprep.subr.mxu0 0.0
        %2303 = vmatpush1.msra.mxu0 0.0
        %2304 = vmatprep.subr.mxu0 0.0
        %2305 = vmatpush1.msra.mxu0 0.0
        %2306 = vmatprep.subr.mxu0 0.0
        %2307 = vmatpush1.msra.mxu0 0.0
        %2308 = vmatprep.subr.mxu0 0.0
        %2309 = vmatpush1.msra.mxu0 0.0
        %2310 = vmatprep.subr.mxu0 0.0
        %2311 = vmatpush1.msra.mxu0 0.0
        %2312 = vmatprep.subr.mxu0 0.0
        %2313 = vmatpush1.msra.mxu0 0.0
        %2314 = vmatprep.subr.mxu0 0.0
        %2315 = vmatpush1.msra.mxu0 0.0
        %2316 = vmatprep.subr.mxu0 0.0
        %2317 = vmatpush1.msra.mxu0 0.0
        %2318 = vmatprep.subr.mxu0 0.0
        %2319 = vmatpush1.msra.mxu0 0.0
        %2320 = vmatprep.subr.mxu0 0.0
        %2321 = vmatpush1.msra.mxu0 0.0
        %2322 = vmatprep.subr.mxu0 0.0
        %2323 = vmatpush1.msra.mxu0 0.0
        %2324 = vmatprep.subr.mxu0 0.0
        %2325 = vmatpush1.msra.mxu0 0.0
        %2326 = vmatprep.subr.mxu0 0.0
        %2327 = vmatpush1.msra.mxu0 0.0
        %2328 = vmatprep.subr.mxu0 0.0
        %2329 = vmatpush1.msra.mxu0 0.0
        %2330 = vmatprep.subr.mxu0 0.0
        %2331 = vmatpush1.msra.mxu0 0.0
        %2332 = vmatprep.subr.mxu0 0.0
        %2333 = vmatpush1.msra.mxu0 0.0
        %2334 = vmatprep.subr.mxu0 0.0
        %2335 = vmatpush1.msra.mxu0 0.0
        %2336 = vmatprep.subr.mxu0 0.0
        %2337 = vmatpush1.msra.mxu0 0.0
        %2338 = vmatprep.subr.mxu0 0.0
        %2339 = vmatpush1.msra.mxu0 0.0
        %2340 = vmatprep.subr.mxu0 0.0
        %2341 = vmatpush1.msra.mxu0 0.0
        %2342 = vmatprep.subr.mxu0 0.0
        %2343 = vmatpush1.msra.mxu0 0.0
        %2344 = vmatprep.subr.mxu0 0.0
        %2345 = vmatpush1.msra.mxu0 0.0
        %2346 = vmatprep.subr.mxu0 0.0
        %2347 = vmatpush1.msra.mxu0 0.0
        %2348 = vmatprep.subr.mxu0 0.0
        %2349 = vmatpush1.msra.mxu0 0.0
        %2350 = vmatprep.subr.mxu0 0.0
        %2351 = vmatpush1.msra.mxu0 0.0
        %2352 = vmatprep.subr.mxu0 0.0
        %2353 = vmatpush1.msra.mxu0 0.0
        %2354 = vmatprep.subr.mxu0 0.0
        %2355 = vmatpush1.msra.mxu0 0.0
        %2356 = vmatprep.subr.mxu0 0.0
        %2357 = vmatpush1.msra.mxu0 0.0
        %2358 = vmatprep.subr.mxu0 0.0
        %2359 = vmatpush1.msra.mxu0 0.0
        %2360 = vmatprep.mubr.f32.mxu0 0.0
        %2361 = vmatmul.mubr.f32.gmra.mrb[0].mxu0 %v2294
        %v2362 = vpop.f32.mrb[0].mxu0
        %v2363 = vadd.f32 0.0, %v2362
        %v2364 = vpop.f32.mrb[0].mxu0
        %2365 = vdwg.mxu0
        %v2367 = vsel %vm1951, %v2114, 0
        %2369 = vmatprep.subr.mxu0 0.0
        %2370 = vmatpush1.msra.mxu0 %v1684
        %2371 = vmatprep.subr.mxu0 0.0
        %2372 = vmatpush1.msra.mxu0 0.0
        %2373 = vmatprep.subr.mxu0 0.0
        %2374 = vmatpush1.msra.mxu0 0.0
        %2375 = vmatprep.subr.mxu0 0.0
        %2376 = vmatpush1.msra.mxu0 0.0
        %2377 = vmatprep.subr.mxu0 0.0
        %2378 = vmatpush1.msra.mxu0 0.0
        %2379 = vmatprep.subr.mxu0 0.0
        %2380 = vmatpush1.msra.mxu0 0.0
        %2381 = vmatprep.subr.mxu0 0.0
        %2382 = vmatpush1.msra.mxu0 0.0
        %2383 = vmatprep.subr.mxu0 0.0
        %2384 = vmatpush1.msra.mxu0 0.0
        %2385 = vmatprep.subr.mxu0 0.0
        %2386 = vmatpush1.msra.mxu0 0.0
        %2387 = vmatprep.subr.mxu0 0.0
        %2388 = vmatpush1.msra.mxu0 0.0
        %2389 = vmatprep.subr.mxu0 0.0
        %2390 = vmatpush1.msra.mxu0 0.0
        %2391 = vmatprep.subr.mxu0 0.0
        %2392 = vmatpush1.msra.mxu0 0.0
        %2393 = vmatprep.subr.mxu0 0.0
        %2394 = vmatpush1.msra.mxu0 0.0
        %2395 = vmatprep.subr.mxu0 0.0
        %2396 = vmatpush1.msra.mxu0 0.0
        %2397 = vmatprep.subr.mxu0 0.0
        %2398 = vmatpush1.msra.mxu0 0.0
        %2399 = vmatprep.subr.mxu0 0.0
        %2400 = vmatpush1.msra.mxu0 0.0
        %2401 = vmatprep.subr.mxu0 0.0
        %2402 = vmatpush1.msra.mxu0 0.0
        %2403 = vmatprep.subr.mxu0 0.0
        %2404 = vmatpush1.msra.mxu0 0.0
        %2405 = vmatprep.subr.mxu0 0.0
        %2406 = vmatpush1.msra.mxu0 0.0
        %2407 = vmatprep.subr.mxu0 0.0
        %2408 = vmatpush1.msra.mxu0 0.0
        %2409 = vmatprep.subr.mxu0 0.0
        %2410 = vmatpush1.msra.mxu0 0.0
        %2411 = vmatprep.subr.mxu0 0.0
        %2412 = vmatpush1.msra.mxu0 0.0
        %2413 = vmatprep.subr.mxu0 0.0
        %2414 = vmatpush1.msra.mxu0 0.0
        %2415 = vmatprep.subr.mxu0 0.0
        %2416 = vmatpush1.msra.mxu0 0.0
        %2417 = vmatprep.subr.mxu0 0.0
        %2418 = vmatpush1.msra.mxu0 0.0
        %2419 = vmatprep.subr.mxu0 0.0
        %2420 = vmatpush1.msra.mxu0 0.0
        %2421 = vmatprep.subr.mxu0 0.0
        %2422 = vmatpush1.msra.mxu0 0.0
        %2423 = vmatprep.subr.mxu0 0.0
        %2424 = vmatpush1.msra.mxu0 0.0
        %2425 = vmatprep.subr.mxu0 0.0
        %2426 = vmatpush1.msra.mxu0 0.0
        %2427 = vmatprep.subr.mxu0 0.0
        %2428 = vmatpush1.msra.mxu0 0.0
        %2429 = vmatprep.subr.mxu0 0.0
        %2430 = vmatpush1.msra.mxu0 0.0
        %2431 = vmatprep.subr.mxu0 0.0
        %2432 = vmatpush1.msra.mxu0 0.0
        %2433 = vmatprep.mubr.f32.mxu0 0.0
        %2434 = vmatmul.mubr.f32.gmra.mrb[0].mxu0 %v2367
        %v2435 = vpop.f32.mrb[0].mxu0
        %v2436 = vadd.f32 %v2363, %v2435
        %v2437 = vpop.f32.mrb[0].mxu0
        %2438 = vdwg.mxu0
        %2439 = vrot.lane.b32.xlu0 %v1784, 112
        %v2440 = vpop.permute.xlu0 %2439
        %2441 = vrot.lane.b32.xlu0 %v1864, 112
        %v2442 = vpop.permute.xlu0 %2441
        %2443 = vrot.lane.b32.xlu0 %v1869, 112
        %v2444 = vpop.permute.xlu0 %2443
        %v2445 = vsel %vm1951, %v2440, 0
        %v2447 = vsel %vm1951, %v2442, 0
        %v2449 = vsel %vm1951, %v2444, 0
        %2451 = vmatprep.subr.mxu0 0.0
        %2452 = vmatpush1.xpose.msra.mxu0 %v2447
        %2453 = vmatprep.subr.mxu0 0.0
        %2454 = vmatpush1.xpose.msra.mxu0 %v2449
        %2455 = vmatprep.subr.mxu0 0.0
        %2456 = vmatpush1.xpose.msra.mxu0 0.0
        %2457 = vmatprep.subr.mxu0 0.0
        %2458 = vmatpush1.xpose.msra.mxu0 0.0
        %2459 = vmatprep.subr.mxu0 0.0
        %2460 = vmatpush1.xpose.msra.mxu0 0.0
        %2461 = vmatprep.subr.mxu0 0.0
        %2462 = vmatpush1.xpose.msra.mxu0 0.0
        %2463 = vmatprep.subr.mxu0 0.0
        %2464 = vmatpush1.xpose.msra.mxu0 0.0
        %2465 = vmatprep.subr.mxu0 0.0
        %2466 = vmatpush1.xpose.msra.mxu0 0.0
        %2467 = vmatprep.subr.mxu0 0.0
        %2468 = vmatpush1.xpose.msra.mxu0 0.0
        %2469 = vmatprep.subr.mxu0 0.0
        %2470 = vmatpush1.xpose.msra.mxu0 0.0
        %2471 = vmatprep.subr.mxu0 0.0
        %2472 = vmatpush1.xpose.msra.mxu0 0.0
        %2473 = vmatprep.subr.mxu0 0.0
        %2474 = vmatpush1.xpose.msra.mxu0 0.0
        %2475 = vmatprep.subr.mxu0 0.0
        %2476 = vmatpush1.xpose.msra.mxu0 0.0
        %2477 = vmatprep.subr.mxu0 0.0
        %2478 = vmatpush1.xpose.msra.mxu0 0.0
        %2479 = vmatprep.subr.mxu0 0.0
        %2480 = vmatpush1.xpose.msra.mxu0 0.0
        %2481 = vmatprep.subr.mxu0 0.0
        %2482 = vmatpush1.xpose.msra.mxu0 0.0
        %2483 = vmatprep.subr.mxu0 0.0
        %2484 = vmatpush1.xpose.msra.mxu0 0.0
        %2485 = vmatprep.subr.mxu0 0.0
        %2486 = vmatpush1.xpose.msra.mxu0 0.0
        %2487 = vmatprep.subr.mxu0 0.0
        %2488 = vmatpush1.xpose.msra.mxu0 0.0
        %2489 = vmatprep.subr.mxu0 0.0
        %2490 = vmatpush1.xpose.msra.mxu0 0.0
        %2491 = vmatprep.subr.mxu0 0.0
        %2492 = vmatpush1.xpose.msra.mxu0 0.0
        %2493 = vmatprep.subr.mxu0 0.0
        %2494 = vmatpush1.xpose.msra.mxu0 0.0
        %2495 = vmatprep.subr.mxu0 0.0
        %2496 = vmatpush1.xpose.msra.mxu0 0.0
        %2497 = vmatprep.subr.mxu0 0.0
        %2498 = vmatpush1.xpose.msra.mxu0 0.0
        %2499 = vmatprep.subr.mxu0 0.0
        %2500 = vmatpush1.xpose.msra.mxu0 0.0
        %2501 = vmatprep.subr.mxu0 0.0
        %2502 = vmatpush1.xpose.msra.mxu0 0.0
        %2503 = vmatprep.subr.mxu0 0.0
        %2504 = vmatpush1.xpose.msra.mxu0 0.0
        %2505 = vmatprep.subr.mxu0 0.0
        %2506 = vmatpush1.xpose.msra.mxu0 0.0
        %2507 = vmatprep.subr.mxu0 0.0
        %2508 = vmatpush1.xpose.msra.mxu0 0.0
        %2509 = vmatprep.subr.mxu0 0.0
        %2510 = vmatpush1.xpose.msra.mxu0 0.0
        %2511 = vmatprep.subr.mxu0 0.0
        %2512 = vmatpush1.xpose.msra.mxu0 0.0
        %2513 = vmatprep.subr.mxu0 0.0
        %2514 = vmatpush1.xpose.msra.mxu0 0.0
        %2515 = vmatprep.mubr.f32.mxu0 0.0
        %2516 = vmatmul.mubr.f32.gmra.mrb[0].mxu0 %v2445
        %v2517 = vpop.f32.mrb[0].mxu0
        %v2518 = vadd.f32 0.0, %v2517
        %v2519 = vpop.f32.mrb[0].mxu0
        %2520 = vdwg.mxu0
        %v2521 = vmul.f32 %v2518, 0.35355338
        %v2522 = vadd.f32 %v2521, %v1671
        %v2523 = vsel %vm1664, %v2522, -inf
        %2524 = vmax.xlane.f32.xlu0 %v2523
        %v2525 = vpop.xlane.xlu0 %2524
        %v2526 = vsub.f32 %v2522, %v2525
        %v2527 = vmul.f32 %v2526, 1.442695
        %v2528 = vpow.pop %v2527
        %v2529 = vsel %vm1664, %v2528, 0.0
        %2530 = vadd.xlane.f32.xlu0 %v2529
        %v2531 = vpop.xlane.xlu0 %2530
        %v2532 = vrcp.pop %v2531
        %v2533 = vmul.f32 %v2528, %v2532
        %2534 = vrot.lane.b32.xlu0 %v1943, 112
        %v2535 = vpop.permute.xlu0 %2534
        %2536 = vrot.lane.b32.xlu0 %v1948, 112
        %v2537 = vpop.permute.xlu0 %2536
        %v2541 = vsel %vm1664, %v2533, 0
        %2543 = vmatprep.subr.mxu0 0.0
        %2544 = vmatpush1.msra.mxu0 %v2535
        %2545 = vmatprep.subr.mxu0 0.0
        %2546 = vmatpush1.msra.mxu0 %v2537
        %2547 = vmatprep.subr.mxu0 0.0
        %2548 = vmatpush1.msra.mxu0 0.0
        %2549 = vmatprep.subr.mxu0 0.0
        %2550 = vmatpush1.msra.mxu0 0.0
        %2551 = vmatprep.subr.mxu0 0.0
        %2552 = vmatpush1.msra.mxu0 0.0
        %2553 = vmatprep.subr.mxu0 0.0
        %2554 = vmatpush1.msra.mxu0 0.0
        %2555 = vmatprep.subr.mxu0 0.0
        %2556 = vmatpush1.msra.mxu0 0.0
        %2557 = vmatprep.subr.mxu0 0.0
        %2558 = vmatpush1.msra.mxu0 0.0
        %2559 = vmatprep.subr.mxu0 0.0
        %2560 = vmatpush1.msra.mxu0 0.0
        %2561 = vmatprep.subr.mxu0 0.0
        %2562 = vmatpush1.msra.mxu0 0.0
        %2563 = vmatprep.subr.mxu0 0.0
        %2564 = vmatpush1.msra.mxu0 0.0
        %2565 = vmatprep.subr.mxu0 0.0
        %2566 = vmatpush1.msra.mxu0 0.0
        %2567 = vmatprep.subr.mxu0 0.0
        %2568 = vmatpush1.msra.mxu0 0.0
        %2569 = vmatprep.subr.mxu0 0.0
        %2570 = vmatpush1.msra.mxu0 0.0
        %2571 = vmatprep.subr.mxu0 0.0
        %2572 = vmatpush1.msra.mxu0 0.0
        %2573 = vmatprep.subr.mxu0 0.0
        %2574 = vmatpush1.msra.mxu0 0.0
        %2575 = vmatprep.subr.mxu0 0.0
        %2576 = vmatpush1.msra.mxu0 0.0
        %2577 = vmatprep.subr.mxu0 0.0
        %2578 = vmatpush1.msra.mxu0 0.0
        %2579 = vmatprep.subr.mxu0 0.0
        %2580 = vmatpush1.msra.mxu0 0.0
        %2581 = vmatprep.subr.mxu0 0.0
        %2582 = vmatpush1.msra.mxu0 0.0
        %2583 = vmatprep.subr.mxu0 0.0
        %2584 = vmatpush1.msra.mxu0 0.0
        %2585 = vmatprep.subr.mxu0 0.0
        %2586 = vmatpush1.msra.mxu0 0.0
        %2587 = vmatprep.subr.mxu0 0.0
        %2588 = vmatpush1.msra.mxu0 0.0
        %2589 = vmatprep.subr.mxu0 0.0
        %2590 = vmatpush1.msra.mxu0 0.0
        %2591 = vmatprep.subr.mxu0 0.0
        %2592 = vmatpush1.msra.mxu0 0.0
        %2593 = vmatprep.subr.mxu0 0.0
        %2594 = vmatpush1.msra.mxu0 0.0
        %2595 = vmatprep.subr.mxu0 0.0
        %2596 = vmatpush1.msra.mxu0 0.0
        %2597 = vmatprep.subr.mxu0 0.0
        %2598 = vmatpush1.msra.mxu0 0.0
        %2599 = vmatprep.subr.mxu0 0.0
        %2600 = vmatpush1.msra.mxu0 0.0
        %2601 = vmatprep.subr.mxu0 0.0
        %2602 = vmatpush1.msra.mxu0 0.0
        %2603 = vmatprep.subr.mxu0 0.0
        %2604 = vmatpush1.msra.mxu0 0.0
        %2605 = vmatprep.subr.mxu0 0.0
        %2606 = vmatpush1.msra.mxu0 0.0
        %2607 = vmatprep.mubr.f32.mxu0 0.0
        %2608 = vmatmul.mubr.f32.gmra.mrb[0].mxu0 %v2541
        %v2609 = vpop.f32.mrb[0].mxu0
        %v2610 = vadd.f32 0.0, %v2609
        %v2611 = vpop.f32.mrb[0].mxu0
        %2612 = vdwg.mxu0
        %v2614 = vsel %vm1951, %v2610, 0
        %2616 = vmatprep.subr.mxu0 0.0
        %2617 = vmatpush1.msra.mxu0 %v1686
        %2618 = vmatprep.subr.mxu0 0.0
        %2619 = vmatpush1.msra.mxu0 0.0
        %2620 = vmatprep.subr.mxu0 0.0
        %2621 = vmatpush1.msra.mxu0 0.0
        %2622 = vmatprep.subr.mxu0 0.0
        %2623 = vmatpush1.msra.mxu0 0.0
        %2624 = vmatprep.subr.mxu0 0.0
        %2625 = vmatpush1.msra.mxu0 0.0
        %2626 = vmatprep.subr.mxu0 0.0
        %2627 = vmatpush1.msra.mxu0 0.0
        %2628 = vmatprep.subr.mxu0 0.0
        %2629 = vmatpush1.msra.mxu0 0.0
        %2630 = vmatprep.subr.mxu0 0.0
        %2631 = vmatpush1.msra.mxu0 0.0
        %2632 = vmatprep.subr.mxu0 0.0
        %2633 = vmatpush1.msra.mxu0 0.0
        %2634 = vmatprep.subr.mxu0 0.0
        %2635 = vmatpush1.msra.mxu0 0.0
        %2636 = vmatprep.subr.mxu0 0.0
        %2637 = vmatpush1.msra.mxu0 0.0
        %2638 = vmatprep.subr.mxu0 0.0
        %2639 = vmatpush1.msra.mxu0 0.0
        %2640 = vmatprep.subr.mxu0 0.0
        %2641 = vmatpush1.msra.mxu0 0.0
        %2642 = vmatprep.subr.mxu0 0.0
        %2643 = vmatpush1.msra.mxu0 0.0
        %2644 = vmatprep.subr.mxu0 0.0
        %2645 = vmatpush1.msra.mxu0 0.0
        %2646 = vmatprep.subr.mxu0 0.0
        %2647 = vmatpush1.msra.mxu0 0.0
        %2648 = vmatprep.subr.mxu0 0.0
        %2649 = vmatpush1.msra.mxu0 0.0
        %2650 = vmatprep.subr.mxu0 0.0
        %2651 = vmatpush1.msra.mxu0 0.0
        %2652 = vmatprep.subr.mxu0 0.0
        %2653 = vmatpush1.msra.mxu0 0.0
        %2654 = vmatprep.subr.mxu0 0.0
        %2655 = vmatpush1.msra.mxu0 0.0
        %2656 = vmatprep.subr.mxu0 0.0
        %2657 = vmatpush1.msra.mxu0 0.0
        %2658 = vmatprep.subr.mxu0 0.0
        %2659 = vmatpush1.msra.mxu0 0.0
        %2660 = vmatprep.subr.mxu0 0.0
        %2661 = vmatpush1.msra.mxu0 0.0
        %2662 = vmatprep.subr.mxu0 0.0
        %2663 = vmatpush1.msra.mxu0 0.0
        %2664 = vmatprep.subr.mxu0 0.0
        %2665 = vmatpush1.msra.mxu0 0.0
        %2666 = vmatprep.subr.mxu0 0.0
        %2667 = vmatpush1.msra.mxu0 0.0
        %2668 = vmatprep.subr.mxu0 0.0
        %2669 = vmatpush1.msra.mxu0 0.0
        %2670 = vmatprep.subr.mxu0 0.0
        %2671 = vmatpush1.msra.mxu0 0.0
        %2672 = vmatprep.subr.mxu0 0.0
        %2673 = vmatpush1.msra.mxu0 0.0
        %2674 = vmatprep.subr.mxu0 0.0
        %2675 = vmatpush1.msra.mxu0 0.0
        %2676 = vmatprep.subr.mxu0 0.0
        %2677 = vmatpush1.msra.mxu0 0.0
        %2678 = vmatprep.subr.mxu0 0.0
        %2679 = vmatpush1.msra.mxu0 0.0
        %2680 = vmatprep.mubr.f32.mxu0 0.0
        %2681 = vmatmul.mubr.f32.gmra.mrb[0].mxu0 %v2614
        %v2682 = vpop.f32.mrb[0].mxu0
        %v2683 = vadd.f32 0.0, %v2682
        %v2684 = vpop.f32.mrb[0].mxu0
        %2685 = vdwg.mxu0
        %v2686 = vadd.f32 %v2436, %v2683
        %2687 = vrot.lane.b32.xlu0 %v1784, 104
        %v2688 = vpop.permute.xlu0 %2687
        %2689 = vrot.lane.b32.xlu0 %v1864, 104
        %v2690 = vpop.permute.xlu0 %2689
        %2691 = vrot.lane.b32.xlu0 %v1869, 104
        %v2692 = vpop.permute.xlu0 %2691
        %v2693 = vsel %vm1951, %v2688, 0
        %v2695 = vsel %vm1951, %v2690, 0
        %v2697 = vsel %vm1951, %v2692, 0
        %2699 = vmatprep.subr.mxu0 0.0
        %2700 = vmatpush1.xpose.msra.mxu0 %v2695
        %2701 = vmatprep.subr.mxu0 0.0
        %2702 = vmatpush1.xpose.msra.mxu0 %v2697
        %2703 = vmatprep.subr.mxu0 0.0
        %2704 = vmatpush1.xpose.msra.mxu0 0.0
        %2705 = vmatprep.subr.mxu0 0.0
        %2706 = vmatpush1.xpose.msra.mxu0 0.0
        %2707 = vmatprep.subr.mxu0 0.0
        %2708 = vmatpush1.xpose.msra.mxu0 0.0
        %2709 = vmatprep.subr.mxu0 0.0
        %2710 = vmatpush1.xpose.msra.mxu0 0.0
        %2711 = vmatprep.subr.mxu0 0.0
        %2712 = vmatpush1.xpose.msra.mxu0 0.0
        %2713 = vmatprep.subr.mxu0 0.0
        %2714 = vmatpush1.xpose.msra.mxu0 0.0
        %2715 = vmatprep.subr.mxu0 0.0
        %2716 = vmatpush1.xpose.msra.mxu0 0.0
        %2717 = vmatprep.subr.mxu0 0.0
        %2718 = vmatpush1.xpose.msra.mxu0 0.0
        %2719 = vmatprep.subr.mxu0 0.0
        %2720 = vmatpush1.xpose.msra.mxu0 0.0
        %2721 = vmatprep.subr.mxu0 0.0
        %2722 = vmatpush1.xpose.msra.mxu0 0.0
        %2723 = vmatprep.subr.mxu0 0.0
        %2724 = vmatpush1.xpose.msra.mxu0 0.0
        %2725 = vmatprep.subr.mxu0 0.0
        %2726 = vmatpush1.xpose.msra.mxu0 0.0
        %2727 = vmatprep.subr.mxu0 0.0
        %2728 = vmatpush1.xpose.msra.mxu0 0.0
        %2729 = vmatprep.subr.mxu0 0.0
        %2730 = vmatpush1.xpose.msra.mxu0 0.0
        %2731 = vmatprep.subr.mxu0 0.0
        %2732 = vmatpush1.xpose.msra.mxu0 0.0
        %2733 = vmatprep.subr.mxu0 0.0
        %2734 = vmatpush1.xpose.msra.mxu0 0.0
        %2735 = vmatprep.subr.mxu0 0.0
        %2736 = vmatpush1.xpose.msra.mxu0 0.0
        %2737 = vmatprep.subr.mxu0 0.0
        %2738 = vmatpush1.xpose.msra.mxu0 0.0
        %2739 = vmatprep.subr.mxu0 0.0
        %2740 = vmatpush1.xpose.msra.mxu0 0.0
        %2741 = vmatprep.subr.mxu0 0.0
        %2742 = vmatpush1.xpose.msra.mxu0 0.0
        %2743 = vmatprep.subr.mxu0 0.0
        %2744 = vmatpush1.xpose.msra.mxu0 0.0
        %2745 = vmatprep.subr.mxu0 0.0
        %2746 = vmatpush1.xpose.msra.mxu0 0.0
        %2747 = vmatprep.subr.mxu0 0.0
        %2748 = vmatpush1.xpose.msra.mxu0 0.0
        %2749 = vmatprep.subr.mxu0 0.0
        %2750 = vmatpush1.xpose.msra.mxu0 0.0
        %2751 = vmatprep.subr.mxu0 0.0
        %2752 = vmatpush1.xpose.msra.mxu0 0.0
        %2753 = vmatprep.subr.mxu0 0.0
        %2754 = vmatpush1.xpose.msra.mxu0 0.0
        %2755 = vmatprep.subr.mxu0 0.0
        %2756 = vmatpush1.xpose.msra.mxu0 0.0
        %2757 = vmatprep.subr.mxu0 0.0
        %2758 = vmatpush1.xpose.msra.mxu0 0.0
        %2759 = vmatprep.subr.mxu0 0.0
        %2760 = vmatpush1.xpose.msra.mxu0 0.0
        %2761 = vmatprep.subr.mxu0 0.0
        %2762 = vmatpush1.xpose.msra.mxu0 0.0
        %2763 = vmatprep.mubr.f32.mxu0 0.0
        %2764 = vmatmul.mubr.f32.gmra.mrb[0].mxu0 %v2693
        %v2765 = vpop.f32.mrb[0].mxu0
        %v2766 = vadd.f32 0.0, %v2765
        %v2767 = vpop.f32.mrb[0].mxu0
        %2768 = vdwg.mxu0
        %v2769 = vmul.f32 %v2766, 0.35355338
        %v2770 = vadd.f32 %v2769, %v1671
        %v2771 = vsel %vm1664, %v2770, -inf
        %2772 = vmax.xlane.f32.xlu0 %v2771
        %v2773 = vpop.xlane.xlu0 %2772
        %v2774 = vsub.f32 %v2770, %v2773
        %v2775 = vmul.f32 %v2774, 1.442695
        %v2776 = vpow.pop %v2775
        %v2777 = vsel %vm1664, %v2776, 0.0
        %2778 = vadd.xlane.f32.xlu0 %v2777
        %v2779 = vpop.xlane.xlu0 %2778
        %v2780 = vrcp.pop %v2779
        %v2781 = vmul.f32 %v2776, %v2780
        %2782 = vrot.lane.b32.xlu0 %v1943, 104
        %v2783 = vpop.permute.xlu0 %2782
        %2784 = vrot.lane.b32.xlu0 %v1948, 104
        %v2785 = vpop.permute.xlu0 %2784
        %v2789 = vsel %vm1664, %v2781, 0
        %2791 = vmatprep.subr.mxu0 0.0
        %2792 = vmatpush1.msra.mxu0 %v2783
        %2793 = vmatprep.subr.mxu0 0.0
        %2794 = vmatpush1.msra.mxu0 %v2785
        %2795 = vmatprep.subr.mxu0 0.0
        %2796 = vmatpush1.msra.mxu0 0.0
        %2797 = vmatprep.subr.mxu0 0.0
        %2798 = vmatpush1.msra.mxu0 0.0
        %2799 = vmatprep.subr.mxu0 0.0
        %2800 = vmatpush1.msra.mxu0 0.0
        %2801 = vmatprep.subr.mxu0 0.0
        %2802 = vmatpush1.msra.mxu0 0.0
        %2803 = vmatprep.subr.mxu0 0.0
        %2804 = vmatpush1.msra.mxu0 0.0
        %2805 = vmatprep.subr.mxu0 0.0
        %2806 = vmatpush1.msra.mxu0 0.0
        %2807 = vmatprep.subr.mxu0 0.0
        %2808 = vmatpush1.msra.mxu0 0.0
        %2809 = vmatprep.subr.mxu0 0.0
        %2810 = vmatpush1.msra.mxu0 0.0
        %2811 = vmatprep.subr.mxu0 0.0
        %2812 = vmatpush1.msra.mxu0 0.0
        %2813 = vmatprep.subr.mxu0 0.0
        %2814 = vmatpush1.msra.mxu0 0.0
        %2815 = vmatprep.subr.mxu0 0.0
        %2816 = vmatpush1.msra.mxu0 0.0
        %2817 = vmatprep.subr.mxu0 0.0
        %2818 = vmatpush1.msra.mxu0 0.0
        %2819 = vmatprep.subr.mxu0 0.0
        %2820 = vmatpush1.msra.mxu0 0.0
        %2821 = vmatprep.subr.mxu0 0.0
        %2822 = vmatpush1.msra.mxu0 0.0
        %2823 = vmatprep.subr.mxu0 0.0
        %2824 = vmatpush1.msra.mxu0 0.0
        %2825 = vmatprep.subr.mxu0 0.0
        %2826 = vmatpush1.msra.mxu0 0.0
        %2827 = vmatprep.subr.mxu0 0.0
        %2828 = vmatpush1.msra.mxu0 0.0
        %2829 = vmatprep.subr.mxu0 0.0
        %2830 = vmatpush1.msra.mxu0 0.0
        %2831 = vmatprep.subr.mxu0 0.0
        %2832 = vmatpush1.msra.mxu0 0.0
        %2833 = vmatprep.subr.mxu0 0.0
        %2834 = vmatpush1.msra.mxu0 0.0
        %2835 = vmatprep.subr.mxu0 0.0
        %2836 = vmatpush1.msra.mxu0 0.0
        %2837 = vmatprep.subr.mxu0 0.0
        %2838 = vmatpush1.msra.mxu0 0.0
        %2839 = vmatprep.subr.mxu0 0.0
        %2840 = vmatpush1.msra.mxu0 0.0
        %2841 = vmatprep.subr.mxu0 0.0
        %2842 = vmatpush1.msra.mxu0 0.0
        %2843 = vmatprep.subr.mxu0 0.0
        %2844 = vmatpush1.msra.mxu0 0.0
        %2845 = vmatprep.subr.mxu0 0.0
        %2846 = vmatpush1.msra.mxu0 0.0
        %2847 = vmatprep.subr.mxu0 0.0
        %2848 = vmatpush1.msra.mxu0 0.0
        %2849 = vmatprep.subr.mxu0 0.0
        %2850 = vmatpush1.msra.mxu0 0.0
        %2851 = vmatprep.subr.mxu0 0.0
        %2852 = vmatpush1.msra.mxu0 0.0
        %2853 = vmatprep.subr.mxu0 0.0
        %2854 = vmatpush1.msra.mxu0 0.0
        %2855 = vmatprep.mubr.f32.mxu0 0.0
        %2856 = vmatmul.mubr.f32.gmra.mrb[0].mxu0 %v2789
        %v2857 = vpop.f32.mrb[0].mxu0
        %v2858 = vadd.f32 0.0, %v2857
        %v2859 = vpop.f32.mrb[0].mxu0
        %2860 = vdwg.mxu0
        %v2862 = vsel %vm1951, %v2858, 0
        %2864 = vmatprep.subr.mxu0 0.0
        %2865 = vmatpush1.msra.mxu0 %v1687
        %2866 = vmatprep.subr.mxu0 0.0
        %2867 = vmatpush1.msra.mxu0 0.0
        %2868 = vmatprep.subr.mxu0 0.0
        %2869 = vmatpush1.msra.mxu0 0.0
        %2870 = vmatprep.subr.mxu0 0.0
        %2871 = vmatpush1.msra.mxu0 0.0
        %2872 = vmatprep.subr.mxu0 0.0
        %2873 = vmatpush1.msra.mxu0 0.0
        %2874 = vmatprep.subr.mxu0 0.0
        %2875 = vmatpush1.msra.mxu0 0.0
        %2876 = vmatprep.subr.mxu0 0.0
        %2877 = vmatpush1.msra.mxu0 0.0
        %2878 = vmatprep.subr.mxu0 0.0
        %2879 = vmatpush1.msra.mxu0 0.0
        %2880 = vmatprep.subr.mxu0 0.0
        %2881 = vmatpush1.msra.mxu0 0.0
        %2882 = vmatprep.subr.mxu0 0.0
        %2883 = vmatpush1.msra.mxu0 0.0
        %2884 = vmatprep.subr.mxu0 0.0
        %2885 = vmatpush1.msra.mxu0 0.0
        %2886 = vmatprep.subr.mxu0 0.0
        %2887 = vmatpush1.msra.mxu0 0.0
        %2888 = vmatprep.subr.mxu0 0.0
        %2889 = vmatpush1.msra.mxu0 0.0
        %2890 = vmatprep.subr.mxu0 0.0
        %2891 = vmatpush1.msra.mxu0 0.0
        %2892 = vmatprep.subr.mxu0 0.0
        %2893 = vmatpush1.msra.mxu0 0.0
        %2894 = vmatprep.subr.mxu0 0.0
        %2895 = vmatpush1.msra.mxu0 0.0
        %2896 = vmatprep.subr.mxu0 0.0
        %2897 = vmatpush1.msra.mxu0 0.0
        %2898 = vmatprep.subr.mxu0 0.0
        %2899 = vmatpush1.msra.mxu0 0.0
        %2900 = vmatprep.subr.mxu0 0.0
        %2901 = vmatpush1.msra.mxu0 0.0
        %2902 = vmatprep.subr.mxu0 0.0
        %2903 = vmatpush1.msra.mxu0 0.0
        %2904 = vmatprep.subr.mxu0 0.0
        %2905 = vmatpush1.msra.mxu0 0.0
        %2906 = vmatprep.subr.mxu0 0.0
        %2907 = vmatpush1.msra.mxu0 0.0
        %2908 = vmatprep.subr.mxu0 0.0
        %2909 = vmatpush1.msra.mxu0 0.0
        %2910 = vmatprep.subr.mxu0 0.0
        %2911 = vmatpush1.msra.mxu0 0.0
        %2912 = vmatprep.subr.mxu0 0.0
        %2913 = vmatpush1.msra.mxu0 0.0
        %2914 = vmatprep.subr.mxu0 0.0
        %2915 = vmatpush1.msra.mxu0 0.0
        %2916 = vmatprep.subr.mxu0 0.0
        %2917 = vmatpush1.msra.mxu0 0.0
        %2918 = vmatprep.subr.mxu0 0.0
        %2919 = vmatpush1.msra.mxu0 0.0
        %2920 = vmatprep.subr.mxu0 0.0
        %2921 = vmatpush1.msra.mxu0 0.0
        %2922 = vmatprep.subr.mxu0 0.0
        %2923 = vmatpush1.msra.mxu0 0.0
        %2924 = vmatprep.subr.mxu0 0.0
        %2925 = vmatpush1.msra.mxu0 0.0
        %2926 = vmatprep.subr.mxu0 0.0
        %2927 = vmatpush1.msra.mxu0 0.0
        %2928 = vmatprep.mubr.f32.mxu0 0.0
        %2929 = vmatmul.mubr.f32.gmra.mrb[0].mxu0 %v2862
        %v2930 = vpop.f32.mrb[0].mxu0
        %v2931 = vadd.f32 0.0, %v2930
        %v2932 = vpop.f32.mrb[0].mxu0
        %2933 = vdwg.mxu0
        %v2934 = vadd.f32 %v2686, %v2931
        %v2935 = vadd.f32 %v964, %v2934
        %v2936 = vlaneseq
        %v2937 = vshrl.u32 %v2936, 7
        %v2938 = vsub.s32 3, %v2937
        %v2939 = vrot.slane %v1704, %v2938
        %v2940 = vadd.f32 %v2935, %v2939
        %v2941 = vsel %vm966, %v2940, 0.0
        %2942 = vadd.xlane.f32.xlu0 %v2941
        %v2943 = vpop.xlane.xlu0 %2942
        %v2944 = vmul.f32 %v2943, %v970
        %v2945 = vsub.f32 %v2940, %v2944
        %v2946 = vmul.f32 %v2945, %v2945
        %v2947 = vsel %vm966, %v2946, 0.0
        %2948 = vadd.xlane.f32.xlu0 %v2947
        %v2949 = vpop.xlane.xlu0 %2948
        %v2950 = vmul.f32 %v2949, %v970
        %v2951 = vadd.f32 %v2950, 1e-05
        %v2952 = vrsqrt.pop %v2951
        %v2953 = vmul.f32 %v2945, %v2952
        %v2954 = vlaneseq
        %v2955 = vshrl.u32 %v2954, 7
        %v2956 = vsub.s32 4, %v2955
        %v2957 = vrot.slane %v1704, %v2956
        %v2958 = vmul.f32 %v2953, %v2957
        %v2959 = vlaneseq
        %v2960 = vshrl.u32 %v2959, 7
        %v2961 = vsub.s32 5, %v2960
        %v2962 = vrot.slane %v1704, %v2961
        %v2963 = vadd.f32 %v2958, %v2962
        %v2964 = vadd.f32 %v2963, %v1706
        %v2965 = vlaneseq
        %v2966 = vshrl.u32 %v2965, 7
        %v2967 = vsub.s32 6, %v2966
        %v2968 = vrot.slane %v1704, %v2967
        %v2970 = vsel %vm966, %v2964, 0
        %2972 = vmatprep.subr.mxu0 0.0
        %2973 = vmatpush1.msra.mxu0 %v1688
        %2974 = vmatprep.subr.mxu0 0.0
        %2975 = vmatpush1.msra.mxu0 %v1689
        %2976 = vmatprep.subr.mxu0 0.0
        %2977 = vmatpush1.msra.mxu0 %v1690
        %2978 = vmatprep.subr.mxu0 0.0
        %2979 = vmatpush1.msra.mxu0 %v1691
        %2980 = vmatprep.subr.mxu0 0.0
        %2981 = vmatpush1.msra.mxu0 0.0
        %2982 = vmatprep.subr.mxu0 0.0
        %2983 = vmatpush1.msra.mxu0 0.0
        %2984 = vmatprep.subr.mxu0 0.0
        %2985 = vmatpush1.msra.mxu0 0.0
        %2986 = vmatprep.subr.mxu0 0.0
        %2987 = vmatpush1.msra.mxu0 0.0
        %2988 = vmatprep.subr.mxu0 0.0
        %2989 = vmatpush1.msra.mxu0 0.0
        %2990 = vmatprep.subr.mxu0 0.0
        %2991 = vmatpush1.msra.mxu0 0.0
        %2992 = vmatprep.subr.mxu0 0.0
        %2993 = vmatpush1.msra.mxu0 0.0
        %2994 = vmatprep.subr.mxu0 0.0
        %2995 = vmatpush1.msra.mxu0 0.0
        %2996 = vmatprep.subr.mxu0 0.0
        %2997 = vmatpush1.msra.mxu0 0.0
        %2998 = vmatprep.subr.mxu0 0.0
        %2999 = vmatpush1.msra.mxu0 0.0
        %3000 = vmatprep.subr.mxu0 0.0
        %3001 = vmatpush1.msra.mxu0 0.0
        %3002 = vmatprep.subr.mxu0 0.0
        %3003 = vmatpush1.msra.mxu0 0.0
        %3004 = vmatprep.subr.mxu0 0.0
        %3005 = vmatpush1.msra.mxu0 0.0
        %3006 = vmatprep.subr.mxu0 0.0
        %3007 = vmatpush1.msra.mxu0 0.0
        %3008 = vmatprep.subr.mxu0 0.0
        %3009 = vmatpush1.msra.mxu0 0.0
        %3010 = vmatprep.subr.mxu0 0.0
        %3011 = vmatpush1.msra.mxu0 0.0
        %3012 = vmatprep.subr.mxu0 0.0
        %3013 = vmatpush1.msra.mxu0 0.0
        %3014 = vmatprep.subr.mxu0 0.0
        %3015 = vmatpush1.msra.mxu0 0.0
        %3016 = vmatprep.subr.mxu0 0.0
        %3017 = vmatpush1.msra.mxu0 0.0
        %3018 = vmatprep.subr.mxu0 0.0
        %3019 = vmatpush1.msra.mxu0 0.0
        %3020 = vmatprep.subr.mxu0 0.0
        %3021 = vmatpush1.msra.mxu0 0.0
        %3022 = vmatprep.subr.mxu0 0.0
        %3023 = vmatpush1.msra.mxu0 0.0
        %3024 = vmatprep.subr.mxu0 0.0
        %3025 = vmatpush1.msra.mxu0 0.0
        %3026 = vmatprep.subr.mxu0 0.0
        %3027 = vmatpush1.msra.mxu0 0.0
        %3028 = vmatprep.subr.mxu0 0.0
        %3029 = vmatpush1.msra.mxu0 0.0
        %3030 = vmatprep.subr.mxu0 0.0
        %3031 = vmatpush1.msra.mxu0 0.0
        %3032 = vmatprep.subr.mxu0 0.0
        %3033 = vmatpush1.msra.mxu0 0.0
        %3034 = vmatprep.subr.mxu0 0.0
        %3035 = vmatpush1.msra.mxu0 0.0
        %3036 = vmatprep.mubr.f32.mxu0 0.0
        %3037 = vmatmul.mubr.f32.gmra.mrb[0].mxu0 %v2970
        %v3038 = vpop.f32.mrb[0].mxu0
        %v3039 = vadd.f32 %v2968, %v3038
        %v3040 = vpop.f32.mrb[0].mxu0
        %3041 = vdwg.mxu0
        %v3042 = vlaneseq
        %v3043 = vshrl.u32 %v3042, 7
        %v3044 = vsub.s32 7, %v3043
        %v3045 = vrot.slane %v1704, %v3044
        %3046 = vmatprep.subr.mxu0 0.0
        %3047 = vmatpush1.msra.mxu0 %v1692
        %3048 = vmatprep.subr.mxu0 0.0
        %3049 = vmatpush1.msra.mxu0 %v1693
        %3050 = vmatprep.subr.mxu0 0.0
        %3051 = vmatpush1.msra.mxu0 %v1694
        %3052 = vmatprep.subr.mxu0 0.0
        %3053 = vmatpush1.msra.mxu0 %v1695
        %3054 = vmatprep.subr.mxu0 0.0
        %3055 = vmatpush1.msra.mxu0 0.0
        %3056 = vmatprep.subr.mxu0 0.0
        %3057 = vmatpush1.msra.mxu0 0.0
        %3058 = vmatprep.subr.mxu0 0.0
        %3059 = vmatpush1.msra.mxu0 0.0
        %3060 = vmatprep.subr.mxu0 0.0
        %3061 = vmatpush1.msra.mxu0 0.0
        %3062 = vmatprep.subr.mxu0 0.0
        %3063 = vmatpush1.msra.mxu0 0.0
        %3064 = vmatprep.subr.mxu0 0.0
        %3065 = vmatpush1.msra.mxu0 0.0
        %3066 = vmatprep.subr.mxu0 0.0
        %3067 = vmatpush1.msra.mxu0 0.0
        %3068 = vmatprep.subr.mxu0 0.0
        %3069 = vmatpush1.msra.mxu0 0.0
        %3070 = vmatprep.subr.mxu0 0.0
        %3071 = vmatpush1.msra.mxu0 0.0
        %3072 = vmatprep.subr.mxu0 0.0
        %3073 = vmatpush1.msra.mxu0 0.0
        %3074 = vmatprep.subr.mxu0 0.0
        %3075 = vmatpush1.msra.mxu0 0.0
        %3076 = vmatprep.subr.mxu0 0.0
        %3077 = vmatpush1.msra.mxu0 0.0
        %3078 = vmatprep.subr.mxu0 0.0
        %3079 = vmatpush1.msra.mxu0 0.0
        %3080 = vmatprep.subr.mxu0 0.0
        %3081 = vmatpush1.msra.mxu0 0.0
        %3082 = vmatprep.subr.mxu0 0.0
        %3083 = vmatpush1.msra.mxu0 0.0
        %3084 = vmatprep.subr.mxu0 0.0
        %3085 = vmatpush1.msra.mxu0 0.0
        %3086 = vmatprep.subr.mxu0 0.0
        %3087 = vmatpush1.msra.mxu0 0.0
        %3088 = vmatprep.subr.mxu0 0.0
        %3089 = vmatpush1.msra.mxu0 0.0
        %3090 = vmatprep.subr.mxu0 0.0
        %3091 = vmatpush1.msra.mxu0 0.0
        %3092 = vmatprep.subr.mxu0 0.0
        %3093 = vmatpush1.msra.mxu0 0.0
        %3094 = vmatprep.subr.mxu0 0.0
        %3095 = vmatpush1.msra.mxu0 0.0
        %3096 = vmatprep.subr.mxu0 0.0
        %3097 = vmatpush1.msra.mxu0 0.0
        %3098 = vmatprep.subr.mxu0 0.0
        %3099 = vmatpush1.msra.mxu0 0.0
        %3100 = vmatprep.subr.mxu0 0.0
        %3101 = vmatpush1.msra.mxu0 0.0
        %3102 = vmatprep.subr.mxu0 0.0
        %3103 = vmatpush1.msra.mxu0 0.0
        %3104 = vmatprep.subr.mxu0 0.0
        %3105 = vmatpush1.msra.mxu0 0.0
        %3106 = vmatprep.subr.mxu0 0.0
        %3107 = vmatpush1.msra.mxu0 0.0
        %3108 = vmatprep.subr.mxu0 0.0
        %3109 = vmatpush1.msra.mxu0 0.0
        %3110 = vmatprep.mubr.f32.mxu0 0.0
        %3111 = vmatmul.mubr.f32.gmra.mrb[0].mxu0 %v2970
        %v3112 = vpop.f32.mrb[0].mxu0
        %v3113 = vadd.f32 %v3045, %v3112
        %v3114 = vpop.f32.mrb[0].mxu0
        %3115 = vdwg.mxu0
        %v3116 = vlaneseq
        %v3117 = vshrl.u32 %v3116, 7
        %v3118 = vsub.s32 0, %v3117
        %v3119 = vrot.slane %v1705, %v3118
        %v3121 = vsel %vm966, %v2963, 0
        %3123 = vmatprep.subr.mxu0 0.0
        %3124 = vmatpush1.msra.mxu0 %v1696
        %3125 = vmatprep.subr.mxu0 0.0
        %3126 = vmatpush1.msra.mxu0 %v1697
        %3127 = vmatprep.subr.mxu0 0.0
        %3128 = vmatpush1.msra.mxu0 %v1698
        %3129 = vmatprep.subr.mxu0 0.0
        %3130 = vmatpush1.msra.mxu0 %v1699
        %3131 = vmatprep.subr.mxu0 0.0
        %3132 = vmatpush1.msra.mxu0 0.0
        %3133 = vmatprep.subr.mxu0 0.0
        %3134 = vmatpush1.msra.mxu0 0.0
        %3135 = vmatprep.subr.mxu0 0.0
        %3136 = vmatpush1.msra.mxu0 0.0
        %3137 = vmatprep.subr.mxu0 0.0
        %3138 = vmatpush1.msra.mxu0 0.0
        %3139 = vmatprep.subr.mxu0 0.0
        %3140 = vmatpush1.msra.mxu0 0.0
        %3141 = vmatprep.subr.mxu0 0.0
        %3142 = vmatpush1.msra.mxu0 0.0
        %3143 = vmatprep.subr.mxu0 0.0
        %3144 = vmatpush1.msra.mxu0 0.0
        %3145 = vmatprep.subr.mxu0 0.0
        %3146 = vmatpush1.msra.mxu0 0.0
        %3147 = vmatprep.subr.mxu0 0.0
        %3148 = vmatpush1.msra.mxu0 0.0
        %3149 = vmatprep.subr.mxu0 0.0
        %3150 = vmatpush1.msra.mxu0 0.0
        %3151 = vmatprep.subr.mxu0 0.0
        %3152 = vmatpush1.msra.mxu0 0.0
        %3153 = vmatprep.subr.mxu0 0.0
        %3154 = vmatpush1.msra.mxu0 0.0
        %3155 = vmatprep.subr.mxu0 0.0
        %3156 = vmatpush1.msra.mxu0 0.0
        %3157 = vmatprep.subr.mxu0 0.0
        %3158 = vmatpush1.msra.mxu0 0.0
        %3159 = vmatprep.subr.mxu0 0.0
        %3160 = vmatpush1.msra.mxu0 0.0
        %3161 = vmatprep.subr.mxu0 0.0
        %3162 = vmatpush1.msra.mxu0 0.0
        %3163 = vmatprep.subr.mxu0 0.0
        %3164 = vmatpush1.msra.mxu0 0.0
        %3165 = vmatprep.subr.mxu0 0.0
        %3166 = vmatpush1.msra.mxu0 0.0
        %3167 = vmatprep.subr.mxu0 0.0
        %3168 = vmatpush1.msra.mxu0 0.0
        %3169 = vmatprep.subr.mxu0 0.0
        %3170 = vmatpush1.msra.mxu0 0.0
        %3171 = vmatprep.subr.mxu0 0.0
        %3172 = vmatpush1.msra.mxu0 0.0
        %3173 = vmatprep.subr.mxu0 0.0
        %3174 = vmatpush1.msra.mxu0 0.0
        %3175 = vmatprep.subr.mxu0 0.0
        %3176 = vmatpush1.msra.mxu0 0.0
        %3177 = vmatprep.subr.mxu0 0.0
        %3178 = vmatpush1.msra.mxu0 0.0
        %3179 = vmatprep.subr.mxu0 0.0
        %3180 = vmatpush1.msra.mxu0 0.0
        %3181 = vmatprep.subr.mxu0 0.0
        %3182 = vmatpush1.msra.mxu0 0.0
        %3183 = vmatprep.subr.mxu0 0.0
        %3184 = vmatpush1.msra.mxu0 0.0
        %3185 = vmatprep.subr.mxu0 0.0
        %3186 = vmatpush1.msra.mxu0 0.0
        %3187 = vmatprep.mubr.f32.mxu0 0.0
        %3188 = vmatmul.mubr.f32.gmra.mrb[0].mxu0 %v3121
        %v3189 = vpop.f32.mrb[0].mxu0
        %v3190 = vadd.f32 %v3119, %v3189
        %v3191 = vpop.f32.mrb[0].mxu0
        %3192 = vdwg.mxu0
        %v3194 = vsel %vm1951, %v3039, 0
        %v3197 = vsel %vm1951, %v3113, 0
        %3199 = vmatprep.subr.mxu0 0.0
        %3200 = vmatpush1.xpose.msra.mxu0 %v3197
        %3201 = vmatprep.subr.mxu0 0.0
        %3202 = vmatpush1.xpose.msra.mxu0 0.0
        %3203 = vmatprep.subr.mxu0 0.0
        %3204 = vmatpush1.xpose.msra.mxu0 0.0
        %3205 = vmatprep.subr.mxu0 0.0
        %3206 = vmatpush1.xpose.msra.mxu0 0.0
        %3207 = vmatprep.subr.mxu0 0.0
        %3208 = vmatpush1.xpose.msra.mxu0 0.0
        %3209 = vmatprep.subr.mxu0 0.0
        %3210 = vmatpush1.xpose.msra.mxu0 0.0
        %3211 = vmatprep.subr.mxu0 0.0
        %3212 = vmatpush1.xpose.msra.mxu0 0.0
        %3213 = vmatprep.subr.mxu0 0.0
        %3214 = vmatpush1.xpose.msra.mxu0 0.0
        %3215 = vmatprep.subr.mxu0 0.0
        %3216 = vmatpush1.xpose.msra.mxu0 0.0
        %3217 = vmatprep.subr.mxu0 0.0
        %3218 = vmatpush1.xpose.msra.mxu0 0.0
        %3219 = vmatprep.subr.mxu0 0.0
        %3220 = vmatpush1.xpose.msra.mxu0 0.0
        %3221 = vmatprep.subr.mxu0 0.0
        %3222 = vmatpush1.xpose.msra.mxu0 0.0
        %3223 = vmatprep.subr.mxu0 0.0
        %3224 = vmatpush1.xpose.msra.mxu0 0.0
        %3225 = vmatprep.subr.mxu0 0.0
        %3226 = vmatpush1.xpose.msra.mxu0 0.0
        %3227 = vmatprep.subr.mxu0 0.0
        %3228 = vmatpush1.xpose.msra.mxu0 0.0
        %3229 = vmatprep.subr.mxu0 0.0
        %3230 = vmatpush1.xpose.msra.mxu0 0.0
        %3231 = vmatprep.subr.mxu0 0.0
        %3232 = vmatpush1.xpose.msra.mxu0 0.0
        %3233 = vmatprep.subr.mxu0 0.0
        %3234 = vmatpush1.xpose.msra.mxu0 0.0
        %3235 = vmatprep.subr.mxu0 0.0
        %3236 = vmatpush1.xpose.msra.mxu0 0.0
        %3237 = vmatprep.subr.mxu0 0.0
        %3238 = vmatpush1.xpose.msra.mxu0 0.0
        %3239 = vmatprep.subr.mxu0 0.0
        %3240 = vmatpush1.xpose.msra.mxu0 0.0
        %3241 = vmatprep.subr.mxu0 0.0
        %3242 = vmatpush1.xpose.msra.mxu0 0.0
        %3243 = vmatprep.subr.mxu0 0.0
        %3244 = vmatpush1.xpose.msra.mxu0 0.0
        %3245 = vmatprep.subr.mxu0 0.0
        %3246 = vmatpush1.xpose.msra.mxu0 0.0
        %3247 = vmatprep.subr.mxu0 0.0
        %3248 = vmatpush1.xpose.msra.mxu0 0.0
        %3249 = vmatprep.subr.mxu0 0.0
        %3250 = vmatpush1.xpose.msra.mxu0 0.0
        %3251 = vmatprep.subr.mxu0 0.0
        %3252 = vmatpush1.xpose.msra.mxu0 0.0
        %3253 = vmatprep.subr.mxu0 0.0
        %3254 = vmatpush1.xpose.msra.mxu0 0.0
        %3255 = vmatprep.subr.mxu0 0.0
        %3256 = vmatpush1.xpose.msra.mxu0 0.0
        %3257 = vmatprep.subr.mxu0 0.0
        %3258 = vmatpush1.xpose.msra.mxu0 0.0
        %3259 = vmatprep.subr.mxu0 0.0
        %3260 = vmatpush1.xpose.msra.mxu0 0.0
        %3261 = vmatprep.subr.mxu0 0.0
        %3262 = vmatpush1.xpose.msra.mxu0 0.0
        %3263 = vmatprep.mubr.f32.mxu0 0.0
        %3264 = vmatmul.mubr.f32.gmra.mrb[0].mxu0 %v3194
        %v3265 = vpop.f32.mrb[0].mxu0
        %v3266 = vadd.f32 0.0, %v3265
        %v3267 = vpop.f32.mrb[0].mxu0
        %3268 = vdwg.mxu0
        %v3269 = vmul.f32 %v3266, 0.35355338
        %v3270 = vsel %vm1951, %v3269, -inf
        %3271 = vmax.xlane.f32.xlu0 %v3270
        %v3272 = vpop.xlane.xlu0 %3271
        %v3273 = vsub.f32 %v3269, %v3272
        %v3274 = vmul.f32 %v3273, 1.442695
        %v3275 = vpow.pop %v3274
        %v3276 = vsel %vm1951, %v3275, 0.0
        %3277 = vadd.xlane.f32.xlu0 %v3276
        %v3278 = vpop.xlane.xlu0 %3277
        %v3279 = vrcp.pop %v3278
        %v3280 = vmul.f32 %v3275, %v3279
        %v3282 = vsel %vm1951, %v3280, 0
        %3284 = vmatprep.subr.mxu0 0.0
        %3285 = vmatpush1.msra.mxu0 %v3190
        %3286 = vmatprep.subr.mxu0 0.0
        %3287 = vmatpush1.msra.mxu0 0.0
        %3288 = vmatprep.subr.mxu0 0.0
        %3289 = vmatpush1.msra.mxu0 0.0
        %3290 = vmatprep.subr.mxu0 0.0
        %3291 = vmatpush1.msra.mxu0 0.0
        %3292 = vmatprep.subr.mxu0 0.0
        %3293 = vmatpush1.msra.mxu0 0.0
        %3294 = vmatprep.subr.mxu0 0.0
        %3295 = vmatpush1.msra.mxu0 0.0
        %3296 = vmatprep.subr.mxu0 0.0
        %3297 = vmatpush1.msra.mxu0 0.0
        %3298 = vmatprep.subr.mxu0 0.0
        %3299 = vmatpush1.msra.mxu0 0.0
        %3300 = vmatprep.subr.mxu0 0.0
        %3301 = vmatpush1.msra.mxu0 0.0
        %3302 = vmatprep.subr.mxu0 0.0
        %3303 = vmatpush1.msra.mxu0 0.0
        %3304 = vmatprep.subr.mxu0 0.0
        %3305 = vmatpush1.msra.mxu0 0.0
        %3306 = vmatprep.subr.mxu0 0.0
        %3307 = vmatpush1.msra.mxu0 0.0
        %3308 = vmatprep.subr.mxu0 0.0
        %3309 = vmatpush1.msra.mxu0 0.0
        %3310 = vmatprep.subr.mxu0 0.0
        %3311 = vmatpush1.msra.mxu0 0.0
        %3312 = vmatprep.subr.mxu0 0.0
        %3313 = vmatpush1.msra.mxu0 0.0
        %3314 = vmatprep.subr.mxu0 0.0
        %3315 = vmatpush1.msra.mxu0 0.0
        %3316 = vmatprep.subr.mxu0 0.0
        %3317 = vmatpush1.msra.mxu0 0.0
        %3318 = vmatprep.subr.mxu0 0.0
        %3319 = vmatpush1.msra.mxu0 0.0
        %3320 = vmatprep.subr.mxu0 0.0
        %3321 = vmatpush1.msra.mxu0 0.0
        %3322 = vmatprep.subr.mxu0 0.0
        %3323 = vmatpush1.msra.mxu0 0.0
        %3324 = vmatprep.subr.mxu0 0.0
        %3325 = vmatpush1.msra.mxu0 0.0
        %3326 = vmatprep.subr.mxu0 0.0
        %3327 = vmatpush1.msra.mxu0 0.0
        %3328 = vmatprep.subr.mxu0 0.0
        %3329 = vmatpush1.msra.mxu0 0.0
        %3330 = vmatprep.subr.mxu0 0.0
        %3331 = vmatpush1.msra.mxu0 0.0
        %3332 = vmatprep.subr.mxu0 0.0
        %3333 = vmatpush1.msra.mxu0 0.0
        %3334 = vmatprep.subr.mxu0 0.0
        %3335 = vmatpush1.msra.mxu0 0.0
        %3336 = vmatprep.subr.mxu0 0.0
        %3337 = vmatpush1.msra.mxu0 0.0
        %3338 = vmatprep.subr.mxu0 0.0
        %3339 = vmatpush1.msra.mxu0 0.0
        %3340 = vmatprep.subr.mxu0 0.0
        %3341 = vmatpush1.msra.mxu0 0.0
        %3342 = vmatprep.subr.mxu0 0.0
        %3343 = vmatpush1.msra.mxu0 0.0
        %3344 = vmatprep.subr.mxu0 0.0
        %3345 = vmatpush1.msra.mxu0 0.0
        %3346 = vmatprep.subr.mxu0 0.0
        %3347 = vmatpush1.msra.mxu0 0.0
        %3348 = vmatprep.mubr.f32.mxu0 0.0
        %3349 = vmatmul.mubr.f32.gmra.mrb[0].mxu0 %v3282
        %v3350 = vpop.f32.mrb[0].mxu0
        %v3351 = vadd.f32 0.0, %v3350
        %v3352 = vpop.f32.mrb[0].mxu0
        %3353 = vdwg.mxu0
        %3354 = vrot.lane.b32.xlu0 %v3039, 120
        %v3355 = vpop.permute.xlu0 %3354
        %3356 = vrot.lane.b32.xlu0 %v3113, 120
        %v3357 = vpop.permute.xlu0 %3356
        %v3358 = vsel %vm1951, %v3355, 0
        %v3360 = vsel %vm1951, %v3357, 0
        %3362 = vmatprep.subr.mxu0 0.0
        %3363 = vmatpush1.xpose.msra.mxu0 %v3360
        %3364 = vmatprep.subr.mxu0 0.0
        %3365 = vmatpush1.xpose.msra.mxu0 0.0
        %3366 = vmatprep.subr.mxu0 0.0
        %3367 = vmatpush1.xpose.msra.mxu0 0.0
        %3368 = vmatprep.subr.mxu0 0.0
        %3369 = vmatpush1.xpose.msra.mxu0 0.0
        %3370 = vmatprep.subr.mxu0 0.0
        %3371 = vmatpush1.xpose.msra.mxu0 0.0
        %3372 = vmatprep.subr.mxu0 0.0
        %3373 = vmatpush1.xpose.msra.mxu0 0.0
        %3374 = vmatprep.subr.mxu0 0.0
        %3375 = vmatpush1.xpose.msra.mxu0 0.0
        %3376 = vmatprep.subr.mxu0 0.0
        %3377 = vmatpush1.xpose.msra.mxu0 0.0
        %3378 = vmatprep.subr.mxu0 0.0
        %3379 = vmatpush1.xpose.msra.mxu0 0.0
        %3380 = vmatprep.subr.mxu0 0.0
        %3381 = vmatpush1.xpose.msra.mxu0 0.0
        %3382 = vmatprep.subr.mxu0 0.0
        %3383 = vmatpush1.xpose.msra.mxu0 0.0
        %3384 = vmatprep.subr.mxu0 0.0
        %3385 = vmatpush1.xpose.msra.mxu0 0.0
        %3386 = vmatprep.subr.mxu0 0.0
        %3387 = vmatpush1.xpose.msra.mxu0 0.0
        %3388 = vmatprep.subr.mxu0 0.0
        %3389 = vmatpush1.xpose.msra.mxu0 0.0
        %3390 = vmatprep.subr.mxu0 0.0
        %3391 = vmatpush1.xpose.msra.mxu0 0.0
        %3392 = vmatprep.subr.mxu0 0.0
        %3393 = vmatpush1.xpose.msra.mxu0 0.0
        %3394 = vmatprep.subr.mxu0 0.0
        %3395 = vmatpush1.xpose.msra.mxu0 0.0
        %3396 = vmatprep.subr.mxu0 0.0
        %3397 = vmatpush1.xpose.msra.mxu0 0.0
        %3398 = vmatprep.subr.mxu0 0.0
        %3399 = vmatpush1.xpose.msra.mxu0 0.0
        %3400 = vmatprep.subr.mxu0 0.0
        %3401 = vmatpush1.xpose.msra.mxu0 0.0
        %3402 = vmatprep.subr.mxu0 0.0
        %3403 = vmatpush1.xpose.msra.mxu0 0.0
        %3404 = vmatprep.subr.mxu0 0.0
        %3405 = vmatpush1.xpose.msra.mxu0 0.0
        %3406 = vmatprep.subr.mxu0 0.0
        %3407 = vmatpush1.xpose.msra.mxu0 0.0
        %3408 = vmatprep.subr.mxu0 0.0
        %3409 = vmatpush1.xpose.msra.mxu0 0.0
        %3410 = vmatprep.subr.mxu0 0.0
        %3411 = vmatpush1.xpose.msra.mxu0 0.0
        %3412 = vmatprep.subr.mxu0 0.0
        %3413 = vmatpush1.xpose.msra.mxu0 0.0
        %3414 = vmatprep.subr.mxu0 0.0
        %3415 = vmatpush1.xpose.msra.mxu0 0.0
        %3416 = vmatprep.subr.mxu0 0.0
        %3417 = vmatpush1.xpose.msra.mxu0 0.0
        %3418 = vmatprep.subr.mxu0 0.0
        %3419 = vmatpush1.xpose.msra.mxu0 0.0
        %3420 = vmatprep.subr.mxu0 0.0
        %3421 = vmatpush1.xpose.msra.mxu0 0.0
        %3422 = vmatprep.subr.mxu0 0.0
        %3423 = vmatpush1.xpose.msra.mxu0 0.0
        %3424 = vmatprep.subr.mxu0 0.0
        %3425 = vmatpush1.xpose.msra.mxu0 0.0
        %3426 = vmatprep.mubr.f32.mxu0 0.0
        %3427 = vmatmul.mubr.f32.gmra.mrb[0].mxu0 %v3358
        %v3428 = vpop.f32.mrb[0].mxu0
        %v3429 = vadd.f32 0.0, %v3428
        %v3430 = vpop.f32.mrb[0].mxu0
        %3431 = vdwg.mxu0
        %v3432 = vmul.f32 %v3429, 0.35355338
        %v3433 = vsel %vm1951, %v3432, -inf
        %3434 = vmax.xlane.f32.xlu0 %v3433
        %v3435 = vpop.xlane.xlu0 %3434
        %v3436 = vsub.f32 %v3432, %v3435
        %v3437 = vmul.f32 %v3436, 1.442695
        %v3438 = vpow.pop %v3437
        %v3439 = vsel %vm1951, %v3438, 0.0
        %3440 = vadd.xlane.f32.xlu0 %v3439
        %v3441 = vpop.xlane.xlu0 %3440
        %v3442 = vrcp.pop %v3441
        %v3443 = vmul.f32 %v3438, %v3442
        %3445 = vrot.lane.b32.xlu0 %v3190, 120
        %v3446 = vpop.permute.xlu0 %3445
        %v3449 = vsel %vm1951, %v3443, 0
        %3451 = vmatprep.subr.mxu0 0.0
        %3452 = vmatpush1.msra.mxu0 %v3446
        %3453 = vmatprep.subr.mxu0 0.0
        %3454 = vmatpush1.msra.mxu0 0.0
        %3455 = vmatprep.subr.mxu0 0.0
        %3456 = vmatpush1.msra.mxu0 0.0
        %3457 = vmatprep.subr.mxu0 0.0
        %3458 = vmatpush1.msra.mxu0 0.0
        %3459 = vmatprep.subr.mxu0 0.0
        %3460 = vmatpush1.msra.mxu0 0.0
        %3461 = vmatprep.subr.mxu0 0.0
        %3462 = vmatpush1.msra.mxu0 0.0
        %3463 = vmatprep.subr.mxu0 0.0
        %3464 = vmatpush1.msra.mxu0 0.0
        %3465 = vmatprep.subr.mxu0 0.0
        %3466 = vmatpush1.msra.mxu0 0.0
        %3467 = vmatprep.subr.mxu0 0.0
        %3468 = vmatpush1.msra.mxu0 0.0
        %3469 = vmatprep.subr.mxu0 0.0
        %3470 = vmatpush1.msra.mxu0 0.0
        %3471 = vmatprep.subr.mxu0 0.0
        %3472 = vmatpush1.msra.mxu0 0.0
        %3473 = vmatprep.subr.mxu0 0.0
        %3474 = vmatpush1.msra.mxu0 0.0
        %3475 = vmatprep.subr.mxu0 0.0
        %3476 = vmatpush1.msra.mxu0 0.0
        %3477 = vmatprep.subr.mxu0 0.0
        %3478 = vmatpush1.msra.mxu0 0.0
        %3479 = vmatprep.subr.mxu0 0.0
        %3480 = vmatpush1.msra.mxu0 0.0
        %3481 = vmatprep.subr.mxu0 0.0
        %3482 = vmatpush1.msra.mxu0 0.0
        %3483 = vmatprep.subr.mxu0 0.0
        %3484 = vmatpush1.msra.mxu0 0.0
        %3485 = vmatprep.subr.mxu0 0.0
        %3486 = vmatpush1.msra.mxu0 0.0
        %3487 = vmatprep.subr.mxu0 0.0
        %3488 = vmatpush1.msra.mxu0 0.0
        %3489 = vmatprep.subr.mxu0 0.0
        %3490 = vmatpush1.msra.mxu0 0.0
        %3491 = vmatprep.subr.mxu0 0.0
        %3492 = vmatpush1.msra.mxu0 0.0
        %3493 = vmatprep.subr.mxu0 0.0
        %3494 = vmatpush1.msra.mxu0 0.0
        %3495 = vmatprep.subr.mxu0 0.0
        %3496 = vmatpush1.msra.mxu0 0.0
        %3497 = vmatprep.subr.mxu0 0.0
        %3498 = vmatpush1.msra.mxu0 0.0
        %3499 = vmatprep.subr.mxu0 0.0
        %3500 = vmatpush1.msra.mxu0 0.0
        %3501 = vmatprep.subr.mxu0 0.0
        %3502 = vmatpush1.msra.mxu0 0.0
        %3503 = vmatprep.subr.mxu0 0.0
        %3504 = vmatpush1.msra.mxu0 0.0
        %3505 = vmatprep.subr.mxu0 0.0
        %3506 = vmatpush1.msra.mxu0 0.0
        %3507 = vmatprep.subr.mxu0 0.0
        %3508 = vmatpush1.msra.mxu0 0.0
        %3509 = vmatprep.subr.mxu0 0.0
        %3510 = vmatpush1.msra.mxu0 0.0
        %3511 = vmatprep.subr.mxu0 0.0
        %3512 = vmatpush1.msra.mxu0 0.0
        %3513 = vmatprep.subr.mxu0 0.0
        %3514 = vmatpush1.msra.mxu0 0.0
        %3515 = vmatprep.mubr.f32.mxu0 0.0
        %3516 = vmatmul.mubr.f32.gmra.mrb[0].mxu0 %v3449
        %v3517 = vpop.f32.mrb[0].mxu0
        %v3518 = vadd.f32 0.0, %v3517
        %v3519 = vpop.f32.mrb[0].mxu0
        %3520 = vdwg.mxu0
        %v3522 = vsel %vm1951, %v3518, 0
        %3524 = vmatprep.subr.mxu0 0.0
        %3525 = vmatpush1.msra.mxu0 %v1701
        %3526 = vmatprep.subr.mxu0 0.0
        %3527 = vmatpush1.msra.mxu0 0.0
        %3528 = vmatprep.subr.mxu0 0.0
        %3529 = vmatpush1.msra.mxu0 0.0
        %3530 = vmatprep.subr.mxu0 0.0
        %3531 = vmatpush1.msra.mxu0 0.0
        %3532 = vmatprep.subr.mxu0 0.0
        %3533 = vmatpush1.msra.mxu0 0.0
        %3534 = vmatprep.subr.mxu0 0.0
        %3535 = vmatpush1.msra.mxu0 0.0
        %3536 = vmatprep.subr.mxu0 0.0
        %3537 = vmatpush1.msra.mxu0 0.0
        %3538 = vmatprep.subr.mxu0 0.0
        %3539 = vmatpush1.msra.mxu0 0.0
        %3540 = vmatprep.subr.mxu0 0.0
        %3541 = vmatpush1.msra.mxu0 0.0
        %3542 = vmatprep.subr.mxu0 0.0
        %3543 = vmatpush1.msra.mxu0 0.0
        %3544 = vmatprep.subr.mxu0 0.0
        %3545 = vmatpush1.msra.mxu0 0.0
        %3546 = vmatprep.subr.mxu0 0.0
        %3547 = vmatpush1.msra.mxu0 0.0
        %3548 = vmatprep.subr.mxu0 0.0
        %3549 = vmatpush1.msra.mxu0 0.0
        %3550 = vmatprep.subr.mxu0 0.0
        %3551 = vmatpush1.msra.mxu0 0.0
        %3552 = vmatprep.subr.mxu0 0.0
        %3553 = vmatpush1.msra.mxu0 0.0
        %3554 = vmatprep.subr.mxu0 0.0
        %3555 = vmatpush1.msra.mxu0 0.0
        %3556 = vmatprep.subr.mxu0 0.0
        %3557 = vmatpush1.msra.mxu0 0.0
        %3558 = vmatprep.subr.mxu0 0.0
        %3559 = vmatpush1.msra.mxu0 0.0
        %3560 = vmatprep.subr.mxu0 0.0
        %3561 = vmatpush1.msra.mxu0 0.0
        %3562 = vmatprep.subr.mxu0 0.0
        %3563 = vmatpush1.msra.mxu0 0.0
        %3564 = vmatprep.subr.mxu0 0.0
        %3565 = vmatpush1.msra.mxu0 0.0
        %3566 = vmatprep.subr.mxu0 0.0
        %3567 = vmatpush1.msra.mxu0 0.0
        %3568 = vmatprep.subr.mxu0 0.0
        %3569 = vmatpush1.msra.mxu0 0.0
        %3570 = vmatprep.subr.mxu0 0.0
        %3571 = vmatpush1.msra.mxu0 0.0
        %3572 = vmatprep.subr.mxu0 0.0
        %3573 = vmatpush1.msra.mxu0 0.0
        %3574 = vmatprep.subr.mxu0 0.0
        %3575 = vmatpush1.msra.mxu0 0.0
        %3576 = vmatprep.subr.mxu0 0.0
        %3577 = vmatpush1.msra.mxu0 0.0
        %3578 = vmatprep.subr.mxu0 0.0
        %3579 = vmatpush1.msra.mxu0 0.0
        %3580 = vmatprep.subr.mxu0 0.0
        %3581 = vmatpush1.msra.mxu0 0.0
        %3582 = vmatprep.subr.mxu0 0.0
        %3583 = vmatpush1.msra.mxu0 0.0
        %3584 = vmatprep.subr.mxu0 0.0
        %3585 = vmatpush1.msra.mxu0 0.0
        %3586 = vmatprep.subr.mxu0 0.0
        %3587 = vmatpush1.msra.mxu0 0.0
        %3588 = vmatprep.mubr.f32.mxu0 0.0
        %3589 = vmatmul.mubr.f32.gmra.mrb[0].mxu0 %v3522
        %v3590 = vpop.f32.mrb[0].mxu0
        %v3591 = vadd.f32 0.0, %v3590
        %v3592 = vpop.f32.mrb[0].mxu0
        %3593 = vdwg.mxu0
        %v3595 = vsel %vm1951, %v3351, 0
        %3597 = vmatprep.subr.mxu0 0.0
        %3598 = vmatpush1.msra.mxu0 %v1700
        %3599 = vmatprep.subr.mxu0 0.0
        %3600 = vmatpush1.msra.mxu0 0.0
        %3601 = vmatprep.subr.mxu0 0.0
        %3602 = vmatpush1.msra.mxu0 0.0
        %3603 = vmatprep.subr.mxu0 0.0
        %3604 = vmatpush1.msra.mxu0 0.0
        %3605 = vmatprep.subr.mxu0 0.0
        %3606 = vmatpush1.msra.mxu0 0.0
        %3607 = vmatprep.subr.mxu0 0.0
        %3608 = vmatpush1.msra.mxu0 0.0
        %3609 = vmatprep.subr.mxu0 0.0
        %3610 = vmatpush1.msra.mxu0 0.0
        %3611 = vmatprep.subr.mxu0 0.0
        %3612 = vmatpush1.msra.mxu0 0.0
        %3613 = vmatprep.subr.mxu0 0.0
        %3614 = vmatpush1.msra.mxu0 0.0
        %3615 = vmatprep.subr.mxu0 0.0
        %3616 = vmatpush1.msra.mxu0 0.0
        %3617 = vmatprep.subr.mxu0 0.0
        %3618 = vmatpush1.msra.mxu0 0.0
        %3619 = vmatprep.subr.mxu0 0.0
        %3620 = vmatpush1.msra.mxu0 0.0
        %3621 = vmatprep.subr.mxu0 0.0
        %3622 = vmatpush1.msra.mxu0 0.0
        %3623 = vmatprep.subr.mxu0 0.0
        %3624 = vmatpush1.msra.mxu0 0.0
        %3625 = vmatprep.subr.mxu0 0.0
        %3626 = vmatpush1.msra.mxu0 0.0
        %3627 = vmatprep.subr.mxu0 0.0
        %3628 = vmatpush1.msra.mxu0 0.0
        %3629 = vmatprep.subr.mxu0 0.0
        %3630 = vmatpush1.msra.mxu0 0.0
        %3631 = vmatprep.subr.mxu0 0.0
        %3632 = vmatpush1.msra.mxu0 0.0
        %3633 = vmatprep.subr.mxu0 0.0
        %3634 = vmatpush1.msra.mxu0 0.0
        %3635 = vmatprep.subr.mxu0 0.0
        %3636 = vmatpush1.msra.mxu0 0.0
        %3637 = vmatprep.subr.mxu0 0.0
        %3638 = vmatpush1.msra.mxu0 0.0
        %3639 = vmatprep.subr.mxu0 0.0
        %3640 = vmatpush1.msra.mxu0 0.0
        %3641 = vmatprep.subr.mxu0 0.0
        %3642 = vmatpush1.msra.mxu0 0.0
        %3643 = vmatprep.subr.mxu0 0.0
        %3644 = vmatpush1.msra.mxu0 0.0
        %3645 = vmatprep.subr.mxu0 0.0
        %3646 = vmatpush1.msra.mxu0 0.0
        %3647 = vmatprep.subr.mxu0 0.0
        %3648 = vmatpush1.msra.mxu0 0.0
        %3649 = vmatprep.subr.mxu0 0.0
        %3650 = vmatpush1.msra.mxu0 0.0
        %3651 = vmatprep.subr.mxu0 0.0
        %3652 = vmatpush1.msra.mxu0 0.0
        %3653 = vmatprep.subr.mxu0 0.0
        %3654 = vmatpush1.msra.mxu0 0.0
        %3655 = vmatprep.subr.mxu0 0.0
        %3656 = vmatpush1.msra.mxu0 0.0
        %3657 = vmatprep.subr.mxu0 0.0
        %3658 = vmatpush1.msra.mxu0 0.0
        %3659 = vmatprep.subr.mxu0 0.0
        %3660 = vmatpush1.msra.mxu0 0.0
        %3661 = vmatprep.mubr.f32.mxu0 0.0
        %3662 = vmatmul.mubr.f32.gmra.mrb[0].mxu0 %v3595
        %v3663 = vpop.f32.mrb[0].mxu0
        %v3664 = vadd.f32 %v3591, %v3663
        %v3665 = vpop.f32.mrb[0].mxu0
        %3666 = vdwg.mxu0
        %3667 = vrot.lane.b32.xlu0 %v3039, 112
        %v3668 = vpop.permute.xlu0 %3667
        %3669 = vrot.lane.b32.xlu0 %v3113, 112
        %v3670 = vpop.permute.xlu0 %3669
        %v3671 = vsel %vm1951, %v3668, 0
        %v3673 = vsel %vm1951, %v3670, 0
        %3675 = vmatprep.subr.mxu0 0.0
        %3676 = vmatpush1.xpose.msra.mxu0 %v3673
        %3677 = vmatprep.subr.mxu0 0.0
        %3678 = vmatpush1.xpose.msra.mxu0 0.0
        %3679 = vmatprep.subr.mxu0 0.0
        %3680 = vmatpush1.xpose.msra.mxu0 0.0
        %3681 = vmatprep.subr.mxu0 0.0
        %3682 = vmatpush1.xpose.msra.mxu0 0.0
        %3683 = vmatprep.subr.mxu0 0.0
        %3684 = vmatpush1.xpose.msra.mxu0 0.0
        %3685 = vmatprep.subr.mxu0 0.0
        %3686 = vmatpush1.xpose.msra.mxu0 0.0
        %3687 = vmatprep.subr.mxu0 0.0
        %3688 = vmatpush1.xpose.msra.mxu0 0.0
        %3689 = vmatprep.subr.mxu0 0.0
        %3690 = vmatpush1.xpose.msra.mxu0 0.0
        %3691 = vmatprep.subr.mxu0 0.0
        %3692 = vmatpush1.xpose.msra.mxu0 0.0
        %3693 = vmatprep.subr.mxu0 0.0
        %3694 = vmatpush1.xpose.msra.mxu0 0.0
        %3695 = vmatprep.subr.mxu0 0.0
        %3696 = vmatpush1.xpose.msra.mxu0 0.0
        %3697 = vmatprep.subr.mxu0 0.0
        %3698 = vmatpush1.xpose.msra.mxu0 0.0
        %3699 = vmatprep.subr.mxu0 0.0
        %3700 = vmatpush1.xpose.msra.mxu0 0.0
        %3701 = vmatprep.subr.mxu0 0.0
        %3702 = vmatpush1.xpose.msra.mxu0 0.0
        %3703 = vmatprep.subr.mxu0 0.0
        %3704 = vmatpush1.xpose.msra.mxu0 0.0
        %3705 = vmatprep.subr.mxu0 0.0
        %3706 = vmatpush1.xpose.msra.mxu0 0.0
        %3707 = vmatprep.subr.mxu0 0.0
        %3708 = vmatpush1.xpose.msra.mxu0 0.0
        %3709 = vmatprep.subr.mxu0 0.0
        %3710 = vmatpush1.xpose.msra.mxu0 0.0
        %3711 = vmatprep.subr.mxu0 0.0
        %3712 = vmatpush1.xpose.msra.mxu0 0.0
        %3713 = vmatprep.subr.mxu0 0.0
        %3714 = vmatpush1.xpose.msra.mxu0 0.0
        %3715 = vmatprep.subr.mxu0 0.0
        %3716 = vmatpush1.xpose.msra.mxu0 0.0
        %3717 = vmatprep.subr.mxu0 0.0
        %3718 = vmatpush1.xpose.msra.mxu0 0.0
        %3719 = vmatprep.subr.mxu0 0.0
        %3720 = vmatpush1.xpose.msra.mxu0 0.0
        %3721 = vmatprep.subr.mxu0 0.0
        %3722 = vmatpush1.xpose.msra.mxu0 0.0
        %3723 = vmatprep.subr.mxu0 0.0
        %3724 = vmatpush1.xpose.msra.mxu0 0.0
        %3725 = vmatprep.subr.mxu0 0.0
        %3726 = vmatpush1.xpose.msra.mxu0 0.0
        %3727 = vmatprep.subr.mxu0 0.0
        %3728 = vmatpush1.xpose.msra.mxu0 0.0
        %3729 = vmatprep.subr.mxu0 0.0
        %3730 = vmatpush1.xpose.msra.mxu0 0.0
        %3731 = vmatprep.subr.mxu0 0.0
        %3732 = vmatpush1.xpose.msra.mxu0 0.0
        %3733 = vmatprep.subr.mxu0 0.0
        %3734 = vmatpush1.xpose.msra.mxu0 0.0
        %3735 = vmatprep.subr.mxu0 0.0
        %3736 = vmatpush1.xpose.msra.mxu0 0.0
        %3737 = vmatprep.subr.mxu0 0.0
        %3738 = vmatpush1.xpose.msra.mxu0 0.0
        %3739 = vmatprep.mubr.f32.mxu0 0.0
        %3740 = vmatmul.mubr.f32.gmra.mrb[0].mxu0 %v3671
        %v3741 = vpop.f32.mrb[0].mxu0
        %v3742 = vadd.f32 0.0, %v3741
        %v3743 = vpop.f32.mrb[0].mxu0
        %3744 = vdwg.mxu0
        %v3745 = vmul.f32 %v3742, 0.35355338
        %v3746 = vsel %vm1951, %v3745, -inf
        %3747 = vmax.xlane.f32.xlu0 %v3746
        %v3748 = vpop.xlane.xlu0 %3747
        %v3749 = vsub.f32 %v3745, %v3748
        %v3750 = vmul.f32 %v3749, 1.442695
        %v3751 = vpow.pop %v3750
        %v3752 = vsel %vm1951, %v3751, 0.0
        %3753 = vadd.xlane.f32.xlu0 %v3752
        %v3754 = vpop.xlane.xlu0 %3753
        %v3755 = vrcp.pop %v3754
        %v3756 = vmul.f32 %v3751, %v3755
        %3757 = vrot.lane.b32.xlu0 %v3190, 112
        %v3758 = vpop.permute.xlu0 %3757
        %v3761 = vsel %vm1951, %v3756, 0
        %3763 = vmatprep.subr.mxu0 0.0
        %3764 = vmatpush1.msra.mxu0 %v3758
        %3765 = vmatprep.subr.mxu0 0.0
        %3766 = vmatpush1.msra.mxu0 0.0
        %3767 = vmatprep.subr.mxu0 0.0
        %3768 = vmatpush1.msra.mxu0 0.0
        %3769 = vmatprep.subr.mxu0 0.0
        %3770 = vmatpush1.msra.mxu0 0.0
        %3771 = vmatprep.subr.mxu0 0.0
        %3772 = vmatpush1.msra.mxu0 0.0
        %3773 = vmatprep.subr.mxu0 0.0
        %3774 = vmatpush1.msra.mxu0 0.0
        %3775 = vmatprep.subr.mxu0 0.0
        %3776 = vmatpush1.msra.mxu0 0.0
        %3777 = vmatprep.subr.mxu0 0.0
        %3778 = vmatpush1.msra.mxu0 0.0
        %3779 = vmatprep.subr.mxu0 0.0
        %3780 = vmatpush1.msra.mxu0 0.0
        %3781 = vmatprep.subr.mxu0 0.0
        %3782 = vmatpush1.msra.mxu0 0.0
        %3783 = vmatprep.subr.mxu0 0.0
        %3784 = vmatpush1.msra.mxu0 0.0
        %3785 = vmatprep.subr.mxu0 0.0
        %3786 = vmatpush1.msra.mxu0 0.0
        %3787 = vmatprep.subr.mxu0 0.0
        %3788 = vmatpush1.msra.mxu0 0.0
        %3789 = vmatprep.subr.mxu0 0.0
        %3790 = vmatpush1.msra.mxu0 0.0
        %3791 = vmatprep.subr.mxu0 0.0
        %3792 = vmatpush1.msra.mxu0 0.0
        %3793 = vmatprep.subr.mxu0 0.0
        %3794 = vmatpush1.msra.mxu0 0.0
        %3795 = vmatprep.subr.mxu0 0.0
        %3796 = vmatpush1.msra.mxu0 0.0
        %3797 = vmatprep.subr.mxu0 0.0
        %3798 = vmatpush1.msra.mxu0 0.0
        %3799 = vmatprep.subr.mxu0 0.0
        %3800 = vmatpush1.msra.mxu0 0.0
        %3801 = vmatprep.subr.mxu0 0.0
        %3802 = vmatpush1.msra.mxu0 0.0
        %3803 = vmatprep.subr.mxu0 0.0
        %3804 = vmatpush1.msra.mxu0 0.0
        %3805 = vmatprep.subr.mxu0 0.0
        %3806 = vmatpush1.msra.mxu0 0.0
        %3807 = vmatprep.subr.mxu0 0.0
        %3808 = vmatpush1.msra.mxu0 0.0
        %3809 = vmatprep.subr.mxu0 0.0
        %3810 = vmatpush1.msra.mxu0 0.0
        %3811 = vmatprep.subr.mxu0 0.0
        %3812 = vmatpush1.msra.mxu0 0.0
        %3813 = vmatprep.subr.mxu0 0.0
        %3814 = vmatpush1.msra.mxu0 0.0
        %3815 = vmatprep.subr.mxu0 0.0
        %3816 = vmatpush1.msra.mxu0 0.0
        %3817 = vmatprep.subr.mxu0 0.0
        %3818 = vmatpush1.msra.mxu0 0.0
        %3819 = vmatprep.subr.mxu0 0.0
        %3820 = vmatpush1.msra.mxu0 0.0
        %3821 = vmatprep.subr.mxu0 0.0
        %3822 = vmatpush1.msra.mxu0 0.0
        %3823 = vmatprep.subr.mxu0 0.0
        %3824 = vmatpush1.msra.mxu0 0.0
        %3825 = vmatprep.subr.mxu0 0.0
        %3826 = vmatpush1.msra.mxu0 0.0
        %3827 = vmatprep.mubr.f32.mxu0 0.0
        %3828 = vmatmul.mubr.f32.gmra.mrb[0].mxu0 %v3761
        %v3829 = vpop.f32.mrb[0].mxu0
        %v3830 = vadd.f32 0.0, %v3829
        %v3831 = vpop.f32.mrb[0].mxu0
        %3832 = vdwg.mxu0
        %v3834 = vsel %vm1951, %v3830, 0
        %3836 = vmatprep.subr.mxu0 0.0
        %3837 = vmatpush1.msra.mxu0 %v1702
        %3838 = vmatprep.subr.mxu0 0.0
        %3839 = vmatpush1.msra.mxu0 0.0
        %3840 = vmatprep.subr.mxu0 0.0
        %3841 = vmatpush1.msra.mxu0 0.0
        %3842 = vmatprep.subr.mxu0 0.0
        %3843 = vmatpush1.msra.mxu0 0.0
        %3844 = vmatprep.subr.mxu0 0.0
        %3845 = vmatpush1.msra.mxu0 0.0
        %3846 = vmatprep.subr.mxu0 0.0
        %3847 = vmatpush1.msra.mxu0 0.0
        %3848 = vmatprep.subr.mxu0 0.0
        %3849 = vmatpush1.msra.mxu0 0.0
        %3850 = vmatprep.subr.mxu0 0.0
        %3851 = vmatpush1.msra.mxu0 0.0
        %3852 = vmatprep.subr.mxu0 0.0
        %3853 = vmatpush1.msra.mxu0 0.0
        %3854 = vmatprep.subr.mxu0 0.0
        %3855 = vmatpush1.msra.mxu0 0.0
        %3856 = vmatprep.subr.mxu0 0.0
        %3857 = vmatpush1.msra.mxu0 0.0
        %3858 = vmatprep.subr.mxu0 0.0
        %3859 = vmatpush1.msra.mxu0 0.0
        %3860 = vmatprep.subr.mxu0 0.0
        %3861 = vmatpush1.msra.mxu0 0.0
        %3862 = vmatprep.subr.mxu0 0.0
        %3863 = vmatpush1.msra.mxu0 0.0
        %3864 = vmatprep.subr.mxu0 0.0
        %3865 = vmatpush1.msra.mxu0 0.0
        %3866 = vmatprep.subr.mxu0 0.0
        %3867 = vmatpush1.msra.mxu0 0.0
        %3868 = vmatprep.subr.mxu0 0.0
        %3869 = vmatpush1.msra.mxu0 0.0
        %3870 = vmatprep.subr.mxu0 0.0
        %3871 = vmatpush1.msra.mxu0 0.0
        %3872 = vmatprep.subr.mxu0 0.0
        %3873 = vmatpush1.msra.mxu0 0.0
        %3874 = vmatprep.subr.mxu0 0.0
        %3875 = vmatpush1.msra.mxu0 0.0
        %3876 = vmatprep.subr.mxu0 0.0
        %3877 = vmatpush1.msra.mxu0 0.0
        %3878 = vmatprep.subr.mxu0 0.0
        %3879 = vmatpush1.msra.mxu0 0.0
        %3880 = vmatprep.subr.mxu0 0.0
        %3881 = vmatpush1.msra.mxu0 0.0
        %3882 = vmatprep.subr.mxu0 0.0
        %3883 = vmatpush1.msra.mxu0 0.0
        %3884 = vmatprep.subr.mxu0 0.0
        %3885 = vmatpush1.msra.mxu0 0.0
        %3886 = vmatprep.subr.mxu0 0.0
        %3887 = vmatpush1.msra.mxu0 0.0
        %3888 = vmatprep.subr.mxu0 0.0
        %3889 = vmatpush1.msra.mxu0 0.0
        %3890 = vmatprep.subr.mxu0 0.0
        %3891 = vmatpush1.msra.mxu0 0.0
        %3892 = vmatprep.subr.mxu0 0.0
        %3893 = vmatpush1.msra.mxu0 0.0
        %3894 = vmatprep.subr.mxu0 0.0
        %3895 = vmatpush1.msra.mxu0 0.0
        %3896 = vmatprep.subr.mxu0 0.0
        %3897 = vmatpush1.msra.mxu0 0.0
        %3898 = vmatprep.subr.mxu0 0.0
        %3899 = vmatpush1.msra.mxu0 0.0
        %3900 = vmatprep.mubr.f32.mxu0 0.0
        %3901 = vmatmul.mubr.f32.gmra.mrb[0].mxu0 %v3834
        %v3902 = vpop.f32.mrb[0].mxu0
        %v3903 = vadd.f32 0.0, %v3902
        %v3904 = vpop.f32.mrb[0].mxu0
        %3905 = vdwg.mxu0
        %v3906 = vadd.f32 %v3664, %v3903
        %3907 = vrot.lane.b32.xlu0 %v3039, 104
        %v3908 = vpop.permute.xlu0 %3907
        %3909 = vrot.lane.b32.xlu0 %v3113, 104
        %v3910 = vpop.permute.xlu0 %3909
        %v3911 = vsel %vm1951, %v3908, 0
        %v3913 = vsel %vm1951, %v3910, 0
        %3915 = vmatprep.subr.mxu0 0.0
        %3916 = vmatpush1.xpose.msra.mxu0 %v3913
        %3917 = vmatprep.subr.mxu0 0.0
        %3918 = vmatpush1.xpose.msra.mxu0 0.0
        %3919 = vmatprep.subr.mxu0 0.0
        %3920 = vmatpush1.xpose.msra.mxu0 0.0
        %3921 = vmatprep.subr.mxu0 0.0
        %3922 = vmatpush1.xpose.msra.mxu0 0.0
        %3923 = vmatprep.subr.mxu0 0.0
        %3924 = vmatpush1.xpose.msra.mxu0 0.0
        %3925 = vmatprep.subr.mxu0 0.0
        %3926 = vmatpush1.xpose.msra.mxu0 0.0
        %3927 = vmatprep.subr.mxu0 0.0
        %3928 = vmatpush1.xpose.msra.mxu0 0.0
        %3929 = vmatprep.subr.mxu0 0.0
        %3930 = vmatpush1.xpose.msra.mxu0 0.0
        %3931 = vmatprep.subr.mxu0 0.0
        %3932 = vmatpush1.xpose.msra.mxu0 0.0
        %3933 = vmatprep.subr.mxu0 0.0
        %3934 = vmatpush1.xpose.msra.mxu0 0.0
        %3935 = vmatprep.subr.mxu0 0.0
        %3936 = vmatpush1.xpose.msra.mxu0 0.0
        %3937 = vmatprep.subr.mxu0 0.0
        %3938 = vmatpush1.xpose.msra.mxu0 0.0
        %3939 = vmatprep.subr.mxu0 0.0
        %3940 = vmatpush1.xpose.msra.mxu0 0.0
        %3941 = vmatprep.subr.mxu0 0.0
        %3942 = vmatpush1.xpose.msra.mxu0 0.0
        %3943 = vmatprep.subr.mxu0 0.0
        %3944 = vmatpush1.xpose.msra.mxu0 0.0
        %3945 = vmatprep.subr.mxu0 0.0
        %3946 = vmatpush1.xpose.msra.mxu0 0.0
        %3947 = vmatprep.subr.mxu0 0.0
        %3948 = vmatpush1.xpose.msra.mxu0 0.0
        %3949 = vmatprep.subr.mxu0 0.0
        %3950 = vmatpush1.xpose.msra.mxu0 0.0
        %3951 = vmatprep.subr.mxu0 0.0
        %3952 = vmatpush1.xpose.msra.mxu0 0.0
        %3953 = vmatprep.subr.mxu0 0.0
        %3954 = vmatpush1.xpose.msra.mxu0 0.0
        %3955 = vmatprep.subr.mxu0 0.0
        %3956 = vmatpush1.xpose.msra.mxu0 0.0
        %3957 = vmatprep.subr.mxu0 0.0
        %3958 = vmatpush1.xpose.msra.mxu0 0.0
        %3959 = vmatprep.subr.mxu0 0.0
        %3960 = vmatpush1.xpose.msra.mxu0 0.0
        %3961 = vmatprep.subr.mxu0 0.0
        %3962 = vmatpush1.xpose.msra.mxu0 0.0
        %3963 = vmatprep.subr.mxu0 0.0
        %3964 = vmatpush1.xpose.msra.mxu0 0.0
        %3965 = vmatprep.subr.mxu0 0.0
        %3966 = vmatpush1.xpose.msra.mxu0 0.0
        %3967 = vmatprep.subr.mxu0 0.0
        %3968 = vmatpush1.xpose.msra.mxu0 0.0
        %3969 = vmatprep.subr.mxu0 0.0
        %3970 = vmatpush1.xpose.msra.mxu0 0.0
        %3971 = vmatprep.subr.mxu0 0.0
        %3972 = vmatpush1.xpose.msra.mxu0 0.0
        %3973 = vmatprep.subr.mxu0 0.0
        %3974 = vmatpush1.xpose.msra.mxu0 0.0
        %3975 = vmatprep.subr.mxu0 0.0
        %3976 = vmatpush1.xpose.msra.mxu0 0.0
        %3977 = vmatprep.subr.mxu0 0.0
        %3978 = vmatpush1.xpose.msra.mxu0 0.0
        %3979 = vmatprep.mubr.f32.mxu0 0.0
        %3980 = vmatmul.mubr.f32.gmra.mrb[0].mxu0 %v3911
        %v3981 = vpop.f32.mrb[0].mxu0
        %v3982 = vadd.f32 0.0, %v3981
        %v3983 = vpop.f32.mrb[0].mxu0
        %3984 = vdwg.mxu0
        %v3985 = vmul.f32 %v3982, 0.35355338
        %v3986 = vsel %vm1951, %v3985, -inf
        %3987 = vmax.xlane.f32.xlu0 %v3986
        %v3988 = vpop.xlane.xlu0 %3987
        %v3989 = vsub.f32 %v3985, %v3988
        %v3990 = vmul.f32 %v3989, 1.442695
        %v3991 = vpow.pop %v3990
        %v3992 = vsel %vm1951, %v3991, 0.0
        %3993 = vadd.xlane.f32.xlu0 %v3992
        %v3994 = vpop.xlane.xlu0 %3993
        %v3995 = vrcp.pop %v3994
        %v3996 = vmul.f32 %v3991, %v3995
        %3997 = vrot.lane.b32.xlu0 %v3190, 104
        %v3998 = vpop.permute.xlu0 %3997
        %v4001 = vsel %vm1951, %v3996, 0
        %4003 = vmatprep.subr.mxu0 0.0
        %4004 = vmatpush1.msra.mxu0 %v3998
        %4005 = vmatprep.subr.mxu0 0.0
        %4006 = vmatpush1.msra.mxu0 0.0
        %4007 = vmatprep.subr.mxu0 0.0
        %4008 = vmatpush1.msra.mxu0 0.0
        %4009 = vmatprep.subr.mxu0 0.0
        %4010 = vmatpush1.msra.mxu0 0.0
        %4011 = vmatprep.subr.mxu0 0.0
        %4012 = vmatpush1.msra.mxu0 0.0
        %4013 = vmatprep.subr.mxu0 0.0
        %4014 = vmatpush1.msra.mxu0 0.0
        %4015 = vmatprep.subr.mxu0 0.0
        %4016 = vmatpush1.msra.mxu0 0.0
        %4017 = vmatprep.subr.mxu0 0.0
        %4018 = vmatpush1.msra.mxu0 0.0
        %4019 = vmatprep.subr.mxu0 0.0
        %4020 = vmatpush1.msra.mxu0 0.0
        %4021 = vmatprep.subr.mxu0 0.0
        %4022 = vmatpush1.msra.mxu0 0.0
        %4023 = vmatprep.subr.mxu0 0.0
        %4024 = vmatpush1.msra.mxu0 0.0
        %4025 = vmatprep.subr.mxu0 0.0
        %4026 = vmatpush1.msra.mxu0 0.0
        %4027 = vmatprep.subr.mxu0 0.0
        %4028 = vmatpush1.msra.mxu0 0.0
        %4029 = vmatprep.subr.mxu0 0.0
        %4030 = vmatpush1.msra.mxu0 0.0
        %4031 = vmatprep.subr.mxu0 0.0
        %4032 = vmatpush1.msra.mxu0 0.0
        %4033 = vmatprep.subr.mxu0 0.0
        %4034 = vmatpush1.msra.mxu0 0.0
        %4035 = vmatprep.subr.mxu0 0.0
        %4036 = vmatpush1.msra.mxu0 0.0
        %4037 = vmatprep.subr.mxu0 0.0
        %4038 = vmatpush1.msra.mxu0 0.0
        %4039 = vmatprep.subr.mxu0 0.0
        %4040 = vmatpush1.msra.mxu0 0.0
        %4041 = vmatprep.subr.mxu0 0.0
        %4042 = vmatpush1.msra.mxu0 0.0
        %4043 = vmatprep.subr.mxu0 0.0
        %4044 = vmatpush1.msra.mxu0 0.0
        %4045 = vmatprep.subr.mxu0 0.0
        %4046 = vmatpush1.msra.mxu0 0.0
        %4047 = vmatprep.subr.mxu0 0.0
        %4048 = vmatpush1.msra.mxu0 0.0
        %4049 = vmatprep.subr.mxu0 0.0
        %4050 = vmatpush1.msra.mxu0 0.0
        %4051 = vmatprep.subr.mxu0 0.0
        %4052 = vmatpush1.msra.mxu0 0.0
        %4053 = vmatprep.subr.mxu0 0.0
        %4054 = vmatpush1.msra.mxu0 0.0
        %4055 = vmatprep.subr.mxu0 0.0
        %4056 = vmatpush1.msra.mxu0 0.0
        %4057 = vmatprep.subr.mxu0 0.0
        %4058 = vmatpush1.msra.mxu0 0.0
        %4059 = vmatprep.subr.mxu0 0.0
        %4060 = vmatpush1.msra.mxu0 0.0
        %4061 = vmatprep.subr.mxu0 0.0
        %4062 = vmatpush1.msra.mxu0 0.0
        %4063 = vmatprep.subr.mxu0 0.0
        %4064 = vmatpush1.msra.mxu0 0.0
        %4065 = vmatprep.subr.mxu0 0.0
        %4066 = vmatpush1.msra.mxu0 0.0
        %4067 = vmatprep.mubr.f32.mxu0 0.0
        %4068 = vmatmul.mubr.f32.gmra.mrb[0].mxu0 %v4001
        %v4069 = vpop.f32.mrb[0].mxu0
        %v4070 = vadd.f32 0.0, %v4069
        %v4071 = vpop.f32.mrb[0].mxu0
        %4072 = vdwg.mxu0
        %v4074 = vsel %vm1951, %v4070, 0
        %4076 = vmatprep.subr.mxu0 0.0
        %4077 = vmatpush1.msra.mxu0 %v1703
        %4078 = vmatprep.subr.mxu0 0.0
        %4079 = vmatpush1.msra.mxu0 0.0
        %4080 = vmatprep.subr.mxu0 0.0
        %4081 = vmatpush1.msra.mxu0 0.0
        %4082 = vmatprep.subr.mxu0 0.0
        %4083 = vmatpush1.msra.mxu0 0.0
        %4084 = vmatprep.subr.mxu0 0.0
        %4085 = vmatpush1.msra.mxu0 0.0
        %4086 = vmatprep.subr.mxu0 0.0
        %4087 = vmatpush1.msra.mxu0 0.0
        %4088 = vmatprep.subr.mxu0 0.0
        %4089 = vmatpush1.msra.mxu0 0.0
        %4090 = vmatprep.subr.mxu0 0.0
        %4091 = vmatpush1.msra.mxu0 0.0
        %4092 = vmatprep.subr.mxu0 0.0
        %4093 = vmatpush1.msra.mxu0 0.0
        %4094 = vmatprep.subr.mxu0 0.0
        %4095 = vmatpush1.msra.mxu0 0.0
        %4096 = vmatprep.subr.mxu0 0.0
        %4097 = vmatpush1.msra.mxu0 0.0
        %4098 = vmatprep.subr.mxu0 0.0
        %4099 = vmatpush1.msra.mxu0 0.0
        %4100 = vmatprep.subr.mxu0 0.0
        %4101 = vmatpush1.msra.mxu0 0.0
        %4102 = vmatprep.subr.mxu0 0.0
        %4103 = vmatpush1.msra.mxu0 0.0
        %4104 = vmatprep.subr.mxu0 0.0
        %4105 = vmatpush1.msra.mxu0 0.0
        %4106 = vmatprep.subr.mxu0 0.0
        %4107 = vmatpush1.msra.mxu0 0.0
        %4108 = vmatprep.subr.mxu0 0.0
        %4109 = vmatpush1.msra.mxu0 0.0
        %4110 = vmatprep.subr.mxu0 0.0
        %4111 = vmatpush1.msra.mxu0 0.0
        %4112 = vmatprep.subr.mxu0 0.0
        %4113 = vmatpush1.msra.mxu0 0.0
        %4114 = vmatprep.subr.mxu0 0.0
        %4115 = vmatpush1.msra.mxu0 0.0
        %4116 = vmatprep.subr.mxu0 0.0
        %4117 = vmatpush1.msra.mxu0 0.0
        %4118 = vmatprep.subr.mxu0 0.0
        %4119 = vmatpush1.msra.mxu0 0.0
        %4120 = vmatprep.subr.mxu0 0.0
        %4121 = vmatpush1.msra.mxu0 0.0
        %4122 = vmatprep.subr.mxu0 0.0
        %4123 = vmatpush1.msra.mxu0 0.0
        %4124 = vmatprep.subr.mxu0 0.0
        %4125 = vmatpush1.msra.mxu0 0.0
        %4126 = vmatprep.subr.mxu0 0.0
        %4127 = vmatpush1.msra.mxu0 0.0
        %4128 = vmatprep.subr.mxu0 0.0
        %4129 = vmatpush1.msra.mxu0 0.0
        %4130 = vmatprep.subr.mxu0 0.0
        %4131 = vmatpush1.msra.mxu0 0.0
        %4132 = vmatprep.subr.mxu0 0.0
        %4133 = vmatpush1.msra.mxu0 0.0
        %4134 = vmatprep.subr.mxu0 0.0
        %4135 = vmatpush1.msra.mxu0 0.0
        %4136 = vmatprep.subr.mxu0 0.0
        %4137 = vmatpush1.msra.mxu0 0.0
        %4138 = vmatprep.subr.mxu0 0.0
        %4139 = vmatpush1.msra.mxu0 0.0
        %4140 = vmatprep.mubr.f32.mxu0 0.0
        %4141 = vmatmul.mubr.f32.gmra.mrb[0].mxu0 %v4074
        %v4142 = vpop.f32.mrb[0].mxu0
        %v4143 = vadd.f32 0.0, %v4142
        %v4144 = vpop.f32.mrb[0].mxu0
        %4145 = vdwg.mxu0
        %v4146 = vadd.f32 %v3906, %v4143
        %v4147 = vadd.f32 %v2963, %v4146
        %v4148 = vlaneseq
        %v4149 = vshrl.u32 %v4148, 7
        %v4150 = vsub.s32 1, %v4149
        %v4151 = vrot.slane %v1705, %v4150
        %v4152 = vadd.f32 %v4147, %v4151
        %v4153 = vsel %vm966, %v4152, 0.0
        %4154 = vadd.xlane.f32.xlu0 %v4153
        %v4155 = vpop.xlane.xlu0 %4154
        %v4156 = vmul.f32 %v4155, %v970
        %v4157 = vsub.f32 %v4152, %v4156
        %v4158 = vmul.f32 %v4157, %v4157
        %v4159 = vsel %vm966, %v4158, 0.0
        %4160 = vadd.xlane.f32.xlu0 %v4159
        %v4161 = vpop.xlane.xlu0 %4160
        %v4162 = vmul.f32 %v4161, %v970
        %v4163 = vadd.f32 %v4162, 1e-05
        %v4164 = vrsqrt.pop %v4163
        %v4165 = vmul.f32 %v4157, %v4164
        %v4166 = vlaneseq
        %v4167 = vshrl.u32 %v4166, 7
        %v4168 = vsub.s32 2, %v4167
        %v4169 = vrot.slane %v1705, %v4168
        %v4170 = vmul.f32 %v4165, %v4169
        %v4171 = vlaneseq
        %v4172 = vshrl.u32 %v4171, 7
        %v4173 = vsub.s32 3, %v4172
        %v4174 = vrot.slane %v1705, %v4173
        %v4175 = vadd.f32 %v4170, %v4174
        %v4176 = vld [vmem:[%s807] sm:$0xff]
        %v4177 = vld [vmem:[%s807 + $0x8] sm:$0xff]
        %v4178 = vld [vmem:[%s807 + $0x10] sm:$0xff]
        %v4179 = vld [vmem:[%s807 + $0x18] sm:$0xff]
        %v4180 = vld [vmem:[%s815] sm:$0x1]
        %v4182 = vlaneseq
        %v4183 = vshrl.u32 %v4182, 7
        %v4184 = vsub.s32 0, %v4183
        %v4185 = vrot.slane %v4180, %v4184
        %v4188 = vsel %vm966, %v4175, 0
        %4190 = vmatprep.subr.mxu0 0.0
        %4191 = vmatpush1.msra.mxu0 %v4176
        %4192 = vmatprep.subr.mxu0 0.0
        %4193 = vmatpush1.msra.mxu0 %v4177
        %4194 = vmatprep.subr.mxu0 0.0
        %4195 = vmatpush1.msra.mxu0 %v4178
        %4196 = vmatprep.subr.mxu0 0.0
        %4197 = vmatpush1.msra.mxu0 %v4179
        %4198 = vmatprep.subr.mxu0 0.0
        %4199 = vmatpush1.msra.mxu0 0.0
        %4200 = vmatprep.subr.mxu0 0.0
        %4201 = vmatpush1.msra.mxu0 0.0
        %4202 = vmatprep.subr.mxu0 0.0
        %4203 = vmatpush1.msra.mxu0 0.0
        %4204 = vmatprep.subr.mxu0 0.0
        %4205 = vmatpush1.msra.mxu0 0.0
        %4206 = vmatprep.subr.mxu0 0.0
        %4207 = vmatpush1.msra.mxu0 0.0
        %4208 = vmatprep.subr.mxu0 0.0
        %4209 = vmatpush1.msra.mxu0 0.0
        %4210 = vmatprep.subr.mxu0 0.0
        %4211 = vmatpush1.msra.mxu0 0.0
        %4212 = vmatprep.subr.mxu0 0.0
        %4213 = vmatpush1.msra.mxu0 0.0
        %4214 = vmatprep.subr.mxu0 0.0
        %4215 = vmatpush1.msra.mxu0 0.0
        %4216 = vmatprep.subr.mxu0 0.0
        %4217 = vmatpush1.msra.mxu0 0.0
        %4218 = vmatprep.subr.mxu0 0.0
        %4219 = vmatpush1.msra.mxu0 0.0
        %4220 = vmatprep.subr.mxu0 0.0
        %4221 = vmatpush1.msra.mxu0 0.0
        %4222 = vmatprep.subr.mxu0 0.0
        %4223 = vmatpush1.msra.mxu0 0.0
        %4224 = vmatprep.subr.mxu0 0.0
        %4225 = vmatpush1.msra.mxu0 0.0
        %4226 = vmatprep.subr.mxu0 0.0
        %4227 = vmatpush1.msra.mxu0 0.0
        %4228 = vmatprep.subr.mxu0 0.0
        %4229 = vmatpush1.msra.mxu0 0.0
        %4230 = vmatprep.subr.mxu0 0.0
        %4231 = vmatpush1.msra.mxu0 0.0
        %4232 = vmatprep.subr.mxu0 0.0
        %4233 = vmatpush1.msra.mxu0 0.0
        %4234 = vmatprep.subr.mxu0 0.0
        %4235 = vmatpush1.msra.mxu0 0.0
        %4236 = vmatprep.subr.mxu0 0.0
        %4237 = vmatpush1.msra.mxu0 0.0
        %4238 = vmatprep.subr.mxu0 0.0
        %4239 = vmatpush1.msra.mxu0 0.0
        %4240 = vmatprep.subr.mxu0 0.0
        %4241 = vmatpush1.msra.mxu0 0.0
        %4242 = vmatprep.subr.mxu0 0.0
        %4243 = vmatpush1.msra.mxu0 0.0
        %4244 = vmatprep.subr.mxu0 0.0
        %4245 = vmatpush1.msra.mxu0 0.0
        %4246 = vmatprep.subr.mxu0 0.0
        %4247 = vmatpush1.msra.mxu0 0.0
        %4248 = vmatprep.subr.mxu0 0.0
        %4249 = vmatpush1.msra.mxu0 0.0
        %4250 = vmatprep.subr.mxu0 0.0
        %4251 = vmatpush1.msra.mxu0 0.0
        %4252 = vmatprep.subr.mxu0 0.0
        %4253 = vmatpush1.msra.mxu0 0.0
        %4254 = vmatprep.mubr.f32.mxu0 0.0
        %4255 = vmatmul.mubr.f32.gmra.mrb[0].mxu0 %v4188
        %v4256 = vpop.f32.mrb[0].mxu0
        %v4257 = vadd.f32 %v4185, %v4256
        %v4258 = vpop.f32.mrb[0].mxu0
        %4259 = vdwg.mxu0
        %v4260 = vmax.f32 %v4257, 0.0
        %v4261 = vld [vmem:[%s812] sm:$0xff]
        %v4262 = vld [vmem:[%s812 + $0x8] sm:$0xff]
        %v4263 = vld [vmem:[%s812 + $0x10] sm:$0xff]
        %v4264 = vld [vmem:[%s812 + $0x18] sm:$0xff]
        %v4265 = vld [vmem:[%s812 + $0x20] sm:$0xff]
        %v4266 = vld [vmem:[%s812 + $0x28] sm:$0xff]
        %v4267 = vld [vmem:[%s812 + $0x30] sm:$0xff]
        %v4268 = vld [vmem:[%s812 + $0x38] sm:$0xff]
        %v4269 = vlaneseq
        %v4270 = vshrl.u32 %v4269, 7
        %v4271 = vsub.s32 4, %v4270
        %v4272 = vrot.slane %v1705, %v4271
        %vm4273 = vcmask 523264
        %v4275 = vsel %vm4273, %v4260, 0
        %4277 = vmatprep.subr.mxu0 0.0
        %4278 = vmatpush1.msra.mxu0 %v4261
        %4279 = vmatprep.subr.mxu0 0.0
        %4280 = vmatpush1.msra.mxu0 %v4262
        %4281 = vmatprep.subr.mxu0 0.0
        %4282 = vmatpush1.msra.mxu0 %v4263
        %4283 = vmatprep.subr.mxu0 0.0
        %4284 = vmatpush1.msra.mxu0 %v4264
        %4285 = vmatprep.subr.mxu0 0.0
        %4286 = vmatpush1.msra.mxu0 %v4265
        %4287 = vmatprep.subr.mxu0 0.0
        %4288 = vmatpush1.msra.mxu0 %v4266
        %4289 = vmatprep.subr.mxu0 0.0
        %4290 = vmatpush1.msra.mxu0 %v4267
        %4291 = vmatprep.subr.mxu0 0.0
        %4292 = vmatpush1.msra.mxu0 %v4268
        %4293 = vmatprep.subr.mxu0 0.0
        %4294 = vmatpush1.msra.mxu0 0.0
        %4295 = vmatprep.subr.mxu0 0.0
        %4296 = vmatpush1.msra.mxu0 0.0
        %4297 = vmatprep.subr.mxu0 0.0
        %4298 = vmatpush1.msra.mxu0 0.0
        %4299 = vmatprep.subr.mxu0 0.0
        %4300 = vmatpush1.msra.mxu0 0.0
        %4301 = vmatprep.subr.mxu0 0.0
        %4302 = vmatpush1.msra.mxu0 0.0
        %4303 = vmatprep.subr.mxu0 0.0
        %4304 = vmatpush1.msra.mxu0 0.0
        %4305 = vmatprep.subr.mxu0 0.0
        %4306 = vmatpush1.msra.mxu0 0.0
        %4307 = vmatprep.subr.mxu0 0.0
        %4308 = vmatpush1.msra.mxu0 0.0
        %4309 = vmatprep.subr.mxu0 0.0
        %4310 = vmatpush1.msra.mxu0 0.0
        %4311 = vmatprep.subr.mxu0 0.0
        %4312 = vmatpush1.msra.mxu0 0.0
        %4313 = vmatprep.subr.mxu0 0.0
        %4314 = vmatpush1.msra.mxu0 0.0
        %4315 = vmatprep.subr.mxu0 0.0
        %4316 = vmatpush1.msra.mxu0 0.0
        %4317 = vmatprep.subr.mxu0 0.0
        %4318 = vmatpush1.msra.mxu0 0.0
        %4319 = vmatprep.subr.mxu0 0.0
        %4320 = vmatpush1.msra.mxu0 0.0
        %4321 = vmatprep.subr.mxu0 0.0
        %4322 = vmatpush1.msra.mxu0 0.0
        %4323 = vmatprep.subr.mxu0 0.0
        %4324 = vmatpush1.msra.mxu0 0.0
        %4325 = vmatprep.subr.mxu0 0.0
        %4326 = vmatpush1.msra.mxu0 0.0
        %4327 = vmatprep.subr.mxu0 0.0
        %4328 = vmatpush1.msra.mxu0 0.0
        %4329 = vmatprep.subr.mxu0 0.0
        %4330 = vmatpush1.msra.mxu0 0.0
        %4331 = vmatprep.subr.mxu0 0.0
        %4332 = vmatpush1.msra.mxu0 0.0
        %4333 = vmatprep.subr.mxu0 0.0
        %4334 = vmatpush1.msra.mxu0 0.0
        %4335 = vmatprep.subr.mxu0 0.0
        %4336 = vmatpush1.msra.mxu0 0.0
        %4337 = vmatprep.subr.mxu0 0.0
        %4338 = vmatpush1.msra.mxu0 0.0
        %4339 = vmatprep.subr.mxu0 0.0
        %4340 = vmatpush1.msra.mxu0 0.0
        %4341 = vmatprep.mubr.f32.mxu0 0.0
        %4342 = vmatmul.mubr.f32.gmra.mrb[0].mxu0 %v4275
        %v4343 = vpop.f32.mrb[0].mxu0
        %v4344 = vadd.f32 %v4272, %v4343
        %v4345 = vpop.f32.mrb[0].mxu0
        %4346 = vdwg.mxu0
        %v4347 = vadd.f32 %v4175, %v4344
        %v4348 = vsel %vm966, %v4347, 0.0
        %4349 = vadd.xlane.f32.xlu0 %v4348
        %v4350 = vpop.xlane.xlu0 %4349
        %v4351 = vmul.f32 %v4350, %v970
        %v4352 = vsub.f32 %v4347, %v4351
        %v4353 = vmul.f32 %v4352, %v4352
        %v4354 = vsel %vm966, %v4353, 0.0
        %4355 = vadd.xlane.f32.xlu0 %v4354
        %v4356 = vpop.xlane.xlu0 %4355
        %v4357 = vmul.f32 %v4356, %v970
        %v4358 = vadd.f32 %v4357, 1e-05
        %v4359 = vrsqrt.pop %v4358
        %v4360 = vmul.f32 %v4352, %v4359
        %v4361 = vlaneseq
        %v4362 = vshrl.u32 %v4361, 7
        %v4363 = vsub.s32 5, %v4362
        %v4364 = vrot.slane %v1705, %v4363
        %v4365 = vmul.f32 %v4360, %v4364
        %v4366 = vlaneseq
        %v4367 = vshrl.u32 %v4366, 7
        %v4368 = vsub.s32 6, %v4367
        %v4369 = vrot.slane %v1705, %v4368
        %v4370 = vadd.f32 %v4365, %v4369
        %4371 = vst.msk [vmem:[#allocation3] sm:$0xff] %vm966, %v4370
        %p4372 = scmp.eq.s32.totalorder %s43, 2
        // Predicated region
        $region109: #{tpu_custom_call.1} parent=103 // pred_check
          %p4373 = pneg %p4372
        $region110: #{tpu_custom_call.1} parent=103 // pred_check_branch
          %4375 = sbr.rel (%p4373) target = $region112
        $region111: #{tpu_custom_call.1} parent=103 // pred_region
          %v4376 = vld [vmem:[%s5] sm:$0x3]
          %v4377 = vsel %vm966, %v4370, 0.0
          %4378 = vadd.xlane.f32.xlu0 %v4377
          %v4379 = vpop.xlane.xlu0 %4378
          %v4380 = vmul.f32 %v4379, %v970
          %v4381 = vsub.f32 %v4370, %v4380
          %v4382 = vmul.f32 %v4381, %v4381
          %v4383 = vsel %vm966, %v4382, 0.0
          %4384 = vadd.xlane.f32.xlu0 %v4383
          %v4385 = vpop.xlane.xlu0 %4384
          %v4386 = vmul.f32 %v4385, %v970
          %v4387 = vadd.f32 %v4386, 1e-05
          %v4388 = vrsqrt.pop %v4387
          %v4389 = vmul.f32 %v4381, %v4388
          %v4390 = vlaneseq
          %v4391 = vshrl.u32 %v4390, 7
          %v4392 = vsub.s32 0, %v4391
          %v4393 = vrot.slane %v4376, %v4392
          %v4394 = vmul.f32 %v4389, %v4393
          %v4395 = vlaneseq
          %v4396 = vshrl.u32 %v4395, 7
          %v4397 = vsub.s32 1, %v4396
          %v4398 = vrot.slane %v4376, %v4397
          %v4399 = vadd.f32 %v4394, %v4398
          %v4400 = vld [vmem:[%s6] sm:$0xff]
          %v4401 = vld [vmem:[%s6 + $0x8] sm:$0xff]
          %v4402 = vld [vmem:[%s6 + $0x10] sm:$0xff]
          %v4403 = vld [vmem:[%s6 + $0x18] sm:$0xff]
          %v4404 = vld [vmem:[%s7] sm:$0x1]
          %v4406 = vlaneseq
          %v4407 = vshrl.u32 %v4406, 7
          %v4408 = vsub.s32 0, %v4407
          %v4409 = vrot.slane %v4404, %v4408
          %v4412 = vsel %vm966, %v4399, 0
          %4414 = vmatprep.subr.mxu0 0.0
          %4415 = vmatpush1.msra.mxu0 %v4400
          %4416 = vmatprep.subr.mxu0 0.0
          %4417 = vmatpush1.msra.mxu0 %v4401
          %4418 = vmatprep.subr.mxu0 0.0
          %4419 = vmatpush1.msra.mxu0 %v4402
          %4420 = vmatprep.subr.mxu0 0.0
          %4421 = vmatpush1.msra.mxu0 %v4403
          %4422 = vmatprep.subr.mxu0 0.0
          %4423 = vmatpush1.msra.mxu0 0.0
          %4424 = vmatprep.subr.mxu0 0.0
          %4425 = vmatpush1.msra.mxu0 0.0
          %4426 = vmatprep.subr.mxu0 0.0
          %4427 = vmatpush1.msra.mxu0 0.0
          %4428 = vmatprep.subr.mxu0 0.0
          %4429 = vmatpush1.msra.mxu0 0.0
          %4430 = vmatprep.subr.mxu0 0.0
          %4431 = vmatpush1.msra.mxu0 0.0
          %4432 = vmatprep.subr.mxu0 0.0
          %4433 = vmatpush1.msra.mxu0 0.0
          %4434 = vmatprep.subr.mxu0 0.0
          %4435 = vmatpush1.msra.mxu0 0.0
          %4436 = vmatprep.subr.mxu0 0.0
          %4437 = vmatpush1.msra.mxu0 0.0
          %4438 = vmatprep.subr.mxu0 0.0
          %4439 = vmatpush1.msra.mxu0 0.0
          %4440 = vmatprep.subr.mxu0 0.0
          %4441 = vmatpush1.msra.mxu0 0.0
          %4442 = vmatprep.subr.mxu0 0.0
          %4443 = vmatpush1.msra.mxu0 0.0
          %4444 = vmatprep.subr.mxu0 0.0
          %4445 = vmatpush1.msra.mxu0 0.0
          %4446 = vmatprep.subr.mxu0 0.0
          %4447 = vmatpush1.msra.mxu0 0.0
          %4448 = vmatprep.subr.mxu0 0.0
          %4449 = vmatpush1.msra.mxu0 0.0
          %4450 = vmatprep.subr.mxu0 0.0
          %4451 = vmatpush1.msra.mxu0 0.0
          %4452 = vmatprep.subr.mxu0 0.0
          %4453 = vmatpush1.msra.mxu0 0.0
          %4454 = vmatprep.subr.mxu0 0.0
          %4455 = vmatpush1.msra.mxu0 0.0
          %4456 = vmatprep.subr.mxu0 0.0
          %4457 = vmatpush1.msra.mxu0 0.0
          %4458 = vmatprep.subr.mxu0 0.0
          %4459 = vmatpush1.msra.mxu0 0.0
          %4460 = vmatprep.subr.mxu0 0.0
          %4461 = vmatpush1.msra.mxu0 0.0
          %4462 = vmatprep.subr.mxu0 0.0
          %4463 = vmatpush1.msra.mxu0 0.0
          %4464 = vmatprep.subr.mxu0 0.0
          %4465 = vmatpush1.msra.mxu0 0.0
          %4466 = vmatprep.subr.mxu0 0.0
          %4467 = vmatpush1.msra.mxu0 0.0
          %4468 = vmatprep.subr.mxu0 0.0
          %4469 = vmatpush1.msra.mxu0 0.0
          %4470 = vmatprep.subr.mxu0 0.0
          %4471 = vmatpush1.msra.mxu0 0.0
          %4472 = vmatprep.subr.mxu0 0.0
          %4473 = vmatpush1.msra.mxu0 0.0
          %4474 = vmatprep.subr.mxu0 0.0
          %4475 = vmatpush1.msra.mxu0 0.0
          %4476 = vmatprep.subr.mxu0 0.0
          %4477 = vmatpush1.msra.mxu0 0.0
          %4478 = vmatprep.mubr.f32.mxu0 0.0
          %4479 = vmatmul.mubr.f32.gmra.mrb[0].mxu0 %v4412
          %v4480 = vpop.f32.mrb[0].mxu0
          %v4481 = vadd.f32 %v4409, %v4480
          %v4482 = vpop.f32.mrb[0].mxu0
          %4483 = vdwg.mxu0
          %v4484 = vld [vmem:[%s8] sm:$0xff]
          %v4485 = vld [vmem:[%s8 + $0x8] sm:$0xff]
          %v4486 = vld [vmem:[%s8 + $0x10] sm:$0xff]
          %v4487 = vld [vmem:[%s8 + $0x18] sm:$0xff]
          %v4488 = vld [vmem:[%s9] sm:$0x1]
          %v4490 = vlaneseq
          %v4491 = vshrl.u32 %v4490, 7
          %v4492 = vsub.s32 0, %v4491
          %v4493 = vrot.slane %v4488, %v4492
          %4495 = vmatprep.subr.mxu0 0.0
          %4496 = vmatpush1.msra.mxu0 %v4484
          %4497 = vmatprep.subr.mxu0 0.0
          %4498 = vmatpush1.msra.mxu0 %v4485
          %4499 = vmatprep.subr.mxu0 0.0
          %4500 = vmatpush1.msra.mxu0 %v4486
          %4501 = vmatprep.subr.mxu0 0.0
          %4502 = vmatpush1.msra.mxu0 %v4487
          %4503 = vmatprep.subr.mxu0 0.0
          %4504 = vmatpush1.msra.mxu0 0.0
          %4505 = vmatprep.subr.mxu0 0.0
          %4506 = vmatpush1.msra.mxu0 0.0
          %4507 = vmatprep.subr.mxu0 0.0
          %4508 = vmatpush1.msra.mxu0 0.0
          %4509 = vmatprep.subr.mxu0 0.0
          %4510 = vmatpush1.msra.mxu0 0.0
          %4511 = vmatprep.subr.mxu0 0.0
          %4512 = vmatpush1.msra.mxu0 0.0
          %4513 = vmatprep.subr.mxu0 0.0
          %4514 = vmatpush1.msra.mxu0 0.0
          %4515 = vmatprep.subr.mxu0 0.0
          %4516 = vmatpush1.msra.mxu0 0.0
          %4517 = vmatprep.subr.mxu0 0.0
          %4518 = vmatpush1.msra.mxu0 0.0
          %4519 = vmatprep.subr.mxu0 0.0
          %4520 = vmatpush1.msra.mxu0 0.0
          %4521 = vmatprep.subr.mxu0 0.0
          %4522 = vmatpush1.msra.mxu0 0.0
          %4523 = vmatprep.subr.mxu0 0.0
          %4524 = vmatpush1.msra.mxu0 0.0
          %4525 = vmatprep.subr.mxu0 0.0
          %4526 = vmatpush1.msra.mxu0 0.0
          %4527 = vmatprep.subr.mxu0 0.0
          %4528 = vmatpush1.msra.mxu0 0.0
          %4529 = vmatprep.subr.mxu0 0.0
          %4530 = vmatpush1.msra.mxu0 0.0
          %4531 = vmatprep.subr.mxu0 0.0
          %4532 = vmatpush1.msra.mxu0 0.0
          %4533 = vmatprep.subr.mxu0 0.0
          %4534 = vmatpush1.msra.mxu0 0.0
          %4535 = vmatprep.subr.mxu0 0.0
          %4536 = vmatpush1.msra.mxu0 0.0
          %4537 = vmatprep.subr.mxu0 0.0
          %4538 = vmatpush1.msra.mxu0 0.0
          %4539 = vmatprep.subr.mxu0 0.0
          %4540 = vmatpush1.msra.mxu0 0.0
          %4541 = vmatprep.subr.mxu0 0.0
          %4542 = vmatpush1.msra.mxu0 0.0
          %4543 = vmatprep.subr.mxu0 0.0
          %4544 = vmatpush1.msra.mxu0 0.0
          %4545 = vmatprep.subr.mxu0 0.0
          %4546 = vmatpush1.msra.mxu0 0.0
          %4547 = vmatprep.subr.mxu0 0.0
          %4548 = vmatpush1.msra.mxu0 0.0
          %4549 = vmatprep.subr.mxu0 0.0
          %4550 = vmatpush1.msra.mxu0 0.0
          %4551 = vmatprep.subr.mxu0 0.0
          %4552 = vmatpush1.msra.mxu0 0.0
          %4553 = vmatprep.subr.mxu0 0.0
          %4554 = vmatpush1.msra.mxu0 0.0
          %4555 = vmatprep.subr.mxu0 0.0
          %4556 = vmatpush1.msra.mxu0 0.0
          %4557 = vmatprep.subr.mxu0 0.0
          %4558 = vmatpush1.msra.mxu0 0.0
          %4559 = vmatprep.mubr.f32.mxu0 0.0
          %4560 = vmatmul.mubr.f32.gmra.mrb[0].mxu0 %v4412
          %v4561 = vpop.f32.mrb[0].mxu0
          %v4562 = vadd.f32 %v4493, %v4561
          %v4563 = vpop.f32.mrb[0].mxu0
          %4564 = vdwg.mxu0
          %v4565 = vmax.f32 %v4562, 0.0
          %v4566 = vld [vmem:[%s10] sm:$0xff]
          %v4567 = vld [vmem:[%s10 + $0x8] sm:$0xff]
          %v4568 = vld [vmem:[%s10 + $0x10] sm:$0xff]
          %v4569 = vld [vmem:[%s10 + $0x18] sm:$0xff]
          %v4570 = vld [vmem:[%s11] sm:$0x1]
          %v4572 = vlaneseq
          %v4573 = vshrl.u32 %v4572, 7
          %v4574 = vsub.s32 0, %v4573
          %v4575 = vrot.slane %v4570, %v4574
          %v4578 = vsel %vm966, %v4565, 0
          %4580 = vmatprep.subr.mxu0 0.0
          %4581 = vmatpush1.msra.mxu0 %v4566
          %4582 = vmatprep.subr.mxu0 0.0
          %4583 = vmatpush1.msra.mxu0 %v4567
          %4584 = vmatprep.subr.mxu0 0.0
          %4585 = vmatpush1.msra.mxu0 %v4568
          %4586 = vmatprep.subr.mxu0 0.0
          %4587 = vmatpush1.msra.mxu0 %v4569
          %4588 = vmatprep.subr.mxu0 0.0
          %4589 = vmatpush1.msra.mxu0 0.0
          %4590 = vmatprep.subr.mxu0 0.0
          %4591 = vmatpush1.msra.mxu0 0.0
          %4592 = vmatprep.subr.mxu0 0.0
          %4593 = vmatpush1.msra.mxu0 0.0
          %4594 = vmatprep.subr.mxu0 0.0
          %4595 = vmatpush1.msra.mxu0 0.0
          %4596 = vmatprep.subr.mxu0 0.0
          %4597 = vmatpush1.msra.mxu0 0.0
          %4598 = vmatprep.subr.mxu0 0.0
          %4599 = vmatpush1.msra.mxu0 0.0
          %4600 = vmatprep.subr.mxu0 0.0
          %4601 = vmatpush1.msra.mxu0 0.0
          %4602 = vmatprep.subr.mxu0 0.0
          %4603 = vmatpush1.msra.mxu0 0.0
          %4604 = vmatprep.subr.mxu0 0.0
          %4605 = vmatpush1.msra.mxu0 0.0
          %4606 = vmatprep.subr.mxu0 0.0
          %4607 = vmatpush1.msra.mxu0 0.0
          %4608 = vmatprep.subr.mxu0 0.0
          %4609 = vmatpush1.msra.mxu0 0.0
          %4610 = vmatprep.subr.mxu0 0.0
          %4611 = vmatpush1.msra.mxu0 0.0
          %4612 = vmatprep.subr.mxu0 0.0
          %4613 = vmatpush1.msra.mxu0 0.0
          %4614 = vmatprep.subr.mxu0 0.0
          %4615 = vmatpush1.msra.mxu0 0.0
          %4616 = vmatprep.subr.mxu0 0.0
          %4617 = vmatpush1.msra.mxu0 0.0
          %4618 = vmatprep.subr.mxu0 0.0
          %4619 = vmatpush1.msra.mxu0 0.0
          %4620 = vmatprep.subr.mxu0 0.0
          %4621 = vmatpush1.msra.mxu0 0.0
          %4622 = vmatprep.subr.mxu0 0.0
          %4623 = vmatpush1.msra.mxu0 0.0
          %4624 = vmatprep.subr.mxu0 0.0
          %4625 = vmatpush1.msra.mxu0 0.0
          %4626 = vmatprep.subr.mxu0 0.0
          %4627 = vmatpush1.msra.mxu0 0.0
          %4628 = vmatprep.subr.mxu0 0.0
          %4629 = vmatpush1.msra.mxu0 0.0
          %4630 = vmatprep.subr.mxu0 0.0
          %4631 = vmatpush1.msra.mxu0 0.0
          %4632 = vmatprep.subr.mxu0 0.0
          %4633 = vmatpush1.msra.mxu0 0.0
          %4634 = vmatprep.subr.mxu0 0.0
          %4635 = vmatpush1.msra.mxu0 0.0
          %4636 = vmatprep.subr.mxu0 0.0
          %4637 = vmatpush1.msra.mxu0 0.0
          %4638 = vmatprep.subr.mxu0 0.0
          %4639 = vmatpush1.msra.mxu0 0.0
          %4640 = vmatprep.subr.mxu0 0.0
          %4641 = vmatpush1.msra.mxu0 0.0
          %4642 = vmatprep.subr.mxu0 0.0
          %4643 = vmatpush1.msra.mxu0 0.0
          %4644 = vmatprep.mubr.f32.mxu0 0.0
          %4645 = vmatmul.mubr.f32.gmra.mrb[0].mxu0 %v4578
          %v4646 = vpop.f32.mrb[0].mxu0
          %v4647 = vadd.f32 %v4575, %v4646
          %v4648 = vpop.f32.mrb[0].mxu0
          %4649 = vdwg.mxu0
          %v4650 = vmax.f32 %v4647, 0.0
          %v4651 = vld [vmem:[%s12] sm:$0xff]
          %v4652 = vld [vmem:[%s12 + $0x8] sm:$0xff]
          %v4653 = vld [vmem:[%s12 + $0x10] sm:$0xff]
          %v4654 = vld [vmem:[%s12 + $0x18] sm:$0xff]
          %v4655 = vld [vmem:[%s13] sm:$0x1]
          %v4657 = vlaneseq
          %v4658 = vshrl.u32 %v4657, 7
          %v4659 = vsub.s32 0, %v4658
          %v4660 = vrot.slane %v4655, %v4659
          %v4663 = vsel %vm966, %v4650, 0
          %4665 = vmatprep.subr.mxu0 0.0
          %4666 = vmatpush1.msra.mxu0 %v4651
          %4667 = vmatprep.subr.mxu0 0.0
          %4668 = vmatpush1.msra.mxu0 %v4652
          %4669 = vmatprep.subr.mxu0 0.0
          %4670 = vmatpush1.msra.mxu0 %v4653
          %4671 = vmatprep.subr.mxu0 0.0
          %4672 = vmatpush1.msra.mxu0 %v4654
          %4673 = vmatprep.subr.mxu0 0.0
          %4674 = vmatpush1.msra.mxu0 0.0
          %4675 = vmatprep.subr.mxu0 0.0
          %4676 = vmatpush1.msra.mxu0 0.0
          %4677 = vmatprep.subr.mxu0 0.0
          %4678 = vmatpush1.msra.mxu0 0.0
          %4679 = vmatprep.subr.mxu0 0.0
          %4680 = vmatpush1.msra.mxu0 0.0
          %4681 = vmatprep.subr.mxu0 0.0
          %4682 = vmatpush1.msra.mxu0 0.0
          %4683 = vmatprep.subr.mxu0 0.0
          %4684 = vmatpush1.msra.mxu0 0.0
          %4685 = vmatprep.subr.mxu0 0.0
          %4686 = vmatpush1.msra.mxu0 0.0
          %4687 = vmatprep.subr.mxu0 0.0
          %4688 = vmatpush1.msra.mxu0 0.0
          %4689 = vmatprep.subr.mxu0 0.0
          %4690 = vmatpush1.msra.mxu0 0.0
          %4691 = vmatprep.subr.mxu0 0.0
          %4692 = vmatpush1.msra.mxu0 0.0
          %4693 = vmatprep.subr.mxu0 0.0
          %4694 = vmatpush1.msra.mxu0 0.0
          %4695 = vmatprep.subr.mxu0 0.0
          %4696 = vmatpush1.msra.mxu0 0.0
          %4697 = vmatprep.subr.mxu0 0.0
          %4698 = vmatpush1.msra.mxu0 0.0
          %4699 = vmatprep.subr.mxu0 0.0
          %4700 = vmatpush1.msra.mxu0 0.0
          %4701 = vmatprep.subr.mxu0 0.0
          %4702 = vmatpush1.msra.mxu0 0.0
          %4703 = vmatprep.subr.mxu0 0.0
          %4704 = vmatpush1.msra.mxu0 0.0
          %4705 = vmatprep.subr.mxu0 0.0
          %4706 = vmatpush1.msra.mxu0 0.0
          %4707 = vmatprep.subr.mxu0 0.0
          %4708 = vmatpush1.msra.mxu0 0.0
          %4709 = vmatprep.subr.mxu0 0.0
          %4710 = vmatpush1.msra.mxu0 0.0
          %4711 = vmatprep.subr.mxu0 0.0
          %4712 = vmatpush1.msra.mxu0 0.0
          %4713 = vmatprep.subr.mxu0 0.0
          %4714 = vmatpush1.msra.mxu0 0.0
          %4715 = vmatprep.subr.mxu0 0.0
          %4716 = vmatpush1.msra.mxu0 0.0
          %4717 = vmatprep.subr.mxu0 0.0
          %4718 = vmatpush1.msra.mxu0 0.0
          %4719 = vmatprep.subr.mxu0 0.0
          %4720 = vmatpush1.msra.mxu0 0.0
          %4721 = vmatprep.subr.mxu0 0.0
          %4722 = vmatpush1.msra.mxu0 0.0
          %4723 = vmatprep.subr.mxu0 0.0
          %4724 = vmatpush1.msra.mxu0 0.0
          %4725 = vmatprep.subr.mxu0 0.0
          %4726 = vmatpush1.msra.mxu0 0.0
          %4727 = vmatprep.subr.mxu0 0.0
          %4728 = vmatpush1.msra.mxu0 0.0
          %4729 = vmatprep.mubr.f32.mxu0 0.0
          %4730 = vmatmul.mubr.f32.gmra.mrb[0].mxu0 %v4663
          %v4731 = vpop.f32.mrb[0].mxu0
          %v4732 = vadd.f32 %v4660, %v4731
          %v4733 = vpop.f32.mrb[0].mxu0
          %4734 = vdwg.mxu0
          %v4735 = vld [vmem:[%s14] sm:$0xff]
          %v4736 = vld [vmem:[%s14 + $0x8] sm:$0xff]
          %v4737 = vld [vmem:[%s14 + $0x10] sm:$0xff]
          %v4738 = vld [vmem:[%s14 + $0x18] sm:$0xff]
          %v4740 = vsel %vm966, %v4732, 0
          %4742 = vmatprep.subr.mxu0 0.0
          %4743 = vmatpush1.msra.mxu0 %v4735
          %4744 = vmatprep.subr.mxu0 0.0
          %4745 = vmatpush1.msra.mxu0 %v4736
          %4746 = vmatprep.subr.mxu0 0.0
          %4747 = vmatpush1.msra.mxu0 %v4737
          %4748 = vmatprep.subr.mxu0 0.0
          %4749 = vmatpush1.msra.mxu0 %v4738
          %4750 = vmatprep.subr.mxu0 0.0
          %4751 = vmatpush1.msra.mxu0 0.0
          %4752 = vmatprep.subr.mxu0 0.0
          %4753 = vmatpush1.msra.mxu0 0.0
          %4754 = vmatprep.subr.mxu0 0.0
          %4755 = vmatpush1.msra.mxu0 0.0
          %4756 = vmatprep.subr.mxu0 0.0
          %4757 = vmatpush1.msra.mxu0 0.0
          %4758 = vmatprep.subr.mxu0 0.0
          %4759 = vmatpush1.msra.mxu0 0.0
          %4760 = vmatprep.subr.mxu0 0.0
          %4761 = vmatpush1.msra.mxu0 0.0
          %4762 = vmatprep.subr.mxu0 0.0
          %4763 = vmatpush1.msra.mxu0 0.0
          %4764 = vmatprep.subr.mxu0 0.0
          %4765 = vmatpush1.msra.mxu0 0.0
          %4766 = vmatprep.subr.mxu0 0.0
          %4767 = vmatpush1.msra.mxu0 0.0
          %4768 = vmatprep.subr.mxu0 0.0
          %4769 = vmatpush1.msra.mxu0 0.0
          %4770 = vmatprep.subr.mxu0 0.0
          %4771 = vmatpush1.msra.mxu0 0.0
          %4772 = vmatprep.subr.mxu0 0.0
          %4773 = vmatpush1.msra.mxu0 0.0
          %4774 = vmatprep.subr.mxu0 0.0
          %4775 = vmatpush1.msra.mxu0 0.0
          %4776 = vmatprep.subr.mxu0 0.0
          %4777 = vmatpush1.msra.mxu0 0.0
          %4778 = vmatprep.subr.mxu0 0.0
          %4779 = vmatpush1.msra.mxu0 0.0
          %4780 = vmatprep.subr.mxu0 0.0
          %4781 = vmatpush1.msra.mxu0 0.0
          %4782 = vmatprep.subr.mxu0 0.0
          %4783 = vmatpush1.msra.mxu0 0.0
          %4784 = vmatprep.subr.mxu0 0.0
          %4785 = vmatpush1.msra.mxu0 0.0
          %4786 = vmatprep.subr.mxu0 0.0
          %4787 = vmatpush1.msra.mxu0 0.0
          %4788 = vmatprep.subr.mxu0 0.0
          %4789 = vmatpush1.msra.mxu0 0.0
          %4790 = vmatprep.subr.mxu0 0.0
          %4791 = vmatpush1.msra.mxu0 0.0
          %4792 = vmatprep.subr.mxu0 0.0
          %4793 = vmatpush1.msra.mxu0 0.0
          %4794 = vmatprep.subr.mxu0 0.0
          %4795 = vmatpush1.msra.mxu0 0.0
          %4796 = vmatprep.subr.mxu0 0.0
          %4797 = vmatpush1.msra.mxu0 0.0
          %4798 = vmatprep.subr.mxu0 0.0
          %4799 = vmatpush1.msra.mxu0 0.0
          %4800 = vmatprep.subr.mxu0 0.0
          %4801 = vmatpush1.msra.mxu0 0.0
          %4802 = vmatprep.subr.mxu0 0.0
          %4803 = vmatpush1.msra.mxu0 0.0
          %4804 = vmatprep.subr.mxu0 0.0
          %4805 = vmatpush1.msra.mxu0 0.0
          %4806 = vmatprep.mubr.f32.mxu0 0.0
          %4807 = vmatmul.mubr.f32.gmra.mrb[0].mxu0 %v4740
          %v4808 = vpop.f32.mrb[0].mxu0
          %v4809 = vadd.f32 0.0, %v4808
          %v4810 = vpop.f32.mrb[0].mxu0
          %4811 = vdwg.mxu0
          %4812 = vst [vmem:[#allocation8] sm:$0xff] %v4481
          %4813 = vst [vmem:[#allocation9] sm:$0xff] %v4809
        $region112: #{tpu_custom_call.1} parent=103 // pred_fallthru
          _
        %s4814 = sand.u32 %s517, 1
        %s4815 = scalar_lea.sflag [#allocation5], %s4814
        %s4816 = sand.u32 %s517, 1
        %s4817 = smul.addr %s4816, 8
        %s4818 = scalar_lea.vmem [#allocation4], %s4817
        %s4819 = sand.u32 %s43, 1
        %s4820 = scalar_lea.sflag [#allocation7], %s4819
        %s4821 = sand.u32 %s543, 1
        %s4822 = smul.addr %s4821, 8
        %s4823 = scalar_lea.vmem [#allocation6], %s4822
        // Predicated region
        $region113: #{tpu_custom_call.1} parent=103 // pred_check
          %p4824 = pneg %p527
        $region114: #{tpu_custom_call.1} parent=103 // pred_check_branch
          %4826 = sbr.rel (%p4824) target = $region116
        $region115: #{tpu_custom_call.1} parent=103 // pred_region
          %s4828 = ssub.s32 128, 128
          %4829 = vsyncadd %s4815, %s4828
          %s4830 = smul.addr %s43, 128
          %s4831 = scalar_lea.hbm %s21, %s4830
          %s4833 = sshll.u32 %s4818, 4
          %s4834 = int_to_ptr.vmem [resolvable:$true] %s4833
          %4836 = dma.vmem_to_hbm [thread:$0]  %s4834, 128, %s4831, %s4815
        $region116: #{tpu_custom_call.1} parent=103 // pred_fallthru
          _
        // Predicated region
        $region117: #{tpu_custom_call.1} parent=103 // pred_check
          %p4837 = pneg %p553
        $region118: #{tpu_custom_call.1} parent=103 // pred_check_branch
          %4839 = sbr.rel (%p4837) target = $region120
        $region119: #{tpu_custom_call.1} parent=103 // pred_region
          %s4841 = ssub.s32 128, 128
          %4842 = vsyncadd %s4820, %s4841
          %s4843 = smul.addr %s43, 128
          %s4844 = scalar_lea.hbm %s22, %s4843
          %s4846 = sshll.u32 %s4823, 4
          %s4847 = int_to_ptr.vmem [resolvable:$true] %s4846
          %4849 = dma.vmem_to_hbm [thread:$0]  %s4847, 128, %s4844, %s4820
        $region120: #{tpu_custom_call.1} parent=103 // pred_fallthru
          _
        // Predicated region
        $region121: #{tpu_custom_call.1} parent=103 // pred_check
          %p4850 = pneg %p574
        $region122: #{tpu_custom_call.1} parent=103 // pred_check_branch
          %4852 = sbr.rel (%p4850) target = $region124
        $region123: #{tpu_custom_call.1} parent=103 // pred_region
          %s4854 = ssub.s32 128, 128
          %4855 = vsyncadd [#allocation7], %s4854
          %s4857 = sshll.u32 [#allocation8], 4
          %s4858 = int_to_ptr.vmem [resolvable:$true] %s4857
          %4860 = dma.vmem_to_hbm [thread:$0]  %s4858, 128, %s23, [#allocation7]
        $region124: #{tpu_custom_call.1} parent=103 // pred_fallthru
          _
        // Predicated region
        $region125: #{tpu_custom_call.1} parent=103 // pred_check
          %p4861 = pneg %p595
        $region126: #{tpu_custom_call.1} parent=103 // pred_check_branch
          %4863 = sbr.rel (%p4861) target = $region128
        $region127: #{tpu_custom_call.1} parent=103 // pred_region
          %s4865 = ssub.s32 128, 128
          %4866 = vsyncadd [#allocation10], %s4865
          %s4868 = sshll.u32 [#allocation9], 4
          %s4869 = int_to_ptr.vmem [resolvable:$true] %s4868
          %4871 = dma.vmem_to_hbm [thread:$0]  %s4869, 128, %s24, [#allocation10]
        $region128: #{tpu_custom_call.1} parent=103 // pred_fallthru
          _
        // Predicated region
        $region129: #{tpu_custom_call.1} parent=103 // pred_check
          %p4872 = pneg %p574
        $region130: #{tpu_custom_call.1} parent=103 // pred_check_branch
          %4874 = sbr.rel (%p4872) target = $region132
        $region131: #{tpu_custom_call.1} parent=103 // pred_region
          %4875 = dma.done [#allocation7], 128
        $region132: #{tpu_custom_call.1} parent=103 // pred_fallthru
          _
        // Predicated region
        $region133: #{tpu_custom_call.1} parent=103 // pred_check
          %p4876 = pneg %p595
        $region134: #{tpu_custom_call.1} parent=103 // pred_check_branch
          %4878 = sbr.rel (%p4876) target = $region136
        $region135: #{tpu_custom_call.1} parent=103 // pred_region
          %4879 = dma.done [#allocation10], 128
        $region136: #{tpu_custom_call.1} parent=103 // pred_fallthru
          _
      $region104: #{tpu_custom_call.1} parent=5 // pred_fallthru
        _
      %p4880 = scmp.le.s32.totalorder 2, %s38
      // Predicated region
      $region137: #{tpu_custom_call.1} parent=5 // pred_check
        %p4881 = pneg %p4880
      $region138: #{tpu_custom_call.1} parent=5 // pred_check_branch
        %4883 = sbr.rel (%p4881) target = $region140
      $region139: #{tpu_custom_call.1} parent=5 // pred_region
        %s4884 = ssub.s32 %s38, 2
        // Predicated region
        $region141: #{tpu_custom_call.1} parent=139 // pred_check
          %p4885 = pneg %p533
        $region142: #{tpu_custom_call.1} parent=139 // pred_check_branch
          %4887 = sbr.rel (%p4885) target = $region144
        $region143: #{tpu_custom_call.1} parent=139 // pred_region
          %s4888 = sand.u32 %s518, 1
          %s4889 = scalar_lea.sflag [#allocation5], %s4888
          %s4890 = sand.u32 %s518, 1
          %s4891 = smul.addr %s4890, 8
          %s4892 = scalar_lea.vmem [#allocation4], %s4891
          %4893 = dma.done %s4889, 128
        $region144: #{tpu_custom_call.1} parent=139 // pred_fallthru
          _
        // Predicated region
        $region145: #{tpu_custom_call.1} parent=139 // pred_check
          %p4894 = pneg %p559
        $region146: #{tpu_custom_call.1} parent=139 // pred_check_branch
          %4896 = sbr.rel (%p4894) target = $region148
        $region147: #{tpu_custom_call.1} parent=139 // pred_region
          %s4897 = sand.u32 %s44, 1
          %s4898 = scalar_lea.sflag [#allocation7], %s4897
          %s4899 = sand.u32 %s544, 1
          %s4900 = smul.addr %s4899, 8
          %s4901 = scalar_lea.vmem [#allocation6], %s4900
          %4902 = dma.done %s4898, 128
        $region148: #{tpu_custom_call.1} parent=139 // pred_fallthru
          _
      $region140: #{tpu_custom_call.1} parent=5 // pred_fallthru
        _
    $region6: #{tpu_custom_call.1} parent=1 // loop_footer
      %s42 = sadd.s32 1, %s38
    $region7: #{tpu_custom_call.1} parent=1 // loop_footer_branch
      %37 = sbr.rel target = $region3
    $region8: #{tpu_custom_call.1} parent=1 // loop_exit
      _
    %4903 = vsyncpa [#allocation5], 1
    %s4904 = scalar_lea.sflag [#allocation5], 1
    %4905 = vsyncpa %s4904, 1
    %4906 = vsyncpa [#allocation7], 1
    %s4907 = scalar_lea.sflag [#allocation7], 1
    %4908 = vsyncpa %s4907, 1
    %4909 = vsyncpa [#allocation10], 1

</llo_original>
